<compile_context>
chip_gen: v6e
topology: v6e:2x2x1
jax: 0.10.0
libtpu: 0.0.40
codegen_flags: <defaults>
</compile_context>

<pallas_src>
import math
import functools

import jax
import jax.numpy as jnp
from jax.experimental import pallas as pl
from jax.experimental.pallas import tpu as pltpu


def scene_saliency_kernel(
    x_ref, pe_ref, mask_ref,
    qkv_w_ref, qkv_b_ref,
    out_w_ref, out_b_ref,
    ln1_w_ref, ln1_b_ref, ln2_w_ref, ln2_b_ref,
    ffn1_w_ref, ffn1_b_ref, ffn2_w_ref, ffn2_b_ref,
    lin_w_ref, lin_b_ref,
    out_ref,
    x_state,
    *, nhead, bt, f_chunk,
):
    l = pl.program_id(1)
    n_layers = pl.num_programs(1)

    S, D = pe_ref.shape
    F = ffn1_w_ref.shape[-1]
    rows = bt * S
    head_dim = D // nhead
    scale = 1.0 / math.sqrt(head_dim)

    # --- init running activations for this batch block: x + positional encoding ---
    @pl.when(l == 0)
    def _():
        x0 = x_ref[...].astype(jnp.float32) + pe_ref[...][None, :, :]   # (bt, S, D)
        x_state[...] = x0.reshape(rows, D)

    x = x_state[...]                               # (bt*S, D) f32
    mask_add = mask_ref[...]                       # (bt, 1, S) f32 additive key-padding mask

    def layer_norm(v, w, b, eps=1e-5):
        mu = jnp.mean(v, axis=-1, keepdims=True)
        var = jnp.mean((v - mu) ** 2, axis=-1, keepdims=True)
        return (v - mu) * jax.lax.rsqrt(var + eps) * w + b

    # --- fused QKV projection: one (bt*S, D) @ (D, 3D) matmul, bf16 in / f32 accumulate ---
    x_bf = x.astype(jnp.bfloat16)
    qkv = jnp.dot(x_bf, qkv_w_ref[0],
                  preferred_element_type=jnp.float32) + qkv_b_ref[0]    # (bt*S, 3D) f32
    q3 = qkv[:, 0 * D:1 * D].reshape(bt, S, D)
    k3 = qkv[:, 1 * D:2 * D].reshape(bt, S, D)
    v3 = qkv[:, 2 * D:3 * D].reshape(bt, S, D)

    # --- multi-head attention: per head, batched over bt; accumulate out_proj directly ---
    out_w = out_w_ref[0]                           # (D, D) bf16
    attn = jnp.zeros((rows, D), jnp.float32)
    for h in range(nhead):
        sl = slice(h * head_dim, (h + 1) * head_dim)
        qh = q3[:, :, sl].astype(jnp.bfloat16)     # (bt, S, hd)
        kh = k3[:, :, sl].astype(jnp.bfloat16)
        vh = v3[:, :, sl].astype(jnp.bfloat16)
        scores = jnp.einsum('bqd,bkd->bqk', qh, kh,
                            preferred_element_type=jnp.float32) * scale  # (bt, S, S) f32
        scores = scores + mask_add                                       # key padding mask (f32)
        scores = scores - jnp.max(scores, axis=-1, keepdims=True)
        p = jnp.exp(scores)
        p = p * pl.reciprocal(jnp.sum(p, axis=-1, keepdims=True), approx=True)
        ctx = jnp.einsum('bqk,bkd->bqd', p.astype(jnp.bfloat16), vh,
                         preferred_element_type=jnp.float32)             # (bt, S, hd)
        # out_proj accumulated per head -> no ctx scratch, no sub-128-lane stores
        attn = attn + jnp.dot(ctx.reshape(rows, head_dim).astype(jnp.bfloat16),
                              out_w[sl, :], preferred_element_type=jnp.float32)
    attn = attn + out_b_ref[0]

    # residual + LayerNorm1 (post-norm; dropout == identity in eval)
    x = layer_norm(x + attn, ln1_w_ref[0], ln1_b_ref[0])

    # --- feed-forward: Linear(D->F) -> ReLU -> Linear(F->D), tiled over F ---
    x_bf2 = x.astype(jnp.bfloat16)
    ffn_o = jnp.zeros((rows, D), jnp.float32)
    n_chunks = F // f_chunk
    for c in range(n_chunks):
        cs = slice(c * f_chunk, (c + 1) * f_chunk)
        hcol = jnp.dot(x_bf2, ffn1_w_ref[0, :, cs],
                       preferred_element_type=jnp.float32) + ffn1_b_ref[0, :, cs]
        hcol = jnp.maximum(hcol, 0.0)
        ffn_o = ffn_o + jnp.dot(hcol.astype(jnp.bfloat16), ffn2_w_ref[0, cs, :],
                                preferred_element_type=jnp.float32)
    ffn_o = ffn_o + ffn2_b_ref[0]

    # residual + LayerNorm2
    x = layer_norm(x + ffn_o, ln2_w_ref[0], ln2_b_ref[0])
    x_state[...] = x

    # --- final classification linear (lane-dense padded output), last layer only ---
    @pl.when(l == n_layers - 1)
    def _():
        logits = jnp.dot(x.astype(jnp.bfloat16), lin_w_ref[...],
                         preferred_element_type=jnp.float32) + lin_b_ref[...]
        out_ref[...] = logits.reshape(out_ref.shape).astype(out_ref.dtype)


def make_positional_encoding(seq_len, d_model):
    position = jnp.arange(seq_len, dtype=jnp.float32)[:, None]
    div_term = jnp.exp(jnp.arange(0, d_model, 2, dtype=jnp.float32)
                       * (-math.log(10000.0) / d_model))
    angles = position * div_term                      # (S, ceil(D/2))
    pe = jnp.zeros((seq_len, d_model), jnp.float32)
    pe = pe.at[:, 0::2].set(jnp.sin(angles))
    pe = pe.at[:, 1::2].set(jnp.cos(angles)[:, : d_model // 2])   # robust for odd d_model
    return pe


def init_params(key, *, d_model, nhead, num_layers, dim_feedforward, output_dim):
    """Deterministic synthetic parameters, stacked per layer (PyTorch weight layout)."""
    ks = jax.random.split(key, 12)
    s = 0.02
    p = {
        "in_proj_w": s * jax.random.normal(ks[0], (num_layers, 3 * d_model, d_model), jnp.float32),
        "in_proj_b": s * jax.random.normal(ks[1], (num_layers, 1, 3 * d_model), jnp.float32),
        "out_proj_w": s * jax.random.normal(ks[2], (num_layers, d_model, d_model), jnp.float32),
        "out_proj_b": s * jax.random.normal(ks[3], (num_layers, 1, d_model), jnp.float32),
        "ln1_w": jnp.ones((num_layers, 1, d_model), jnp.float32),
        "ln1_b": jnp.zeros((num_layers, 1, d_model), jnp.float32),
        "ln2_w": jnp.ones((num_layers, 1, d_model), jnp.float32),
        "ln2_b": jnp.zeros((num_layers, 1, d_model), jnp.float32),
        "ffn1_w": s * jax.random.normal(ks[4], (num_layers, dim_feedforward, d_model), jnp.float32),
        "ffn1_b": s * jax.random.normal(ks[5], (num_layers, 1, dim_feedforward), jnp.float32),
        "ffn2_w": s * jax.random.normal(ks[6], (num_layers, d_model, dim_feedforward), jnp.float32),
        "ffn2_b": s * jax.random.normal(ks[7], (num_layers, 1, d_model), jnp.float32),
        "lin_w": s * jax.random.normal(ks[8], (output_dim, d_model), jnp.float32),
        "lin_b": s * jax.random.normal(ks[9], (1, output_dim), jnp.float32),
    }
    return p


def _pick_bt(B, S, target_rows=256, max_rows=1024):
    """Largest divisor of B with Bt*S <= max_rows, preferring the smallest with Bt*S >= target."""
    divisors = [d for d in range(1, B + 1) if B % d == 0]
    bt = 1
    for d in divisors:
        if d * S > max_rows:
            break
        bt = d
        if d * S >= target_rows:
            break
    # v7x has 2 TCs: if the parallel axis collapsed to 1, shrink Bt only when it stays MXU-filling.
    if B // bt == 1:
        for d in reversed(divisors):
            if d < bt and d * S >= target_rows:
                bt = d
                break
    return bt


def _vmem_limit_bytes(Bt, S, D, F, o_pad):
    """Budget: double-buffered layer weights + activation/IO slabs + transient headroom."""
    rows = Bt * S
    bf, f32 = 2, 4
    per_layer_w = (D * 3 * D + D * D + 2 * D * F) * bf
    per_layer_b = (3 * D + 8 * D + F) * f32
    io = rows * D * f32 + rows * o_pad * f32 + Bt * S * f32
    scratch = rows * D * f32
    transient = rows * (3 * D + 2 * D + max(512, S)) * f32
    est = 2 * (per_layer_w + per_layer_b + io) + scratch + transient + (1 << 20)
    try:
        phys = pltpu.get_tpu_info().vmem_capacity_bytes
        cap = int(phys * 3 // 4)          # leave headroom (v7x: 64 MiB physical -> ~48 MiB)
    except Exception:
        cap = 48 * (1 << 20)
    return int(min(cap, max(32 * (1 << 20), 2 * est)))


def scene_saliency_forward(scene_embeddings, embed_mask, params, *, nhead, num_layers):
    B, S, D = scene_embeddings.shape
    F = params["ffn1_w"].shape[1]
    output_dim = params["lin_w"].shape[0]
    o_pad = max(128, ((output_dim + 127) // 128) * 128)   # lane-dense output slab
    mm_dtype = jnp.bfloat16

    Bt = _pick_bt(B, S)
    f_chunk = 512 if F % 512 == 0 else (256 if F % 256 == 0 else F)

    pe = make_positional_encoding(S, D)
    # PyTorch bool key_padding_mask: True == pad -> large negative additive mask, shaped (B,1,S)
    mask_add = jnp.where(embed_mask, jnp.float32(-1e30), jnp.float32(0.0)).reshape(B, 1, S)

    # Pre-transpose PyTorch (out,in) weights to (in,out); matmul weights in bf16 (f32 accumulate).
    qkv_w = jnp.swapaxes(params["in_proj_w"], 1, 2).astype(mm_dtype)    # (L, D, 3D)
    out_w = jnp.swapaxes(params["out_proj_w"], 1, 2).astype(mm_dtype)   # (L, D, D)
    ffn1_w = jnp.swapaxes(params["ffn1_w"], 1, 2).astype(mm_dtype)      # (L, D, F)
    ffn2_w = jnp.swapaxes(params["ffn2_w"], 1, 2).astype(mm_dtype)      # (L, F, D)
    lin_w_pad = (jnp.zeros((D, o_pad), jnp.float32)
                 .at[:, :output_dim].set(params["lin_w"].T)).astype(mm_dtype)
    lin_b_pad = jnp.zeros((1, o_pad), jnp.float32).at[:, :output_dim].set(params["lin_b"])

    inputs = (
        scene_embeddings.astype(jnp.float32), pe, mask_add,
        qkv_w, params["in_proj_b"],
        out_w, params["out_proj_b"],
        params["ln1_w"], params["ln1_b"], params["ln2_w"], params["ln2_b"],
        ffn1_w, params["ffn1_b"], ffn2_w, params["ffn2_b"],
        lin_w_pad, lin_b_pad,
    )

    per_batch = lambda b, l: (b, 0, 0)
    per_layer = lambda b, l: (l, 0, 0)
    fixed2 = lambda b, l: (0, 0)

    in_specs = [
        pl.BlockSpec((Bt, S, D), per_batch),       # x (batch block)
        pl.BlockSpec((S, D), fixed2),              # pe
        pl.BlockSpec((Bt, 1, S), per_batch),       # additive mask
        pl.BlockSpec((1, D, 3 * D), per_layer),    # qkv_w
        pl.BlockSpec((1, 1, 3 * D), per_layer),    # qkv_b
        pl.BlockSpec((1, D, D), per_layer),        # out_proj_w
        pl.BlockSpec((1, 1, D), per_layer),        # out_proj_b
        pl.BlockSpec((1, 1, D), per_layer),        # ln1_w
        pl.BlockSpec((1, 1, D), per_layer),        # ln1_b
        pl.BlockSpec((1, 1, D), per_layer),        # ln2_w
        pl.BlockSpec((1, 1, D), per_layer),        # ln2_b
        pl.BlockSpec((1, D, F), per_layer),        # ffn1_w
        pl.BlockSpec((1, 1, F), per_layer),        # ffn1_b
        pl.BlockSpec((1, F, D), per_layer),        # ffn2_w
        pl.BlockSpec((1, 1, D), per_layer),        # ffn2_b
        pl.BlockSpec((D, o_pad), fixed2),          # lin_w (padded)
        pl.BlockSpec((1, o_pad), fixed2),          # lin_b (padded)
    ]

    kernel = functools.partial(scene_saliency_kernel, nhead=nhead, bt=Bt, f_chunk=f_chunk)
    out_padded = pl.pallas_call(
        kernel,
        out_shape=jax.ShapeDtypeStruct((B, S, o_pad), jnp.float32),
        grid_spec=pltpu.PrefetchScalarGridSpec(
            num_scalar_prefetch=0,
            grid=(B // Bt, num_layers),
            in_specs=in_specs,
            out_specs=pl.BlockSpec((Bt, S, o_pad), per_batch),
            scratch_shapes=[
                pltpu.VMEM((Bt * S, D), jnp.float32),   # running activations for the batch block
            ],
        ),
        compiler_params=pltpu.CompilerParams(
            dimension_semantics=("parallel", "arbitrary"),
            vmem_limit_bytes=_vmem_limit_bytes(Bt, S, D, F, o_pad),
        ),
    )(*inputs)

    return out_padded[:, :, :output_dim]


if __name__ == "__main__":
    # Small shapes implied by the forward: (batch, seq, d_model) embeddings + (batch, seq) pad mask.
    B, S, D = 2, 8, 32
    NHEAD, NUM_LAYERS, OUTPUT_DIM = 4, 2, 2
    DIM_FEEDFORWARD = 2048  # PyTorch TransformerEncoderLayer default

    key = jax.random.PRNGKey(0)
    k_x, k_p = jax.random.split(key)

    scene_embeddings = jax.random.normal(k_x, (B, S, D), jnp.float32)
    # boolean key padding mask: True = padded scene (last two positions of batch 1 padded)
    embed_mask = jnp.zeros((B, S), dtype=bool).at[1, S - 2:].set(True)

    params = init_params(k_p, d_model=D, nhead=NHEAD, num_layers=NUM_LAYERS,
                         dim_feedforward=DIM_FEEDFORWARD, output_dim=OUTPUT_DIM)

    logits = scene_saliency_forward(scene_embeddings, embed_mask, params,
                                    nhead=NHEAD, num_layers=NUM_LAYERS)
    logits = jax.block_until_ready(logits)

    assert logits.shape == (B, S, OUTPUT_DIM)
    assert bool(jnp.all(jnp.isfinite(logits)))
    print("KERNEL_OK")
</pallas_src>

<mosaic_0001>
module attributes {stable_mosaic.version = 11 : i64} {
  func.func @scene_saliency_kernel(%arg0: i32, %arg1: i32, %arg2: memref<2x8x32xf32, #tpu.memory_space<vmem>>, %arg3: memref<8x32xf32, #tpu.memory_space<vmem>>, %arg4: memref<2x1x8xf32, #tpu.memory_space<vmem>>, %arg5: memref<1x32x96xbf16, #tpu.memory_space<vmem>>, %arg6: memref<1x1x96xf32, #tpu.memory_space<vmem>>, %arg7: memref<1x32x32xbf16, #tpu.memory_space<vmem>>, %arg8: memref<1x1x32xf32, #tpu.memory_space<vmem>>, %arg9: memref<1x1x32xf32, #tpu.memory_space<vmem>>, %arg10: memref<1x1x32xf32, #tpu.memory_space<vmem>>, %arg11: memref<1x1x32xf32, #tpu.memory_space<vmem>>, %arg12: memref<1x1x32xf32, #tpu.memory_space<vmem>>, %arg13: memref<1x32x2048xbf16, #tpu.memory_space<vmem>>, %arg14: memref<1x1x2048xf32, #tpu.memory_space<vmem>>, %arg15: memref<1x2048x32xbf16, #tpu.memory_space<vmem>>, %arg16: memref<1x1x32xf32, #tpu.memory_space<vmem>>, %arg17: memref<32x128xbf16, #tpu.memory_space<vmem>>, %arg18: memref<1x128xf32, #tpu.memory_space<vmem>>, %arg19: memref<2x8x128xf32, #tpu.memory_space<vmem>>, %arg20: memref<16x32xf32, #tpu.memory_space<vmem>>) attributes {dimension_semantics = [#tpu.dimension_semantics<parallel>, #tpu.dimension_semantics<arbitrary>], iteration_bounds = array<i64: 1, 2>, scalar_prefetch = 0 : i64, scratch_operands = 1 : i64, tpu.core_type = #tpu.core_type<tc>, window_params = [{transform_indices = @transform_0, window_bounds = array<i64: 2, 8, 32>}, {pipeline_mode = #tpu.pipeline_mode<synchronous>, transform_indices = @transform_1, window_bounds = array<i64: 8, 32>}, {transform_indices = @transform_2, window_bounds = array<i64: 2, 1, 8>}, {transform_indices = @transform_3, window_bounds = array<i64: 1, 32, 96>}, {transform_indices = @transform_4, window_bounds = array<i64: 1, 1, 96>}, {transform_indices = @transform_5, window_bounds = array<i64: 1, 32, 32>}, {transform_indices = @transform_6, window_bounds = array<i64: 1, 1, 32>}, {transform_indices = @transform_7, window_bounds = array<i64: 1, 1, 32>}, {transform_indices = @transform_8, window_bounds = array<i64: 1, 1, 32>}, {transform_indices = @transform_9, window_bounds = array<i64: 1, 1, 32>}, {transform_indices = @transform_10, window_bounds = array<i64: 1, 1, 32>}, {transform_indices = @transform_11, window_bounds = array<i64: 1, 32, 2048>}, {transform_indices = @transform_12, window_bounds = array<i64: 1, 1, 2048>}, {transform_indices = @transform_13, window_bounds = array<i64: 1, 2048, 32>}, {transform_indices = @transform_14, window_bounds = array<i64: 1, 1, 32>}, {pipeline_mode = #tpu.pipeline_mode<synchronous>, transform_indices = @transform_15, window_bounds = array<i64: 32, 128>}, {pipeline_mode = #tpu.pipeline_mode<synchronous>, transform_indices = @transform_16, window_bounds = array<i64: 1, 128>}, {transform_indices = @transform_17, window_bounds = array<i64: 2, 8, 128>}]} {
    %c0_i32 = arith.constant 0 : i32
    %0 = arith.cmpi eq, %arg1, %c0_i32 : i32
    %1 = arith.extui %0 : i1 to i32
    %c0_i32_0 = arith.constant 0 : i32
    %2 = arith.cmpi ne, %1, %c0_i32_0 : i32
    scf.if %2 {
      %c0_116 = arith.constant 0 : index
      %c0_117 = arith.constant 0 : index
      %c0_118 = arith.constant 0 : index
      %258 = vector.load %arg2[%c0_116, %c0_117, %c0_118] : memref<2x8x32xf32, #tpu.memory_space<vmem>>, vector<2x8x32xf32>
      %c0_119 = arith.constant 0 : index
      %c0_120 = arith.constant 0 : index
      %259 = vector.load %arg3[%c0_119, %c0_120] : memref<8x32xf32, #tpu.memory_space<vmem>>, vector<8x32xf32>
      %260 = vector.shape_cast %259 : vector<8x32xf32> to vector<1x8x32xf32>
      %261 = vector.broadcast %260 : vector<1x8x32xf32> to vector<2x8x32xf32>
      %262 = arith.addf %258, %261 : vector<2x8x32xf32>
      %263 = vector.shape_cast %262 : vector<2x8x32xf32> to vector<16x32xf32>
      %c0_121 = arith.constant 0 : index
      %c0_122 = arith.constant 0 : index
      %264 = vector.load %arg20[%c0_121, %c0_122] : memref<16x32xf32, #tpu.memory_space<vmem>>, vector<16x32xf32>
      tpu.vector_store %arg20[%c0_121, %c0_122], %263 {strides = array<i32>} : memref<16x32xf32, #tpu.memory_space<vmem>>, vector<16x32xf32>,
    } else {
    }
    %c0 = arith.constant 0 : index
    %c0_1 = arith.constant 0 : index
    %3 = vector.load %arg20[%c0, %c0_1] : memref<16x32xf32, #tpu.memory_space<vmem>>, vector<16x32xf32>
    %c0_2 = arith.constant 0 : index
    %c0_3 = arith.constant 0 : index
    %c0_4 = arith.constant 0 : index
    %4 = vector.load %arg4[%c0_2, %c0_3, %c0_4] : memref<2x1x8xf32, #tpu.memory_space<vmem>>, vector<2x1x8xf32>
    %5 = arith.truncf %3 : vector<16x32xf32> to vector<16x32xbf16>
    %c0_5 = arith.constant 0 : index
    %c0_6 = arith.constant 0 : index
    %c0_7 = arith.constant 0 : index
    %6 = vector.load %arg5[%c0_5, %c0_6, %c0_7] : memref<1x32x96xbf16, #tpu.memory_space<vmem>>, vector<1x32x96xbf16>
    %7 = vector.shape_cast %6 : vector<1x32x96xbf16> to vector<32x96xbf16>
    %cst = arith.constant dense<0.000000e+00> : vector<16x96xf32>
    %8 = tpu.matmul %5, %7, %cst {dimension_numbers = #tpu.dot_dimension_numbers<[1], [0], [0], [1], [0, 0, 1, 1], [], []>} : vector<16x32xbf16>, vector<32x96xbf16>, vector<16x96xf32> -> vector<16x96xf32>
    %c0_8 = arith.constant 0 : index
    %c0_9 = arith.constant 0 : index
    %c0_10 = arith.constant 0 : index
    %9 = vector.load %arg6[%c0_8, %c0_9, %c0_10] : memref<1x1x96xf32, #tpu.memory_space<vmem>>, vector<1x1x96xf32>
    %10 = vector.shape_cast %9 : vector<1x1x96xf32> to vector<1x96xf32>
    %11 = vector.broadcast %10 : vector<1x96xf32> to vector<16x96xf32>
    %12 = arith.addf %8, %11 : vector<16x96xf32>
    %13 = vector.extract_strided_slice %12 {offsets = [0, 0], sizes = [16, 32], strides = [1, 1]} : vector<16x96xf32> to vector<16x32xf32>
    %14 = vector.shape_cast %13 : vector<16x32xf32> to vector<2x8x32xf32>
    %15 = vector.extract_strided_slice %12 {offsets = [0, 32], sizes = [16, 32], strides = [1, 1]} : vector<16x96xf32> to vector<16x32xf32>
    %16 = vector.shape_cast %15 : vector<16x32xf32> to vector<2x8x32xf32>
    %17 = vector.extract_strided_slice %12 {offsets = [0, 64], sizes = [16, 32], strides = [1, 1]} : vector<16x96xf32> to vector<16x32xf32>
    %18 = vector.shape_cast %17 : vector<16x32xf32> to vector<2x8x32xf32>
    %c0_11 = arith.constant 0 : index
    %c0_12 = arith.constant 0 : index
    %c0_13 = arith.constant 0 : index
    %19 = vector.load %arg7[%c0_11, %c0_12, %c0_13] : memref<1x32x32xbf16, #tpu.memory_space<vmem>>, vector<1x32x32xbf16>
    %20 = vector.shape_cast %19 : vector<1x32x32xbf16> to vector<32x32xbf16>
    %cst_14 = arith.constant 0.000000e+00 : f32
    %21 = vector.broadcast %cst_14 : f32 to vector<16x32xf32>
    %22 = vector.extract_strided_slice %14 {offsets = [0, 0, 0], sizes = [2, 8, 8], strides = [1, 1, 1]} : vector<2x8x32xf32> to vector<2x8x8xf32>
    %23 = arith.truncf %22 : vector<2x8x8xf32> to vector<2x8x8xbf16>
    %24 = vector.extract_strided_slice %16 {offsets = [0, 0, 0], sizes = [2, 8, 8], strides = [1, 1, 1]} : vector<2x8x32xf32> to vector<2x8x8xf32>
    %25 = arith.truncf %24 : vector<2x8x8xf32> to vector<2x8x8xbf16>
    %26 = vector.extract_strided_slice %18 {offsets = [0, 0, 0], sizes = [2, 8, 8], strides = [1, 1, 1]} : vector<2x8x32xf32> to vector<2x8x8xf32>
    %27 = arith.truncf %26 : vector<2x8x8xf32> to vector<2x8x8xbf16>
    "tpu.trace_start"() <{level = 10 : i32, message = "bqd,bkd->bqk"}> : () -> ()
    %cst_15 = arith.constant dense<0.000000e+00> : vector<2x8x8xf32>
    %28 = tpu.matmul %23, %25, %cst_15 {dimension_numbers = #tpu.dot_dimension_numbers<[2], [2], [1], [1], [0, 0, 0, 1, 1, 1], [0], [0]>} : vector<2x8x8xbf16>, vector<2x8x8xbf16>, vector<2x8x8xf32> -> vector<2x8x8xf32>
    "tpu.trace_stop"() : () -> ()
    %cst_16 = arith.constant 0.353553385 : f32
    %29 = vector.broadcast %cst_16 : f32 to vector<2x8x8xf32>
    %30 = arith.mulf %28, %29 : vector<2x8x8xf32>
    %31 = vector.broadcast %4 : vector<2x1x8xf32> to vector<2x8x8xf32>
    %32 = arith.addf %30, %31 : vector<2x8x8xf32>
    %cst_17 = arith.constant dense<0xFF800000> : vector<2x8xf32>
    %33 = vector.multi_reduction <maximumf>, %32, %cst_17 [2] : vector<2x8x8xf32> to vector<2x8xf32>
    %34 = vector.shape_cast %33 : vector<2x8xf32> to vector<2x8x1xf32>
    %35 = vector.broadcast %34 : vector<2x8x1xf32> to vector<2x8x8xf32>
    %36 = arith.subf %32, %35 : vector<2x8x8xf32>
    %37 = math.exp %36 : vector<2x8x8xf32>
    %cst_18 = arith.constant dense<0.000000e+00> : vector<2x8xf32>
    %38 = vector.multi_reduction <add>, %37, %cst_18 [2] : vector<2x8x8xf32> to vector<2x8xf32>
    %39 = vector.shape_cast %38 : vector<2x8xf32> to vector<2x8x1xf32>
    %40 = tpu.reciprocal %39 {approx = true} : vector<2x8x1xf32> -> vector<2x8x1xf32>
    %41 = vector.broadcast %40 : vector<2x8x1xf32> to vector<2x8x8xf32>
    %42 = arith.mulf %37, %41 : vector<2x8x8xf32>
    %43 = arith.truncf %42 : vector<2x8x8xf32> to vector<2x8x8xbf16>
    "tpu.trace_start"() <{level = 10 : i32, message = "bqk,bkd->bqd"}> : () -> ()
    %cst_19 = arith.constant dense<0.000000e+00> : vector<2x8x8xf32>
    %44 = tpu.matmul %43, %27, %cst_19 {dimension_numbers = #tpu.dot_dimension_numbers<[2], [1], [1], [2], [0, 0, 0, 1, 1, 2], [0], [0]>} : vector<2x8x8xbf16>, vector<2x8x8xbf16>, vector<2x8x8xf32> -> vector<2x8x8xf32>
    "tpu.trace_stop"() : () -> ()
    %45 = vector.shape_cast %44 : vector<2x8x8xf32> to vector<16x8xf32>
    %46 = arith.truncf %45 : vector<16x8xf32> to vector<16x8xbf16>
    %47 = vector.extract_strided_slice %20 {offsets = [0, 0], sizes = [8, 32], strides = [1, 1]} : vector<32x32xbf16> to vector<8x32xbf16>
    %cst_20 = arith.constant dense<0.000000e+00> : vector<16x32xf32>
    %48 = tpu.matmul %46, %47, %cst_20 {dimension_numbers = #tpu.dot_dimension_numbers<[1], [0], [0], [1], [0, 0, 1, 1], [], []>} : vector<16x8xbf16>, vector<8x32xbf16>, vector<16x32xf32> -> vector<16x32xf32>
    %49 = arith.addf %21, %48 : vector<16x32xf32>
    %50 = vector.extract_strided_slice %14 {offsets = [0, 0, 8], sizes = [2, 8, 8], strides = [1, 1, 1]} : vector<2x8x32xf32> to vector<2x8x8xf32>
    %51 = arith.truncf %50 : vector<2x8x8xf32> to vector<2x8x8xbf16>
    %52 = vector.extract_strided_slice %16 {offsets = [0, 0, 8], sizes = [2, 8, 8], strides = [1, 1, 1]} : vector<2x8x32xf32> to vector<2x8x8xf32>
    %53 = arith.truncf %52 : vector<2x8x8xf32> to vector<2x8x8xbf16>
    %54 = vector.extract_strided_slice %18 {offsets = [0, 0, 8], sizes = [2, 8, 8], strides = [1, 1, 1]} : vector<2x8x32xf32> to vector<2x8x8xf32>
    %55 = arith.truncf %54 : vector<2x8x8xf32> to vector<2x8x8xbf16>
    "tpu.trace_start"() <{level = 10 : i32, message = "bqd,bkd->bqk"}> : () -> ()
    %cst_21 = arith.constant dense<0.000000e+00> : vector<2x8x8xf32>
    %56 = tpu.matmul %51, %53, %cst_21 {dimension_numbers = #tpu.dot_dimension_numbers<[2], [2], [1], [1], [0, 0, 0, 1, 1, 1], [0], [0]>} : vector<2x8x8xbf16>, vector<2x8x8xbf16>, vector<2x8x8xf32> -> vector<2x8x8xf32>
    "tpu.trace_stop"() : () -> ()
    %cst_22 = arith.constant 0.353553385 : f32
    %57 = vector.broadcast %cst_22 : f32 to vector<2x8x8xf32>
    %58 = arith.mulf %56, %57 : vector<2x8x8xf32>
    %59 = vector.broadcast %4 : vector<2x1x8xf32> to vector<2x8x8xf32>
    %60 = arith.addf %58, %59 : vector<2x8x8xf32>
    %cst_23 = arith.constant dense<0xFF800000> : vector<2x8xf32>
    %61 = vector.multi_reduction <maximumf>, %60, %cst_23 [2] : vector<2x8x8xf32> to vector<2x8xf32>
    %62 = vector.shape_cast %61 : vector<2x8xf32> to vector<2x8x1xf32>
    %63 = vector.broadcast %62 : vector<2x8x1xf32> to vector<2x8x8xf32>
    %64 = arith.subf %60, %63 : vector<2x8x8xf32>
    %65 = math.exp %64 : vector<2x8x8xf32>
    %cst_24 = arith.constant dense<0.000000e+00> : vector<2x8xf32>
    %66 = vector.multi_reduction <add>, %65, %cst_24 [2] : vector<2x8x8xf32> to vector<2x8xf32>
    %67 = vector.shape_cast %66 : vector<2x8xf32> to vector<2x8x1xf32>
    %68 = tpu.reciprocal %67 {approx = true} : vector<2x8x1xf32> -> vector<2x8x1xf32>
    %69 = vector.broadcast %68 : vector<2x8x1xf32> to vector<2x8x8xf32>
    %70 = arith.mulf %65, %69 : vector<2x8x8xf32>
    %71 = arith.truncf %70 : vector<2x8x8xf32> to vector<2x8x8xbf16>
    "tpu.trace_start"() <{level = 10 : i32, message = "bqk,bkd->bqd"}> : () -> ()
    %cst_25 = arith.constant dense<0.000000e+00> : vector<2x8x8xf32>
    %72 = tpu.matmul %71, %55, %cst_25 {dimension_numbers = #tpu.dot_dimension_numbers<[2], [1], [1], [2], [0, 0, 0, 1, 1, 2], [0], [0]>} : vector<2x8x8xbf16>, vector<2x8x8xbf16>, vector<2x8x8xf32> -> vector<2x8x8xf32>
    "tpu.trace_stop"() : () -> ()
    %73 = vector.shape_cast %72 : vector<2x8x8xf32> to vector<16x8xf32>
    %74 = arith.truncf %73 : vector<16x8xf32> to vector<16x8xbf16>
    %75 = vector.extract_strided_slice %20 {offsets = [8, 0], sizes = [8, 32], strides = [1, 1]} : vector<32x32xbf16> to vector<8x32xbf16>
    %cst_26 = arith.constant dense<0.000000e+00> : vector<16x32xf32>
    %76 = tpu.matmul %74, %75, %cst_26 {dimension_numbers = #tpu.dot_dimension_numbers<[1], [0], [0], [1], [0, 0, 1, 1], [], []>} : vector<16x8xbf16>, vector<8x32xbf16>, vector<16x32xf32> -> vector<16x32xf32>
    %77 = arith.addf %49, %76 : vector<16x32xf32>
    %78 = vector.extract_strided_slice %14 {offsets = [0, 0, 16], sizes = [2, 8, 8], strides = [1, 1, 1]} : vector<2x8x32xf32> to vector<2x8x8xf32>
    %79 = arith.truncf %78 : vector<2x8x8xf32> to vector<2x8x8xbf16>
    %80 = vector.extract_strided_slice %16 {offsets = [0, 0, 16], sizes = [2, 8, 8], strides = [1, 1, 1]} : vector<2x8x32xf32> to vector<2x8x8xf32>
    %81 = arith.truncf %80 : vector<2x8x8xf32> to vector<2x8x8xbf16>
    %82 = vector.extract_strided_slice %18 {offsets = [0, 0, 16], sizes = [2, 8, 8], strides = [1, 1, 1]} : vector<2x8x32xf32> to vector<2x8x8xf32>
    %83 = arith.truncf %82 : vector<2x8x8xf32> to vector<2x8x8xbf16>
    "tpu.trace_start"() <{level = 10 : i32, message = "bqd,bkd->bqk"}> : () -> ()
    %cst_27 = arith.constant dense<0.000000e+00> : vector<2x8x8xf32>
    %84 = tpu.matmul %79, %81, %cst_27 {dimension_numbers = #tpu.dot_dimension_numbers<[2], [2], [1], [1], [0, 0, 0, 1, 1, 1], [0], [0]>} : vector<2x8x8xbf16>, vector<2x8x8xbf16>, vector<2x8x8xf32> -> vector<2x8x8xf32>
    "tpu.trace_stop"() : () -> ()
    %cst_28 = arith.constant 0.353553385 : f32
    %85 = vector.broadcast %cst_28 : f32 to vector<2x8x8xf32>
    %86 = arith.mulf %84, %85 : vector<2x8x8xf32>
    %87 = vector.broadcast %4 : vector<2x1x8xf32> to vector<2x8x8xf32>
    %88 = arith.addf %86, %87 : vector<2x8x8xf32>
    %cst_29 = arith.constant dense<0xFF800000> : vector<2x8xf32>
    %89 = vector.multi_reduction <maximumf>, %88, %cst_29 [2] : vector<2x8x8xf32> to vector<2x8xf32>
    %90 = vector.shape_cast %89 : vector<2x8xf32> to vector<2x8x1xf32>
    %91 = vector.broadcast %90 : vector<2x8x1xf32> to vector<2x8x8xf32>
    %92 = arith.subf %88, %91 : vector<2x8x8xf32>
    %93 = math.exp %92 : vector<2x8x8xf32>
    %cst_30 = arith.constant dense<0.000000e+00> : vector<2x8xf32>
    %94 = vector.multi_reduction <add>, %93, %cst_30 [2] : vector<2x8x8xf32> to vector<2x8xf32>
    %95 = vector.shape_cast %94 : vector<2x8xf32> to vector<2x8x1xf32>
    %96 = tpu.reciprocal %95 {approx = true} : vector<2x8x1xf32> -> vector<2x8x1xf32>
    %97 = vector.broadcast %96 : vector<2x8x1xf32> to vector<2x8x8xf32>
    %98 = arith.mulf %93, %97 : vector<2x8x8xf32>
    %99 = arith.truncf %98 : vector<2x8x8xf32> to vector<2x8x8xbf16>
    "tpu.trace_start"() <{level = 10 : i32, message = "bqk,bkd->bqd"}> : () -> ()
    %cst_31 = arith.constant dense<0.000000e+00> : vector<2x8x8xf32>
    %100 = tpu.matmul %99, %83, %cst_31 {dimension_numbers = #tpu.dot_dimension_numbers<[2], [1], [1], [2], [0, 0, 0, 1, 1, 2], [0], [0]>} : vector<2x8x8xbf16>, vector<2x8x8xbf16>, vector<2x8x8xf32> -> vector<2x8x8xf32>
    "tpu.trace_stop"() : () -> ()
    %101 = vector.shape_cast %100 : vector<2x8x8xf32> to vector<16x8xf32>
    %102 = arith.truncf %101 : vector<16x8xf32> to vector<16x8xbf16>
    %103 = vector.extract_strided_slice %20 {offsets = [16, 0], sizes = [8, 32], strides = [1, 1]} : vector<32x32xbf16> to vector<8x32xbf16>
    %cst_32 = arith.constant dense<0.000000e+00> : vector<16x32xf32>
    %104 = tpu.matmul %102, %103, %cst_32 {dimension_numbers = #tpu.dot_dimension_numbers<[1], [0], [0], [1], [0, 0, 1, 1], [], []>} : vector<16x8xbf16>, vector<8x32xbf16>, vector<16x32xf32> -> vector<16x32xf32>
    %105 = arith.addf %77, %104 : vector<16x32xf32>
    %106 = vector.extract_strided_slice %14 {offsets = [0, 0, 24], sizes = [2, 8, 8], strides = [1, 1, 1]} : vector<2x8x32xf32> to vector<2x8x8xf32>
    %107 = arith.truncf %106 : vector<2x8x8xf32> to vector<2x8x8xbf16>
    %108 = vector.extract_strided_slice %16 {offsets = [0, 0, 24], sizes = [2, 8, 8], strides = [1, 1, 1]} : vector<2x8x32xf32> to vector<2x8x8xf32>
    %109 = arith.truncf %108 : vector<2x8x8xf32> to vector<2x8x8xbf16>
    %110 = vector.extract_strided_slice %18 {offsets = [0, 0, 24], sizes = [2, 8, 8], strides = [1, 1, 1]} : vector<2x8x32xf32> to vector<2x8x8xf32>
    %111 = arith.truncf %110 : vector<2x8x8xf32> to vector<2x8x8xbf16>
    "tpu.trace_start"() <{level = 10 : i32, message = "bqd,bkd->bqk"}> : () -> ()
    %cst_33 = arith.constant dense<0.000000e+00> : vector<2x8x8xf32>
    %112 = tpu.matmul %107, %109, %cst_33 {dimension_numbers = #tpu.dot_dimension_numbers<[2], [2], [1], [1], [0, 0, 0, 1, 1, 1], [0], [0]>} : vector<2x8x8xbf16>, vector<2x8x8xbf16>, vector<2x8x8xf32> -> vector<2x8x8xf32>
    "tpu.trace_stop"() : () -> ()
    %cst_34 = arith.constant 0.353553385 : f32
    %113 = vector.broadcast %cst_34 : f32 to vector<2x8x8xf32>
    %114 = arith.mulf %112, %113 : vector<2x8x8xf32>
    %115 = vector.broadcast %4 : vector<2x1x8xf32> to vector<2x8x8xf32>
    %116 = arith.addf %114, %115 : vector<2x8x8xf32>
    %cst_35 = arith.constant dense<0xFF800000> : vector<2x8xf32>
    %117 = vector.multi_reduction <maximumf>, %116, %cst_35 [2] : vector<2x8x8xf32> to vector<2x8xf32>
    %118 = vector.shape_cast %117 : vector<2x8xf32> to vector<2x8x1xf32>
    %119 = vector.broadcast %118 : vector<2x8x1xf32> to vector<2x8x8xf32>
    %120 = arith.subf %116, %119 : vector<2x8x8xf32>
    %121 = math.exp %120 : vector<2x8x8xf32>
    %cst_36 = arith.constant dense<0.000000e+00> : vector<2x8xf32>
    %122 = vector.multi_reduction <add>, %121, %cst_36 [2] : vector<2x8x8xf32> to vector<2x8xf32>
    %123 = vector.shape_cast %122 : vector<2x8xf32> to vector<2x8x1xf32>
    %124 = tpu.reciprocal %123 {approx = true} : vector<2x8x1xf32> -> vector<2x8x1xf32>
    %125 = vector.broadcast %124 : vector<2x8x1xf32> to vector<2x8x8xf32>
    %126 = arith.mulf %121, %125 : vector<2x8x8xf32>
    %127 = arith.truncf %126 : vector<2x8x8xf32> to vector<2x8x8xbf16>
    "tpu.trace_start"() <{level = 10 : i32, message = "bqk,bkd->bqd"}> : () -> ()
    %cst_37 = arith.constant dense<0.000000e+00> : vector<2x8x8xf32>
    %128 = tpu.matmul %127, %111, %cst_37 {dimension_numbers = #tpu.dot_dimension_numbers<[2], [1], [1], [2], [0, 0, 0, 1, 1, 2], [0], [0]>} : vector<2x8x8xbf16>, vector<2x8x8xbf16>, vector<2x8x8xf32> -> vector<2x8x8xf32>
    "tpu.trace_stop"() : () -> ()
    %129 = vector.shape_cast %128 : vector<2x8x8xf32> to vector<16x8xf32>
    %130 = arith.truncf %129 : vector<16x8xf32> to vector<16x8xbf16>
    %131 = vector.extract_strided_slice %20 {offsets = [24, 0], sizes = [8, 32], strides = [1, 1]} : vector<32x32xbf16> to vector<8x32xbf16>
    %cst_38 = arith.constant dense<0.000000e+00> : vector<16x32xf32>
    %132 = tpu.matmul %130, %131, %cst_38 {dimension_numbers = #tpu.dot_dimension_numbers<[1], [0], [0], [1], [0, 0, 1, 1], [], []>} : vector<16x8xbf16>, vector<8x32xbf16>, vector<16x32xf32> -> vector<16x32xf32>
    %133 = arith.addf %105, %132 : vector<16x32xf32>
    %c0_39 = arith.constant 0 : index
    %c0_40 = arith.constant 0 : index
    %c0_41 = arith.constant 0 : index
    %134 = vector.load %arg8[%c0_39, %c0_40, %c0_41] : memref<1x1x32xf32, #tpu.memory_space<vmem>>, vector<1x1x32xf32>
    %135 = vector.shape_cast %134 : vector<1x1x32xf32> to vector<1x32xf32>
    %136 = vector.broadcast %135 : vector<1x32xf32> to vector<16x32xf32>
    %137 = arith.addf %133, %136 : vector<16x32xf32>
    %138 = arith.addf %3, %137 : vector<16x32xf32>
    %c0_42 = arith.constant 0 : index
    %c0_43 = arith.constant 0 : index
    %c0_44 = arith.constant 0 : index
    %139 = vector.load %arg9[%c0_42, %c0_43, %c0_44] : memref<1x1x32xf32, #tpu.memory_space<vmem>>, vector<1x1x32xf32>
    %140 = vector.shape_cast %139 : vector<1x1x32xf32> to vector<1x32xf32>
    %c0_45 = arith.constant 0 : index
    %c0_46 = arith.constant 0 : index
    %c0_47 = arith.constant 0 : index
    %141 = vector.load %arg10[%c0_45, %c0_46, %c0_47] : memref<1x1x32xf32, #tpu.memory_space<vmem>>, vector<1x1x32xf32>
    %142 = vector.shape_cast %141 : vector<1x1x32xf32> to vector<1x32xf32>
    %cst_48 = arith.constant dense<0.000000e+00> : vector<16xf32>
    %143 = vector.multi_reduction <add>, %138, %cst_48 [1] : vector<16x32xf32> to vector<16xf32>
    %144 = vector.shape_cast %143 : vector<16xf32> to vector<16x1xf32>
    %cst_49 = arith.constant 3.200000e+01 : f32
    %145 = vector.broadcast %cst_49 : f32 to vector<16x1xf32>
    %146 = arith.divf %144, %145 : vector<16x1xf32>
    %147 = vector.broadcast %146 : vector<16x1xf32> to vector<16x32xf32>
    %148 = arith.subf %138, %147 : vector<16x32xf32>
    %149 = arith.mulf %148, %148 : vector<16x32xf32>
    %cst_50 = arith.constant dense<0.000000e+00> : vector<16xf32>
    %150 = vector.multi_reduction <add>, %149, %cst_50 [1] : vector<16x32xf32> to vector<16xf32>
    %151 = vector.shape_cast %150 : vector<16xf32> to vector<16x1xf32>
    %cst_51 = arith.constant 3.200000e+01 : f32
    %152 = vector.broadcast %cst_51 : f32 to vector<16x1xf32>
    %153 = arith.divf %151, %152 : vector<16x1xf32>
    %154 = vector.broadcast %146 : vector<16x1xf32> to vector<16x32xf32>
    %155 = arith.subf %138, %154 : vector<16x32xf32>
    %cst_52 = arith.constant 9.99999974E-6 : f32
    %156 = vector.broadcast %cst_52 : f32 to vector<16x1xf32>
    %157 = arith.addf %153, %156 : vector<16x1xf32>
    %158 = math.rsqrt %157 : vector<16x1xf32>
    %159 = vector.broadcast %158 : vector<16x1xf32> to vector<16x32xf32>
    %160 = arith.mulf %155, %159 : vector<16x32xf32>
    %161 = vector.broadcast %140 : vector<1x32xf32> to vector<16x32xf32>
    %162 = arith.mulf %160, %161 : vector<16x32xf32>
    %163 = vector.broadcast %142 : vector<1x32xf32> to vector<16x32xf32>
    %164 = arith.addf %162, %163 : vector<16x32xf32>
    %165 = arith.truncf %164 : vector<16x32xf32> to vector<16x32xbf16>
    %cst_53 = arith.constant 0.000000e+00 : f32
    %166 = vector.broadcast %cst_53 : f32 to vector<16x32xf32>
    %c0_54 = arith.constant 0 : index
    %c0_55 = arith.constant 0 : index
    %c0_56 = arith.constant 0 : index
    %167 = vector.load %arg13[%c0_54, %c0_55, %c0_56] : memref<1x32x2048xbf16, #tpu.memory_space<vmem>>, vector<1x32x512xbf16>
    %168 = vector.shape_cast %167 : vector<1x32x512xbf16> to vector<32x512xbf16>
    %cst_57 = arith.constant dense<0.000000e+00> : vector<16x512xf32>
    %169 = tpu.matmul %165, %168, %cst_57 {dimension_numbers = #tpu.dot_dimension_numbers<[1], [0], [0], [1], [0, 0, 1, 1], [], []>} : vector<16x32xbf16>, vector<32x512xbf16>, vector<16x512xf32> -> vector<16x512xf32>
    %c0_58 = arith.constant 0 : index
    %c0_59 = arith.constant 0 : index
    %c0_60 = arith.constant 0 : index
    %170 = vector.load %arg14[%c0_58, %c0_59, %c0_60] : memref<1x1x2048xf32, #tpu.memory_space<vmem>>, vector<1x1x512xf32>
    %171 = vector.shape_cast %170 : vector<1x1x512xf32> to vector<1x512xf32>
    %172 = vector.broadcast %171 : vector<1x512xf32> to vector<16x512xf32>
    %173 = arith.addf %169, %172 : vector<16x512xf32>
    %cst_61 = arith.constant 0.000000e+00 : f32
    %174 = vector.broadcast %cst_61 : f32 to vector<16x512xf32>
    %175 = arith.maximumf %173, %174 : vector<16x512xf32>
    %176 = arith.truncf %175 : vector<16x512xf32> to vector<16x512xbf16>
    %c0_62 = arith.constant 0 : index
    %c0_63 = arith.constant 0 : index
    %c0_64 = arith.constant 0 : index
    %177 = vector.load %arg15[%c0_62, %c0_63, %c0_64] : memref<1x2048x32xbf16, #tpu.memory_space<vmem>>, vector<1x512x32xbf16>
    %178 = vector.shape_cast %177 : vector<1x512x32xbf16> to vector<512x32xbf16>
    %cst_65 = arith.constant dense<0.000000e+00> : vector<16x32xf32>
    %179 = tpu.matmul %176, %178, %cst_65 {dimension_numbers = #tpu.dot_dimension_numbers<[1], [0], [0], [1], [0, 0, 1, 1], [], []>} : vector<16x512xbf16>, vector<512x32xbf16>, vector<16x32xf32> -> vector<16x32xf32>
    %180 = arith.addf %166, %179 : vector<16x32xf32>
    %c0_66 = arith.constant 0 : index
    %c0_67 = arith.constant 0 : index
    %c512 = arith.constant 512 : index
    %181 = vector.load %arg13[%c0_66, %c0_67, %c512] : memref<1x32x2048xbf16, #tpu.memory_space<vmem>>, vector<1x32x512xbf16>
    %182 = vector.shape_cast %181 : vector<1x32x512xbf16> to vector<32x512xbf16>
    %cst_68 = arith.constant dense<0.000000e+00> : vector<16x512xf32>
    %183 = tpu.matmul %165, %182, %cst_68 {dimension_numbers = #tpu.dot_dimension_numbers<[1], [0], [0], [1], [0, 0, 1, 1], [], []>} : vector<16x32xbf16>, vector<32x512xbf16>, vector<16x512xf32> -> vector<16x512xf32>
    %c0_69 = arith.constant 0 : index
    %c0_70 = arith.constant 0 : index
    %c512_71 = arith.constant 512 : index
    %184 = vector.load %arg14[%c0_69, %c0_70, %c512_71] : memref<1x1x2048xf32, #tpu.memory_space<vmem>>, vector<1x1x512xf32>
    %185 = vector.shape_cast %184 : vector<1x1x512xf32> to vector<1x512xf32>
    %186 = vector.broadcast %185 : vector<1x512xf32> to vector<16x512xf32>
    %187 = arith.addf %183, %186 : vector<16x512xf32>
    %cst_72 = arith.constant 0.000000e+00 : f32
    %188 = vector.broadcast %cst_72 : f32 to vector<16x512xf32>
    %189 = arith.maximumf %187, %188 : vector<16x512xf32>
    %190 = arith.truncf %189 : vector<16x512xf32> to vector<16x512xbf16>
    %c0_73 = arith.constant 0 : index
    %c512_74 = arith.constant 512 : index
    %c0_75 = arith.constant 0 : index
    %191 = vector.load %arg15[%c0_73, %c512_74, %c0_75] : memref<1x2048x32xbf16, #tpu.memory_space<vmem>>, vector<1x512x32xbf16>
    %192 = vector.shape_cast %191 : vector<1x512x32xbf16> to vector<512x32xbf16>
    %cst_76 = arith.constant dense<0.000000e+00> : vector<16x32xf32>
    %193 = tpu.matmul %190, %192, %cst_76 {dimension_numbers = #tpu.dot_dimension_numbers<[1], [0], [0], [1], [0, 0, 1, 1], [], []>} : vector<16x512xbf16>, vector<512x32xbf16>, vector<16x32xf32> -> vector<16x32xf32>
    %194 = arith.addf %180, %193 : vector<16x32xf32>
    %c0_77 = arith.constant 0 : index
    %c0_78 = arith.constant 0 : index
    %c1024 = arith.constant 1024 : index
    %195 = vector.load %arg13[%c0_77, %c0_78, %c1024] : memref<1x32x2048xbf16, #tpu.memory_space<vmem>>, vector<1x32x512xbf16>
    %196 = vector.shape_cast %195 : vector<1x32x512xbf16> to vector<32x512xbf16>
    %cst_79 = arith.constant dense<0.000000e+00> : vector<16x512xf32>
    %197 = tpu.matmul %165, %196, %cst_79 {dimension_numbers = #tpu.dot_dimension_numbers<[1], [0], [0], [1], [0, 0, 1, 1], [], []>} : vector<16x32xbf16>, vector<32x512xbf16>, vector<16x512xf32> -> vector<16x512xf32>
    %c0_80 = arith.constant 0 : index
    %c0_81 = arith.constant 0 : index
    %c1024_82 = arith.constant 1024 : index
    %198 = vector.load %arg14[%c0_80, %c0_81, %c1024_82] : memref<1x1x2048xf32, #tpu.memory_space<vmem>>, vector<1x1x512xf32>
    %199 = vector.shape_cast %198 : vector<1x1x512xf32> to vector<1x512xf32>
    %200 = vector.broadcast %199 : vector<1x512xf32> to vector<16x512xf32>
    %201 = arith.addf %197, %200 : vector<16x512xf32>
    %cst_83 = arith.constant 0.000000e+00 : f32
    %202 = vector.broadcast %cst_83 : f32 to vector<16x512xf32>
    %203 = arith.maximumf %201, %202 : vector<16x512xf32>
    %204 = arith.truncf %203 : vector<16x512xf32> to vector<16x512xbf16>
    %c0_84 = arith.constant 0 : index
    %c1024_85 = arith.constant 1024 : index
    %c0_86 = arith.constant 0 : index
    %205 = vector.load %arg15[%c0_84, %c1024_85, %c0_86] : memref<1x2048x32xbf16, #tpu.memory_space<vmem>>, vector<1x512x32xbf16>
    %206 = vector.shape_cast %205 : vector<1x512x32xbf16> to vector<512x32xbf16>
    %cst_87 = arith.constant dense<0.000000e+00> : vector<16x32xf32>
    %207 = tpu.matmul %204, %206, %cst_87 {dimension_numbers = #tpu.dot_dimension_numbers<[1], [0], [0], [1], [0, 0, 1, 1], [], []>} : vector<16x512xbf16>, vector<512x32xbf16>, vector<16x32xf32> -> vector<16x32xf32>
    %208 = arith.addf %194, %207 : vector<16x32xf32>
    %c0_88 = arith.constant 0 : index
    %c0_89 = arith.constant 0 : index
    %c1536 = arith.constant 1536 : index
    %209 = vector.load %arg13[%c0_88, %c0_89, %c1536] : memref<1x32x2048xbf16, #tpu.memory_space<vmem>>, vector<1x32x512xbf16>
    %210 = vector.shape_cast %209 : vector<1x32x512xbf16> to vector<32x512xbf16>
    %cst_90 = arith.constant dense<0.000000e+00> : vector<16x512xf32>
    %211 = tpu.matmul %165, %210, %cst_90 {dimension_numbers = #tpu.dot_dimension_numbers<[1], [0], [0], [1], [0, 0, 1, 1], [], []>} : vector<16x32xbf16>, vector<32x512xbf16>, vector<16x512xf32> -> vector<16x512xf32>
    %c0_91 = arith.constant 0 : index
    %c0_92 = arith.constant 0 : index
    %c1536_93 = arith.constant 1536 : index
    %212 = vector.load %arg14[%c0_91, %c0_92, %c1536_93] : memref<1x1x2048xf32, #tpu.memory_space<vmem>>, vector<1x1x512xf32>
    %213 = vector.shape_cast %212 : vector<1x1x512xf32> to vector<1x512xf32>
    %214 = vector.broadcast %213 : vector<1x512xf32> to vector<16x512xf32>
    %215 = arith.addf %211, %214 : vector<16x512xf32>
    %cst_94 = arith.constant 0.000000e+00 : f32
    %216 = vector.broadcast %cst_94 : f32 to vector<16x512xf32>
    %217 = arith.maximumf %215, %216 : vector<16x512xf32>
    %218 = arith.truncf %217 : vector<16x512xf32> to vector<16x512xbf16>
    %c0_95 = arith.constant 0 : index
    %c1536_96 = arith.constant 1536 : index
    %c0_97 = arith.constant 0 : index
    %219 = vector.load %arg15[%c0_95, %c1536_96, %c0_97] : memref<1x2048x32xbf16, #tpu.memory_space<vmem>>, vector<1x512x32xbf16>
    %220 = vector.shape_cast %219 : vector<1x512x32xbf16> to vector<512x32xbf16>
    %cst_98 = arith.constant dense<0.000000e+00> : vector<16x32xf32>
    %221 = tpu.matmul %218, %220, %cst_98 {dimension_numbers = #tpu.dot_dimension_numbers<[1], [0], [0], [1], [0, 0, 1, 1], [], []>} : vector<16x512xbf16>, vector<512x32xbf16>, vector<16x32xf32> -> vector<16x32xf32>
    %222 = arith.addf %208, %221 : vector<16x32xf32>
    %c0_99 = arith.constant 0 : index
    %c0_100 = arith.constant 0 : index
    %c0_101 = arith.constant 0 : index
    %223 = vector.load %arg16[%c0_99, %c0_100, %c0_101] : memref<1x1x32xf32, #tpu.memory_space<vmem>>, vector<1x1x32xf32>
    %224 = vector.shape_cast %223 : vector<1x1x32xf32> to vector<1x32xf32>
    %225 = vector.broadcast %224 : vector<1x32xf32> to vector<16x32xf32>
    %226 = arith.addf %222, %225 : vector<16x32xf32>
    %227 = arith.addf %164, %226 : vector<16x32xf32>
    %c0_102 = arith.constant 0 : index
    %c0_103 = arith.constant 0 : index
    %c0_104 = arith.constant 0 : index
    %228 = vector.load %arg11[%c0_102, %c0_103, %c0_104] : memref<1x1x32xf32, #tpu.memory_space<vmem>>, vector<1x1x32xf32>
    %229 = vector.shape_cast %228 : vector<1x1x32xf32> to vector<1x32xf32>
    %c0_105 = arith.constant 0 : index
    %c0_106 = arith.constant 0 : index
    %c0_107 = arith.constant 0 : index
    %230 = vector.load %arg12[%c0_105, %c0_106, %c0_107] : memref<1x1x32xf32, #tpu.memory_space<vmem>>, vector<1x1x32xf32>
    %231 = vector.shape_cast %230 : vector<1x1x32xf32> to vector<1x32xf32>
    %cst_108 = arith.constant dense<0.000000e+00> : vector<16xf32>
    %232 = vector.multi_reduction <add>, %227, %cst_108 [1] : vector<16x32xf32> to vector<16xf32>
    %233 = vector.shape_cast %232 : vector<16xf32> to vector<16x1xf32>
    %cst_109 = arith.constant 3.200000e+01 : f32
    %234 = vector.broadcast %cst_109 : f32 to vector<16x1xf32>
    %235 = arith.divf %233, %234 : vector<16x1xf32>
    %236 = vector.broadcast %235 : vector<16x1xf32> to vector<16x32xf32>
    %237 = arith.subf %227, %236 : vector<16x32xf32>
    %238 = arith.mulf %237, %237 : vector<16x32xf32>
    %cst_110 = arith.constant dense<0.000000e+00> : vector<16xf32>
    %239 = vector.multi_reduction <add>, %238, %cst_110 [1] : vector<16x32xf32> to vector<16xf32>
    %240 = vector.shape_cast %239 : vector<16xf32> to vector<16x1xf32>
    %cst_111 = arith.constant 3.200000e+01 : f32
    %241 = vector.broadcast %cst_111 : f32 to vector<16x1xf32>
    %242 = arith.divf %240, %241 : vector<16x1xf32>
    %243 = vector.broadcast %235 : vector<16x1xf32> to vector<16x32xf32>
    %244 = arith.subf %227, %243 : vector<16x32xf32>
    %cst_112 = arith.constant 9.99999974E-6 : f32
    %245 = vector.broadcast %cst_112 : f32 to vector<16x1xf32>
    %246 = arith.addf %242, %245 : vector<16x1xf32>
    %247 = math.rsqrt %246 : vector<16x1xf32>
    %248 = vector.broadcast %247 : vector<16x1xf32> to vector<16x32xf32>
    %249 = arith.mulf %244, %248 : vector<16x32xf32>
    %250 = vector.broadcast %229 : vector<1x32xf32> to vector<16x32xf32>
    %251 = arith.mulf %249, %250 : vector<16x32xf32>
    %252 = vector.broadcast %231 : vector<1x32xf32> to vector<16x32xf32>
    %253 = arith.addf %251, %252 : vector<16x32xf32>
    %c0_113 = arith.constant 0 : index
    %c0_114 = arith.constant 0 : index
    %254 = vector.load %arg20[%c0_113, %c0_114] : memref<16x32xf32, #tpu.memory_space<vmem>>, vector<16x32xf32>
    tpu.vector_store %arg20[%c0_113, %c0_114], %253 {strides = array<i32>} : memref<16x32xf32, #tpu.memory_space<vmem>>, vector<16x32xf32>,
    %c1_i32 = arith.constant 1 : i32
    %255 = arith.cmpi eq, %arg1, %c1_i32 : i32
    %256 = arith.extui %255 : i1 to i32
    %c0_i32_115 = arith.constant 0 : i32
    %257 = arith.cmpi ne, %256, %c0_i32_115 : i32
    scf.if %257 {
      %258 = arith.truncf %253 : vector<16x32xf32> to vector<16x32xbf16>
      %c0_116 = arith.constant 0 : index
      %c0_117 = arith.constant 0 : index
      %259 = vector.load %arg17[%c0_116, %c0_117] : memref<32x128xbf16, #tpu.memory_space<vmem>>, vector<32x128xbf16>
      %cst_118 = arith.constant dense<0.000000e+00> : vector<16x128xf32>
      %260 = tpu.matmul %258, %259, %cst_118 {dimension_numbers = #tpu.dot_dimension_numbers<[1], [0], [0], [1], [0, 0, 1, 1], [], []>} : vector<16x32xbf16>, vector<32x128xbf16>, vector<16x128xf32> -> vector<16x128xf32>
      %c0_119 = arith.constant 0 : index
      %c0_120 = arith.constant 0 : index
      %261 = vector.load %arg18[%c0_119, %c0_120] : memref<1x128xf32, #tpu.memory_space<vmem>>, vector<1x128xf32>
      %262 = vector.broadcast %261 : vector<1x128xf32> to vector<16x128xf32>
      %263 = arith.addf %260, %262 : vector<16x128xf32>
      %264 = vector.shape_cast %263 : vector<16x128xf32> to vector<2x8x128xf32>
      %c0_121 = arith.constant 0 : index
      %c0_122 = arith.constant 0 : index
      %c0_123 = arith.constant 0 : index
      %265 = vector.load %arg19[%c0_121, %c0_122, %c0_123] : memref<2x8x128xf32, #tpu.memory_space<vmem>>, vector<2x8x128xf32>
      tpu.vector_store %arg19[%c0_121, %c0_122, %c0_123], %264 {strides = array<i32>} : memref<2x8x128xf32, #tpu.memory_space<vmem>>, vector<2x8x128xf32>,
    } else {
    }
    return
  }
  func.func @transform_0(%arg0: i32, %arg1: i32) -> (i32, i32, i32) {
    %c0_i32 = arith.constant 0 : i32
    %c0_i32_0 = arith.constant 0 : i32
    %c0_i32_1 = arith.constant 0 : i32
    return %arg0, %c0_i32, %c0_i32_0 : i32, i32, i32
  }
  func.func @transform_1(%arg0: i32, %arg1: i32) -> (i32, i32) {
    %c0_i32 = arith.constant 0 : i32
    %c0_i32_0 = arith.constant 0 : i32
    %c0_i32_1 = arith.constant 0 : i32
    return %c0_i32, %c0_i32_0 : i32, i32
  }
  func.func @transform_2(%arg0: i32, %arg1: i32) -> (i32, i32, i32) {
    %c0_i32 = arith.constant 0 : i32
    %c0_i32_0 = arith.constant 0 : i32
    %c0_i32_1 = arith.constant 0 : i32
    return %arg0, %c0_i32, %c0_i32_0 : i32, i32, i32
  }
  func.func @transform_3(%arg0: i32, %arg1: i32) -> (i32, i32, i32) {
    %c0_i32 = arith.constant 0 : i32
    %c0_i32_0 = arith.constant 0 : i32
    %c0_i32_1 = arith.constant 0 : i32
    return %arg1, %c0_i32, %c0_i32_0 : i32, i32, i32
  }
  func.func @transform_4(%arg0: i32, %arg1: i32) -> (i32, i32, i32) {
    %c0_i32 = arith.constant 0 : i32
    %c0_i32_0 = arith.constant 0 : i32
    %c0_i32_1 = arith.constant 0 : i32
    return %arg1, %c0_i32, %c0_i32_0 : i32, i32, i32
  }
  func.func @transform_5(%arg0: i32, %arg1: i32) -> (i32, i32, i32) {
    %c0_i32 = arith.constant 0 : i32
    %c0_i32_0 = arith.constant 0 : i32
    %c0_i32_1 = arith.constant 0 : i32
    return %arg1, %c0_i32, %c0_i32_0 : i32, i32, i32
  }
  func.func @transform_6(%arg0: i32, %arg1: i32) -> (i32, i32, i32) {
    %c0_i32 = arith.constant 0 : i32
    %c0_i32_0 = arith.constant 0 : i32
    %c0_i32_1 = arith.constant 0 : i32
    return %arg1, %c0_i32, %c0_i32_0 : i32, i32, i32
  }
  func.func @transform_7(%arg0: i32, %arg1: i32) -> (i32, i32, i32) {
    %c0_i32 = arith.constant 0 : i32
    %c0_i32_0 = arith.constant 0 : i32
    %c0_i32_1 = arith.constant 0 : i32
    return %arg1, %c0_i32, %c0_i32_0 : i32, i32, i32
  }
  func.func @transform_8(%arg0: i32, %arg1: i32) -> (i32, i32, i32) {
    %c0_i32 = arith.constant 0 : i32
    %c0_i32_0 = arith.constant 0 : i32
    %c0_i32_1 = arith.constant 0 : i32
    return %arg1, %c0_i32, %c0_i32_0 : i32, i32, i32
  }
  func.func @transform_9(%arg0: i32, %arg1: i32) -> (i32, i32, i32) {
    %c0_i32 = arith.constant 0 : i32
    %c0_i32_0 = arith.constant 0 : i32
    %c0_i32_1 = arith.constant 0 : i32
    return %arg1, %c0_i32, %c0_i32_0 : i32, i32, i32
  }
  func.func @transform_10(%arg0: i32, %arg1: i32) -> (i32, i32, i32) {
    %c0_i32 = arith.constant 0 : i32
    %c0_i32_0 = arith.constant 0 : i32
    %c0_i32_1 = arith.constant 0 : i32
    return %arg1, %c0_i32, %c0_i32_0 : i32, i32, i32
  }
  func.func @transform_11(%arg0: i32, %arg1: i32) -> (i32, i32, i32) {
    %c0_i32 = arith.constant 0 : i32
    %c0_i32_0 = arith.constant 0 : i32
    %c0_i32_1 = arith.constant 0 : i32
    return %arg1, %c0_i32, %c0_i32_0 : i32, i32, i32
  }
  func.func @transform_12(%arg0: i32, %arg1: i32) -> (i32, i32, i32) {
    %c0_i32 = arith.constant 0 : i32
    %c0_i32_0 = arith.constant 0 : i32
    %c0_i32_1 = arith.constant 0 : i32
    return %arg1, %c0_i32, %c0_i32_0 : i32, i32, i32
  }
  func.func @transform_13(%arg0: i32, %arg1: i32) -> (i32, i32, i32) {
    %c0_i32 = arith.constant 0 : i32
    %c0_i32_0 = arith.constant 0 : i32
    %c0_i32_1 = arith.constant 0 : i32
    return %arg1, %c0_i32, %c0_i32_0 : i32, i32, i32
  }
  func.func @transform_14(%arg0: i32, %arg1: i32) -> (i32, i32, i32) {
    %c0_i32 = arith.constant 0 : i32
    %c0_i32_0 = arith.constant 0 : i32
    %c0_i32_1 = arith.constant 0 : i32
    return %arg1, %c0_i32, %c0_i32_0 : i32, i32, i32
  }
  func.func @transform_15(%arg0: i32, %arg1: i32) -> (i32, i32) {
    %c0_i32 = arith.constant 0 : i32
    %c0_i32_0 = arith.constant 0 : i32
    %c0_i32_1 = arith.constant 0 : i32
    return %c0_i32, %c0_i32_0 : i32, i32
  }
  func.func @transform_16(%arg0: i32, %arg1: i32) -> (i32, i32) {
    %c0_i32 = arith.constant 0 : i32
    %c0_i32_0 = arith.constant 0 : i32
    %c0_i32_1 = arith.constant 0 : i32
    return %c0_i32, %c0_i32_0 : i32, i32
  }
  func.func @transform_17(%arg0: i32, %arg1: i32) -> (i32, i32, i32) {
    %c0_i32 = arith.constant 0 : i32
    %c0_i32_0 = arith.constant 0 : i32
    %c0_i32_1 = arith.constant 0 : i32
    return %arg0, %c0_i32, %c0_i32_0 : i32, i32, i32
  }
}

</mosaic_0001>

<llo_original>
// kernel: tpu_custom_call.1
$region0: #{tpu_custom_call.1}
  #allocation0 [shape = 'u32[]', space=smem, size = 0x4, offset = 0x4, fixed_abs, tag = 'smem constant byte address 0x4 - core index']
  #allocation1 [shape = 'u32[144,128]{1,0:T(1,128)}', space=vmem, size = 0x12000, scoped, tag = 'internal scratch']
  #allocation2 [shape = 'f32[16,32]{1,0:T(8,128)}', space=vmem, size = 0x2000, scoped, tag = 'scratch operand']
  %s0 = inlined_call_operand.vmem [shape: f32[2,8,32], index: 0, kind: input, shape index: {}]
  %s1 = inlined_call_operand.vmem [shape: f32[8,32], index: 1, kind: input, shape index: {}]
  %s2 = inlined_call_operand.vmem [shape: f32[2,1,8], index: 2, kind: input, shape index: {}]
  %s3 = inlined_call_operand.vmem [shape: bf16[2,32,96], index: 3, kind: input, shape index: {}]
  %s4 = inlined_call_operand.vmem [shape: f32[2,1,96], index: 4, kind: input, shape index: {}]
  %s5 = inlined_call_operand.vmem [shape: bf16[2,32,32], index: 5, kind: input, shape index: {}]
  %s6 = inlined_call_operand.vmem [shape: f32[2,1,32], index: 6, kind: input, shape index: {}]
  %s7 = inlined_call_operand.vmem [shape: f32[2,1,32], index: 7, kind: input, shape index: {}]
  %s8 = inlined_call_operand.vmem [shape: f32[2,1,32], index: 8, kind: input, shape index: {}]
  %s9 = inlined_call_operand.vmem [shape: f32[2,1,32], index: 9, kind: input, shape index: {}]
  %s10 = inlined_call_operand.vmem [shape: f32[2,1,32], index: 10, kind: input, shape index: {}]
  %s11 = inlined_call_operand.vmem [shape: bf16[2,32,2048], index: 11, kind: input, shape index: {}]
  %s12 = inlined_call_operand.vmem [shape: f32[2,1,2048], index: 12, kind: input, shape index: {}]
  %s13 = inlined_call_operand.vmem [shape: bf16[2,2048,32], index: 13, kind: input, shape index: {}]
  %s14 = inlined_call_operand.vmem [shape: f32[2,1,32], index: 14, kind: input, shape index: {}]
  %s15 = inlined_call_operand.vmem [shape: bf16[32,128], index: 15, kind: input, shape index: {}]
  %s16 = inlined_call_operand.vmem [shape: f32[1,128], index: 16, kind: input, shape index: {}]
  %s17 = inlined_call_operand.hbm [shape: f32[2,8,128], index: 17, kind: output, shape index: {}]
  %s18 = sld [smem:[#allocation0]]
  $region109: #{tpu_custom_call.1} parent=0
    _
  %s20 = ssub.s32 1, %s18
  %s21 = scalar_select 0, %s20, %s18
  $region1: #{tpu_custom_call.1} parent=0
    #allocation3 [shape = 'u8[8192]{0}', space=vmem, size = 0x2000, scoped, tag = 'output window, operand 0, single buffered']
    #allocation4 [shape = 's32[2]{0}', space=sflag, size = 0x8, scoped, tag = 'scoped memory for tpu_custom_call.1']
    %22 = vsyncpa [#allocation4], 0
    loop: start=0, step=1, limit=4
    $region2: #{tpu_custom_call.1} parent=1 // loop_pre_header
      _
    $region3: #{tpu_custom_call.1} parent=1 // loop_header
      %s24 = sphi 0, %s28
      %p25 = scmp.ge.s32.totalorder %s24, 4
      %s31 = sphi 0, %s43
      %s32 = sphi 0, %s39
      %s33 = sphi 0, %s31
      %s34 = sphi 0, %s32
      %s35 = sphi 0, %s33
      %s36 = sphi 0, %s34
      %s46 = sphi 0, %s48
      %s49 = sphi 0, %s46
      %s50 = sphi 0, %s49
      %s66 = sphi 0, %s50
      %s70 = sphi 0, %s70
      %s72 = sphi 0, %s70
      %s73 = sphi 0, %s72
      %s87 = sphi 0, %s73
      %s93 = sphi 0, %s95
      %s96 = sphi 0, %s93
      %s97 = sphi 0, %s96
      %s113 = sphi 0, %s97
      %s119 = sphi 0, %s121
      %s122 = sphi 0, %s119
      %s123 = sphi 0, %s122
      %s139 = sphi 0, %s123
      %s145 = sphi 0, %s147
      %s148 = sphi 0, %s145
      %s149 = sphi 0, %s148
      %s165 = sphi 0, %s149
      %s171 = sphi 0, %s173
      %s174 = sphi 0, %s171
      %s175 = sphi 0, %s174
      %s191 = sphi 0, %s175
      %s197 = sphi 0, %s199
      %s200 = sphi 0, %s197
      %s201 = sphi 0, %s200
      %s217 = sphi 0, %s201
      %s223 = sphi 0, %s225
      %s226 = sphi 0, %s223
      %s227 = sphi 0, %s226
      %s243 = sphi 0, %s227
      %s249 = sphi 0, %s251
      %s252 = sphi 0, %s249
      %s253 = sphi 0, %s252
      %s269 = sphi 0, %s253
      %s275 = sphi 0, %s277
      %s278 = sphi 0, %s275
      %s279 = sphi 0, %s278
      %s295 = sphi 0, %s279
      %s301 = sphi 0, %s303
      %s304 = sphi 0, %s301
      %s305 = sphi 0, %s304
      %s321 = sphi 0, %s305
      %s327 = sphi 0, %s329
      %s330 = sphi 0, %s327
      %s331 = sphi 0, %s330
      %s347 = sphi 0, %s331
      %s353 = sphi 0, %s355
      %s356 = sphi 0, %s353
      %s357 = sphi 0, %s356
      %s373 = sphi 0, %s357
      %s379 = sphi 0, %s381
      %s382 = sphi 0, %s379
      %s383 = sphi 0, %s382
      %s399 = sphi 0, %s383
      %s405 = sphi 0, %s407
      %s408 = sphi 0, %s405
      %s409 = sphi 0, %s408
      %s425 = sphi 0, %s409
      %s429 = sphi 0, %s429
      %s431 = sphi 0, %s429
      %s432 = sphi 0, %s431
      %s446 = sphi 0, %s432
      %s450 = sphi 0, %s450
      %s452 = sphi 0, %s450
      %s453 = sphi 0, %s452
      %s467 = sphi 0, %s453
      %s473 = sphi 0, %s475
      %s476 = sphi 0, %s473
      %s477 = sphi 0, %s476
      %s493 = sphi 0, %s477
    $region4: #{tpu_custom_call.1} parent=1 // loop_header_branch
      %27 = sbr.rel (%p25) target = $region8
    $region5: #{tpu_custom_call.1} parent=1 // loop_body
      %s29 = ssub.s32 %s24, 1
      %s30 = ssub.s32 %s24, 2
      %s37 = sadd.s32 1, %s32
      %p38 = scmp.ge.s32.totalorder %s37, 2
      %s39 = scalar_select %p38, 0, %s37
      %s40 = sadd.s32 1, %s31
      %s41 = scalar_select %p38, %s40, %s31
      %p42 = scmp.ge.s32.totalorder %s41, 1
      %s43 = scalar_select %p42, 0, %s41
      %s44 = ssub.s32 %s31, %s43
      %p45 = scmp.eq.s32.totalorder %s44, 0
      %s47 = sadd.s32 %s46, 1
      %s48 = scalar_select %p45, %s46, %s47
      %p51 = pneg %p45
      %p52 = scmp.eq.s32.totalorder %s24, 1
      %p53 = por %p51, %p52
      %p54 = scmp.ne.s32.totalorder %s46, %s49
      %p55 = scmp.eq.s32.totalorder %s24, 0
      %p56 = por %p54, %p55
      %p57 = scmp.ne.s32.totalorder %s46, %s49
      %p58 = scmp.eq.s32.totalorder %s29, 1
      %p59 = por %p57, %p58
      %p60 = scmp.ne.s32.totalorder %s49, %s50
      %p61 = scmp.eq.s32.totalorder %s29, 0
      %p62 = por %p60, %p61
      %p63 = scmp.ne.s32.totalorder %s49, %s50
      %p64 = scmp.eq.s32.totalorder %s30, 1
      %p65 = por %p63, %p64
      %p67 = scmp.ne.s32.totalorder %s50, %s66
      %p68 = scmp.eq.s32.totalorder %s30, 0
      %p69 = por %p67, %p68
      %s71 = sadd.s32 %s70, 1
      %p74 = scmp.eq.s32.totalorder %s24, 1
      %p75 = scmp.ne.s32.totalorder %s70, %s72
      %p76 = scmp.eq.s32.totalorder %s24, 0
      %p77 = por %p75, %p76
      %p78 = scmp.ne.s32.totalorder %s70, %s72
      %p79 = scmp.eq.s32.totalorder %s29, 1
      %p80 = por %p78, %p79
      %p81 = scmp.ne.s32.totalorder %s72, %s73
      %p82 = scmp.eq.s32.totalorder %s29, 0
      %p83 = por %p81, %p82
      %p84 = scmp.ne.s32.totalorder %s72, %s73
      %p85 = scmp.eq.s32.totalorder %s30, 1
      %p86 = por %p84, %p85
      %p88 = scmp.ne.s32.totalorder %s73, %s87
      %p89 = scmp.eq.s32.totalorder %s30, 0
      %p90 = por %p88, %p89
      %s91 = ssub.s32 %s31, %s43
      %p92 = scmp.eq.s32.totalorder %s91, 0
      %s94 = sadd.s32 %s93, 1
      %s95 = scalar_select %p92, %s93, %s94
      %p98 = pneg %p92
      %p99 = scmp.eq.s32.totalorder %s24, 1
      %p100 = por %p98, %p99
      %p101 = scmp.ne.s32.totalorder %s93, %s96
      %p102 = scmp.eq.s32.totalorder %s24, 0
      %p103 = por %p101, %p102
      %p104 = scmp.ne.s32.totalorder %s93, %s96
      %p105 = scmp.eq.s32.totalorder %s29, 1
      %p106 = por %p104, %p105
      %p107 = scmp.ne.s32.totalorder %s96, %s97
      %p108 = scmp.eq.s32.totalorder %s29, 0
      %p109 = por %p107, %p108
      %p110 = scmp.ne.s32.totalorder %s96, %s97
      %p111 = scmp.eq.s32.totalorder %s30, 1
      %p112 = por %p110, %p111
      %p114 = scmp.ne.s32.totalorder %s97, %s113
      %p115 = scmp.eq.s32.totalorder %s30, 0
      %p116 = por %p114, %p115
      %s117 = ssub.s32 %s32, %s39
      %p118 = scmp.eq.s32.totalorder %s117, 0
      %s120 = sadd.s32 %s119, 1
      %s121 = scalar_select %p118, %s119, %s120
      %p124 = pneg %p118
      %p125 = scmp.eq.s32.totalorder %s24, 1
      %p126 = por %p124, %p125
      %p127 = scmp.ne.s32.totalorder %s119, %s122
      %p128 = scmp.eq.s32.totalorder %s24, 0
      %p129 = por %p127, %p128
      %p130 = scmp.ne.s32.totalorder %s119, %s122
      %p131 = scmp.eq.s32.totalorder %s29, 1
      %p132 = por %p130, %p131
      %p133 = scmp.ne.s32.totalorder %s122, %s123
      %p134 = scmp.eq.s32.totalorder %s29, 0
      %p135 = por %p133, %p134
      %p136 = scmp.ne.s32.totalorder %s122, %s123
      %p137 = scmp.eq.s32.totalorder %s30, 1
      %p138 = por %p136, %p137
      %p140 = scmp.ne.s32.totalorder %s123, %s139
      %p141 = scmp.eq.s32.totalorder %s30, 0
      %p142 = por %p140, %p141
      %s143 = ssub.s32 %s32, %s39
      %p144 = scmp.eq.s32.totalorder %s143, 0
      %s146 = sadd.s32 %s145, 1
      %s147 = scalar_select %p144, %s145, %s146
      %p150 = pneg %p144
      %p151 = scmp.eq.s32.totalorder %s24, 1
      %p152 = por %p150, %p151
      %p153 = scmp.ne.s32.totalorder %s145, %s148
      %p154 = scmp.eq.s32.totalorder %s24, 0
      %p155 = por %p153, %p154
      %p156 = scmp.ne.s32.totalorder %s145, %s148
      %p157 = scmp.eq.s32.totalorder %s29, 1
      %p158 = por %p156, %p157
      %p159 = scmp.ne.s32.totalorder %s148, %s149
      %p160 = scmp.eq.s32.totalorder %s29, 0
      %p161 = por %p159, %p160
      %p162 = scmp.ne.s32.totalorder %s148, %s149
      %p163 = scmp.eq.s32.totalorder %s30, 1
      %p164 = por %p162, %p163
      %p166 = scmp.ne.s32.totalorder %s149, %s165
      %p167 = scmp.eq.s32.totalorder %s30, 0
      %p168 = por %p166, %p167
      %s169 = ssub.s32 %s32, %s39
      %p170 = scmp.eq.s32.totalorder %s169, 0
      %s172 = sadd.s32 %s171, 1
      %s173 = scalar_select %p170, %s171, %s172
      %p176 = pneg %p170
      %p177 = scmp.eq.s32.totalorder %s24, 1
      %p178 = por %p176, %p177
      %p179 = scmp.ne.s32.totalorder %s171, %s174
      %p180 = scmp.eq.s32.totalorder %s24, 0
      %p181 = por %p179, %p180
      %p182 = scmp.ne.s32.totalorder %s171, %s174
      %p183 = scmp.eq.s32.totalorder %s29, 1
      %p184 = por %p182, %p183
      %p185 = scmp.ne.s32.totalorder %s174, %s175
      %p186 = scmp.eq.s32.totalorder %s29, 0
      %p187 = por %p185, %p186
      %p188 = scmp.ne.s32.totalorder %s174, %s175
      %p189 = scmp.eq.s32.totalorder %s30, 1
      %p190 = por %p188, %p189
      %p192 = scmp.ne.s32.totalorder %s175, %s191
      %p193 = scmp.eq.s32.totalorder %s30, 0
      %p194 = por %p192, %p193
      %s195 = ssub.s32 %s32, %s39
      %p196 = scmp.eq.s32.totalorder %s195, 0
      %s198 = sadd.s32 %s197, 1
      %s199 = scalar_select %p196, %s197, %s198
      %p202 = pneg %p196
      %p203 = scmp.eq.s32.totalorder %s24, 1
      %p204 = por %p202, %p203
      %p205 = scmp.ne.s32.totalorder %s197, %s200
      %p206 = scmp.eq.s32.totalorder %s24, 0
      %p207 = por %p205, %p206
      %p208 = scmp.ne.s32.totalorder %s197, %s200
      %p209 = scmp.eq.s32.totalorder %s29, 1
      %p210 = por %p208, %p209
      %p211 = scmp.ne.s32.totalorder %s200, %s201
      %p212 = scmp.eq.s32.totalorder %s29, 0
      %p213 = por %p211, %p212
      %p214 = scmp.ne.s32.totalorder %s200, %s201
      %p215 = scmp.eq.s32.totalorder %s30, 1
      %p216 = por %p214, %p215
      %p218 = scmp.ne.s32.totalorder %s201, %s217
      %p219 = scmp.eq.s32.totalorder %s30, 0
      %p220 = por %p218, %p219
      %s221 = ssub.s32 %s32, %s39
      %p222 = scmp.eq.s32.totalorder %s221, 0
      %s224 = sadd.s32 %s223, 1
      %s225 = scalar_select %p222, %s223, %s224
      %p228 = pneg %p222
      %p229 = scmp.eq.s32.totalorder %s24, 1
      %p230 = por %p228, %p229
      %p231 = scmp.ne.s32.totalorder %s223, %s226
      %p232 = scmp.eq.s32.totalorder %s24, 0
      %p233 = por %p231, %p232
      %p234 = scmp.ne.s32.totalorder %s223, %s226
      %p235 = scmp.eq.s32.totalorder %s29, 1
      %p236 = por %p234, %p235
      %p237 = scmp.ne.s32.totalorder %s226, %s227
      %p238 = scmp.eq.s32.totalorder %s29, 0
      %p239 = por %p237, %p238
      %p240 = scmp.ne.s32.totalorder %s226, %s227
      %p241 = scmp.eq.s32.totalorder %s30, 1
      %p242 = por %p240, %p241
      %p244 = scmp.ne.s32.totalorder %s227, %s243
      %p245 = scmp.eq.s32.totalorder %s30, 0
      %p246 = por %p244, %p245
      %s247 = ssub.s32 %s32, %s39
      %p248 = scmp.eq.s32.totalorder %s247, 0
      %s250 = sadd.s32 %s249, 1
      %s251 = scalar_select %p248, %s249, %s250
      %p254 = pneg %p248
      %p255 = scmp.eq.s32.totalorder %s24, 1
      %p256 = por %p254, %p255
      %p257 = scmp.ne.s32.totalorder %s249, %s252
      %p258 = scmp.eq.s32.totalorder %s24, 0
      %p259 = por %p257, %p258
      %p260 = scmp.ne.s32.totalorder %s249, %s252
      %p261 = scmp.eq.s32.totalorder %s29, 1
      %p262 = por %p260, %p261
      %p263 = scmp.ne.s32.totalorder %s252, %s253
      %p264 = scmp.eq.s32.totalorder %s29, 0
      %p265 = por %p263, %p264
      %p266 = scmp.ne.s32.totalorder %s252, %s253
      %p267 = scmp.eq.s32.totalorder %s30, 1
      %p268 = por %p266, %p267
      %p270 = scmp.ne.s32.totalorder %s253, %s269
      %p271 = scmp.eq.s32.totalorder %s30, 0
      %p272 = por %p270, %p271
      %s273 = ssub.s32 %s32, %s39
      %p274 = scmp.eq.s32.totalorder %s273, 0
      %s276 = sadd.s32 %s275, 1
      %s277 = scalar_select %p274, %s275, %s276
      %p280 = pneg %p274
      %p281 = scmp.eq.s32.totalorder %s24, 1
      %p282 = por %p280, %p281
      %p283 = scmp.ne.s32.totalorder %s275, %s278
      %p284 = scmp.eq.s32.totalorder %s24, 0
      %p285 = por %p283, %p284
      %p286 = scmp.ne.s32.totalorder %s275, %s278
      %p287 = scmp.eq.s32.totalorder %s29, 1
      %p288 = por %p286, %p287
      %p289 = scmp.ne.s32.totalorder %s278, %s279
      %p290 = scmp.eq.s32.totalorder %s29, 0
      %p291 = por %p289, %p290
      %p292 = scmp.ne.s32.totalorder %s278, %s279
      %p293 = scmp.eq.s32.totalorder %s30, 1
      %p294 = por %p292, %p293
      %p296 = scmp.ne.s32.totalorder %s279, %s295
      %p297 = scmp.eq.s32.totalorder %s30, 0
      %p298 = por %p296, %p297
      %s299 = ssub.s32 %s32, %s39
      %p300 = scmp.eq.s32.totalorder %s299, 0
      %s302 = sadd.s32 %s301, 1
      %s303 = scalar_select %p300, %s301, %s302
      %p306 = pneg %p300
      %p307 = scmp.eq.s32.totalorder %s24, 1
      %p308 = por %p306, %p307
      %p309 = scmp.ne.s32.totalorder %s301, %s304
      %p310 = scmp.eq.s32.totalorder %s24, 0
      %p311 = por %p309, %p310
      %p312 = scmp.ne.s32.totalorder %s301, %s304
      %p313 = scmp.eq.s32.totalorder %s29, 1
      %p314 = por %p312, %p313
      %p315 = scmp.ne.s32.totalorder %s304, %s305
      %p316 = scmp.eq.s32.totalorder %s29, 0
      %p317 = por %p315, %p316
      %p318 = scmp.ne.s32.totalorder %s304, %s305
      %p319 = scmp.eq.s32.totalorder %s30, 1
      %p320 = por %p318, %p319
      %p322 = scmp.ne.s32.totalorder %s305, %s321
      %p323 = scmp.eq.s32.totalorder %s30, 0
      %p324 = por %p322, %p323
      %s325 = ssub.s32 %s32, %s39
      %p326 = scmp.eq.s32.totalorder %s325, 0
      %s328 = sadd.s32 %s327, 1
      %s329 = scalar_select %p326, %s327, %s328
      %p332 = pneg %p326
      %p333 = scmp.eq.s32.totalorder %s24, 1
      %p334 = por %p332, %p333
      %p335 = scmp.ne.s32.totalorder %s327, %s330
      %p336 = scmp.eq.s32.totalorder %s24, 0
      %p337 = por %p335, %p336
      %p338 = scmp.ne.s32.totalorder %s327, %s330
      %p339 = scmp.eq.s32.totalorder %s29, 1
      %p340 = por %p338, %p339
      %p341 = scmp.ne.s32.totalorder %s330, %s331
      %p342 = scmp.eq.s32.totalorder %s29, 0
      %p343 = por %p341, %p342
      %p344 = scmp.ne.s32.totalorder %s330, %s331
      %p345 = scmp.eq.s32.totalorder %s30, 1
      %p346 = por %p344, %p345
      %p348 = scmp.ne.s32.totalorder %s331, %s347
      %p349 = scmp.eq.s32.totalorder %s30, 0
      %p350 = por %p348, %p349
      %s351 = ssub.s32 %s32, %s39
      %p352 = scmp.eq.s32.totalorder %s351, 0
      %s354 = sadd.s32 %s353, 1
      %s355 = scalar_select %p352, %s353, %s354
      %p358 = pneg %p352
      %p359 = scmp.eq.s32.totalorder %s24, 1
      %p360 = por %p358, %p359
      %p361 = scmp.ne.s32.totalorder %s353, %s356
      %p362 = scmp.eq.s32.totalorder %s24, 0
      %p363 = por %p361, %p362
      %p364 = scmp.ne.s32.totalorder %s353, %s356
      %p365 = scmp.eq.s32.totalorder %s29, 1
      %p366 = por %p364, %p365
      %p367 = scmp.ne.s32.totalorder %s356, %s357
      %p368 = scmp.eq.s32.totalorder %s29, 0
      %p369 = por %p367, %p368
      %p370 = scmp.ne.s32.totalorder %s356, %s357
      %p371 = scmp.eq.s32.totalorder %s30, 1
      %p372 = por %p370, %p371
      %p374 = scmp.ne.s32.totalorder %s357, %s373
      %p375 = scmp.eq.s32.totalorder %s30, 0
      %p376 = por %p374, %p375
      %s377 = ssub.s32 %s32, %s39
      %p378 = scmp.eq.s32.totalorder %s377, 0
      %s380 = sadd.s32 %s379, 1
      %s381 = scalar_select %p378, %s379, %s380
      %p384 = pneg %p378
      %p385 = scmp.eq.s32.totalorder %s24, 1
      %p386 = por %p384, %p385
      %p387 = scmp.ne.s32.totalorder %s379, %s382
      %p388 = scmp.eq.s32.totalorder %s24, 0
      %p389 = por %p387, %p388
      %p390 = scmp.ne.s32.totalorder %s379, %s382
      %p391 = scmp.eq.s32.totalorder %s29, 1
      %p392 = por %p390, %p391
      %p393 = scmp.ne.s32.totalorder %s382, %s383
      %p394 = scmp.eq.s32.totalorder %s29, 0
      %p395 = por %p393, %p394
      %p396 = scmp.ne.s32.totalorder %s382, %s383
      %p397 = scmp.eq.s32.totalorder %s30, 1
      %p398 = por %p396, %p397
      %p400 = scmp.ne.s32.totalorder %s383, %s399
      %p401 = scmp.eq.s32.totalorder %s30, 0
      %p402 = por %p400, %p401
      %s403 = ssub.s32 %s32, %s39
      %p404 = scmp.eq.s32.totalorder %s403, 0
      %s406 = sadd.s32 %s405, 1
      %s407 = scalar_select %p404, %s405, %s406
      %p410 = pneg %p404
      %p411 = scmp.eq.s32.totalorder %s24, 1
      %p412 = por %p410, %p411
      %p413 = scmp.ne.s32.totalorder %s405, %s408
      %p414 = scmp.eq.s32.totalorder %s24, 0
      %p415 = por %p413, %p414
      %p416 = scmp.ne.s32.totalorder %s405, %s408
      %p417 = scmp.eq.s32.totalorder %s29, 1
      %p418 = por %p416, %p417
      %p419 = scmp.ne.s32.totalorder %s408, %s409
      %p420 = scmp.eq.s32.totalorder %s29, 0
      %p421 = por %p419, %p420
      %p422 = scmp.ne.s32.totalorder %s408, %s409
      %p423 = scmp.eq.s32.totalorder %s30, 1
      %p424 = por %p422, %p423
      %p426 = scmp.ne.s32.totalorder %s409, %s425
      %p427 = scmp.eq.s32.totalorder %s30, 0
      %p428 = por %p426, %p427
      %s430 = sadd.s32 %s429, 1
      %p433 = scmp.eq.s32.totalorder %s24, 1
      %p434 = scmp.ne.s32.totalorder %s429, %s431
      %p435 = scmp.eq.s32.totalorder %s24, 0
      %p436 = por %p434, %p435
      %p437 = scmp.ne.s32.totalorder %s429, %s431
      %p438 = scmp.eq.s32.totalorder %s29, 1
      %p439 = por %p437, %p438
      %p440 = scmp.ne.s32.totalorder %s431, %s432
      %p441 = scmp.eq.s32.totalorder %s29, 0
      %p442 = por %p440, %p441
      %p443 = scmp.ne.s32.totalorder %s431, %s432
      %p444 = scmp.eq.s32.totalorder %s30, 1
      %p445 = por %p443, %p444
      %p447 = scmp.ne.s32.totalorder %s432, %s446
      %p448 = scmp.eq.s32.totalorder %s30, 0
      %p449 = por %p447, %p448
      %s451 = sadd.s32 %s450, 1
      %p454 = scmp.eq.s32.totalorder %s24, 1
      %p455 = scmp.ne.s32.totalorder %s450, %s452
      %p456 = scmp.eq.s32.totalorder %s24, 0
      %p457 = por %p455, %p456
      %p458 = scmp.ne.s32.totalorder %s450, %s452
      %p459 = scmp.eq.s32.totalorder %s29, 1
      %p460 = por %p458, %p459
      %p461 = scmp.ne.s32.totalorder %s452, %s453
      %p462 = scmp.eq.s32.totalorder %s29, 0
      %p463 = por %p461, %p462
      %p464 = scmp.ne.s32.totalorder %s452, %s453
      %p465 = scmp.eq.s32.totalorder %s30, 1
      %p466 = por %p464, %p465
      %p468 = scmp.ne.s32.totalorder %s453, %s467
      %p469 = scmp.eq.s32.totalorder %s30, 0
      %p470 = por %p468, %p469
      %s471 = ssub.s32 %s31, %s43
      %p472 = scmp.eq.s32.totalorder %s471, 0
      %s474 = sadd.s32 %s473, 1
      %s475 = scalar_select %p472, %s473, %s474
      %p478 = pneg %p472
      %p479 = scmp.eq.s32.totalorder %s24, 1
      %p480 = por %p478, %p479
      %p481 = scmp.ne.s32.totalorder %s473, %s476
      %p482 = scmp.eq.s32.totalorder %s24, 0
      %p483 = por %p481, %p482
      %p484 = scmp.ne.s32.totalorder %s473, %s476
      %p485 = scmp.eq.s32.totalorder %s29, 1
      %p486 = por %p484, %p485
      %p487 = scmp.ne.s32.totalorder %s476, %s477
      %p488 = scmp.eq.s32.totalorder %s29, 0
      %p489 = por %p487, %p488
      %p490 = scmp.ne.s32.totalorder %s476, %s477
      %p491 = scmp.eq.s32.totalorder %s30, 1
      %p492 = por %p490, %p491
      %p494 = scmp.ne.s32.totalorder %s477, %s493
      %p495 = scmp.eq.s32.totalorder %s30, 0
      %p496 = por %p494, %p495
      %p497 = scmp.le.s32.totalorder 1, %s24
      %p498 = scmp.lt.s32.totalorder %s24, 3
      %p499 = pnand %p497, %p498
      %p500 = pneg %p499
      // Predicated region
      $region9: #{tpu_custom_call.1} parent=5 // pred_check
        _
      $region10: #{tpu_custom_call.1} parent=5 // pred_check_branch
        %502 = sbr.rel (%p499) target = $region12
      $region11: #{tpu_custom_call.1} parent=5 // pred_region
        %s503 = ssub.s32 %s24, 1
        // Predicated region
        $region13: #{tpu_custom_call.1} parent=11 // pred_check
          %p504 = pneg %p62
        $region14: #{tpu_custom_call.1} parent=11 // pred_check_branch
          %506 = sbr.rel (%p504) target = $region16
        $region15: #{tpu_custom_call.1} parent=11 // pred_region
          %s507 = smul.u32 2, %s33
          %p508 = scmp.lt.s32.totalorder %s507, 1
          %s509 = scalar_select %p508, %s507, 1
          %s510 = smul.addr %s509, 8
          %s511 = scalar_lea.vmem %s0, %s510
          %s512 = smul.u32 2, %s33
        $region16: #{tpu_custom_call.1} parent=11 // pred_fallthru
          _
        // Predicated region
        $region17: #{tpu_custom_call.1} parent=11 // pred_check
          %p513 = pneg %p83
        $region18: #{tpu_custom_call.1} parent=11 // pred_check_branch
          %515 = sbr.rel (%p513) target = $region20
        $region19: #{tpu_custom_call.1} parent=11 // pred_region
          _
        $region20: #{tpu_custom_call.1} parent=11 // pred_fallthru
          _
        // Predicated region
        $region21: #{tpu_custom_call.1} parent=11 // pred_check
          %p516 = pneg %p109
        $region22: #{tpu_custom_call.1} parent=11 // pred_check_branch
          %518 = sbr.rel (%p516) target = $region24
        $region23: #{tpu_custom_call.1} parent=11 // pred_region
          %s519 = smul.u32 2, %s33
          %p520 = scmp.lt.s32.totalorder %s519, 1
          %s521 = scalar_select %p520, %s519, 1
          %s522 = scalar_lea.vmem %s2, %s521
          %s523 = smul.u32 2, %s33
        $region24: #{tpu_custom_call.1} parent=11 // pred_fallthru
          _
        // Predicated region
        $region25: #{tpu_custom_call.1} parent=11 // pred_check
          %p524 = pneg %p442
        $region26: #{tpu_custom_call.1} parent=11 // pred_check_branch
          %526 = sbr.rel (%p524) target = $region28
        $region27: #{tpu_custom_call.1} parent=11 // pred_region
          _
        $region28: #{tpu_custom_call.1} parent=11 // pred_fallthru
          _
        // Predicated region
        $region29: #{tpu_custom_call.1} parent=11 // pred_check
          %p527 = pneg %p463
        $region30: #{tpu_custom_call.1} parent=11 // pred_check_branch
          %529 = sbr.rel (%p527) target = $region32
        $region31: #{tpu_custom_call.1} parent=11 // pred_region
          _
        $region32: #{tpu_custom_call.1} parent=11 // pred_fallthru
          _
      $region12: #{tpu_custom_call.1} parent=5 // pred_fallthru
        _
      %p530 = scmp.lt.s32.totalorder %s24, 2
      // Predicated region
      $region33: #{tpu_custom_call.1} parent=5 // pred_check
        %p531 = pneg %p530
      $region34: #{tpu_custom_call.1} parent=5 // pred_check_branch
        %533 = sbr.rel (%p531) target = $region36
      $region35: #{tpu_custom_call.1} parent=5 // pred_region
        // Predicated region
        $region37: #{tpu_custom_call.1} parent=35 // pred_check
          %p534 = pneg %p129
        $region38: #{tpu_custom_call.1} parent=35 // pred_check_branch
          %536 = sbr.rel (%p534) target = $region40
        $region39: #{tpu_custom_call.1} parent=35 // pred_region
          %p537 = scmp.lt.s32.totalorder %s32, 1
          %s538 = scalar_select %p537, %s32, 1
          %s539 = smul.addr %s538, 4
          %s540 = smul.addr %s539, 4
          %s541 = scalar_lea.vmem %s3, %s540
        $region40: #{tpu_custom_call.1} parent=35 // pred_fallthru
          _
        // Predicated region
        $region41: #{tpu_custom_call.1} parent=35 // pred_check
          %p542 = pneg %p155
        $region42: #{tpu_custom_call.1} parent=35 // pred_check_branch
          %544 = sbr.rel (%p542) target = $region44
        $region43: #{tpu_custom_call.1} parent=35 // pred_region
          %p545 = scmp.lt.s32.totalorder %s32, 1
          %s546 = scalar_select %p545, %s32, 1
          %s547 = scalar_lea.vmem %s4, %s546
        $region44: #{tpu_custom_call.1} parent=35 // pred_fallthru
          _
        // Predicated region
        $region45: #{tpu_custom_call.1} parent=35 // pred_check
          %p548 = pneg %p181
        $region46: #{tpu_custom_call.1} parent=35 // pred_check_branch
          %550 = sbr.rel (%p548) target = $region48
        $region47: #{tpu_custom_call.1} parent=35 // pred_region
          %p551 = scmp.lt.s32.totalorder %s32, 1
          %s552 = scalar_select %p551, %s32, 1
          %s553 = smul.addr %s552, 4
          %s554 = smul.addr %s553, 4
          %s555 = scalar_lea.vmem %s5, %s554
        $region48: #{tpu_custom_call.1} parent=35 // pred_fallthru
          _
        // Predicated region
        $region49: #{tpu_custom_call.1} parent=35 // pred_check
          %p556 = pneg %p207
        $region50: #{tpu_custom_call.1} parent=35 // pred_check_branch
          %558 = sbr.rel (%p556) target = $region52
        $region51: #{tpu_custom_call.1} parent=35 // pred_region
          %p559 = scmp.lt.s32.totalorder %s32, 1
          %s560 = scalar_select %p559, %s32, 1
          %s561 = scalar_lea.vmem %s6, %s560
        $region52: #{tpu_custom_call.1} parent=35 // pred_fallthru
          _
        // Predicated region
        $region53: #{tpu_custom_call.1} parent=35 // pred_check
          %p562 = pneg %p233
        $region54: #{tpu_custom_call.1} parent=35 // pred_check_branch
          %564 = sbr.rel (%p562) target = $region56
        $region55: #{tpu_custom_call.1} parent=35 // pred_region
          %p565 = scmp.lt.s32.totalorder %s32, 1
          %s566 = scalar_select %p565, %s32, 1
          %s567 = scalar_lea.vmem %s7, %s566
        $region56: #{tpu_custom_call.1} parent=35 // pred_fallthru
          _
        // Predicated region
        $region57: #{tpu_custom_call.1} parent=35 // pred_check
          %p568 = pneg %p259
        $region58: #{tpu_custom_call.1} parent=35 // pred_check_branch
          %570 = sbr.rel (%p568) target = $region60
        $region59: #{tpu_custom_call.1} parent=35 // pred_region
          %p571 = scmp.lt.s32.totalorder %s32, 1
          %s572 = scalar_select %p571, %s32, 1
          %s573 = scalar_lea.vmem %s8, %s572
        $region60: #{tpu_custom_call.1} parent=35 // pred_fallthru
          _
        // Predicated region
        $region61: #{tpu_custom_call.1} parent=35 // pred_check
          %p574 = pneg %p285
        $region62: #{tpu_custom_call.1} parent=35 // pred_check_branch
          %576 = sbr.rel (%p574) target = $region64
        $region63: #{tpu_custom_call.1} parent=35 // pred_region
          %p577 = scmp.lt.s32.totalorder %s32, 1
          %s578 = scalar_select %p577, %s32, 1
          %s579 = scalar_lea.vmem %s9, %s578
        $region64: #{tpu_custom_call.1} parent=35 // pred_fallthru
          _
        // Predicated region
        $region65: #{tpu_custom_call.1} parent=35 // pred_check
          %p580 = pneg %p311
        $region66: #{tpu_custom_call.1} parent=35 // pred_check_branch
          %582 = sbr.rel (%p580) target = $region68
        $region67: #{tpu_custom_call.1} parent=35 // pred_region
          %p583 = scmp.lt.s32.totalorder %s32, 1
          %s584 = scalar_select %p583, %s32, 1
          %s585 = scalar_lea.vmem %s10, %s584
        $region68: #{tpu_custom_call.1} parent=35 // pred_fallthru
          _
        // Predicated region
        $region69: #{tpu_custom_call.1} parent=35 // pred_check
          %p586 = pneg %p337
        $region70: #{tpu_custom_call.1} parent=35 // pred_check_branch
          %588 = sbr.rel (%p586) target = $region72
        $region71: #{tpu_custom_call.1} parent=35 // pred_region
          %p589 = scmp.lt.s32.totalorder %s32, 1
          %s590 = scalar_select %p589, %s32, 1
          %s591 = smul.addr %s590, 64
          %s592 = smul.addr %s591, 4
          %s593 = scalar_lea.vmem %s11, %s592
        $region72: #{tpu_custom_call.1} parent=35 // pred_fallthru
          _
        // Predicated region
        $region73: #{tpu_custom_call.1} parent=35 // pred_check
          %p594 = pneg %p363
        $region74: #{tpu_custom_call.1} parent=35 // pred_check_branch
          %596 = sbr.rel (%p594) target = $region76
        $region75: #{tpu_custom_call.1} parent=35 // pred_region
          %p597 = scmp.lt.s32.totalorder %s32, 1
          %s598 = scalar_select %p597, %s32, 1
          %s599 = smul.addr %s598, 16
          %s600 = scalar_lea.vmem %s12, %s599
        $region76: #{tpu_custom_call.1} parent=35 // pred_fallthru
          _
        // Predicated region
        $region77: #{tpu_custom_call.1} parent=35 // pred_check
          %p601 = pneg %p389
        $region78: #{tpu_custom_call.1} parent=35 // pred_check_branch
          %603 = sbr.rel (%p601) target = $region80
        $region79: #{tpu_custom_call.1} parent=35 // pred_region
          %p604 = scmp.lt.s32.totalorder %s32, 1
          %s605 = scalar_select %p604, %s32, 1
          %s606 = smul.addr %s605, 256
          %s607 = smul.addr %s606, 4
          %s608 = scalar_lea.vmem %s13, %s607
        $region80: #{tpu_custom_call.1} parent=35 // pred_fallthru
          _
        // Predicated region
        $region81: #{tpu_custom_call.1} parent=35 // pred_check
          %p609 = pneg %p415
        $region82: #{tpu_custom_call.1} parent=35 // pred_check_branch
          %611 = sbr.rel (%p609) target = $region84
        $region83: #{tpu_custom_call.1} parent=35 // pred_region
          %p612 = scmp.lt.s32.totalorder %s32, 1
          %s613 = scalar_select %p612, %s32, 1
          %s614 = scalar_lea.vmem %s14, %s613
        $region84: #{tpu_custom_call.1} parent=35 // pred_fallthru
          _
      $region36: #{tpu_custom_call.1} parent=5 // pred_fallthru
        _
      %p615 = scmp.le.s32.totalorder 1, %s24
      %p616 = scmp.lt.s32.totalorder %s24, 3
      %p617 = pnand %p615, %p616
      %p618 = pneg %p617
      // Predicated region
      $region85: #{tpu_custom_call.1} parent=5 // pred_check
        _
      $region86: #{tpu_custom_call.1} parent=5 // pred_check_branch
        %620 = sbr.rel (%p617) target = $region88
      $region87: #{tpu_custom_call.1} parent=5 // pred_region
        %s621 = ssub.s32 %s24, 1
        %s622 = smul.u32 2, %s33
        %p623 = scmp.lt.s32.totalorder %s622, 1
        %s624 = scalar_select %p623, %s622, 1
        %s625 = smul.addr %s624, 8
        %s626 = scalar_lea.vmem %s0, %s625
        %p627 = pneg %p62
        %p628 = pneg %p59
        %p629 = pneg %p83
        %p630 = pneg %p80
        %s631 = smul.u32 2, %s33
        %p632 = scmp.lt.s32.totalorder %s631, 1
        %s633 = scalar_select %p632, %s631, 1
        %s634 = scalar_lea.vmem %s2, %s633
        %p635 = pneg %p109
        %p636 = pneg %p106
        %p637 = scmp.lt.s32.totalorder %s34, 1
        %s638 = scalar_select %p637, %s34, 1
        %s639 = smul.addr %s638, 4
        %s640 = smul.addr %s639, 4
        %s641 = scalar_lea.vmem %s3, %s640
        %p642 = pneg %p135
        %p643 = pneg %p132
        %p644 = scmp.lt.s32.totalorder %s34, 1
        %s645 = scalar_select %p644, %s34, 1
        %s646 = scalar_lea.vmem %s4, %s645
        %p647 = pneg %p161
        %p648 = pneg %p158
        %p649 = scmp.lt.s32.totalorder %s34, 1
        %s650 = scalar_select %p649, %s34, 1
        %s651 = smul.addr %s650, 4
        %s652 = smul.addr %s651, 4
        %s653 = scalar_lea.vmem %s5, %s652
        %p654 = pneg %p187
        %p655 = pneg %p184
        %p656 = scmp.lt.s32.totalorder %s34, 1
        %s657 = scalar_select %p656, %s34, 1
        %s658 = scalar_lea.vmem %s6, %s657
        %p659 = pneg %p213
        %p660 = pneg %p210
        %p661 = scmp.lt.s32.totalorder %s34, 1
        %s662 = scalar_select %p661, %s34, 1
        %s663 = scalar_lea.vmem %s7, %s662
        %p664 = pneg %p239
        %p665 = pneg %p236
        %p666 = scmp.lt.s32.totalorder %s34, 1
        %s667 = scalar_select %p666, %s34, 1
        %s668 = scalar_lea.vmem %s8, %s667
        %p669 = pneg %p265
        %p670 = pneg %p262
        %p671 = scmp.lt.s32.totalorder %s34, 1
        %s672 = scalar_select %p671, %s34, 1
        %s673 = scalar_lea.vmem %s9, %s672
        %p674 = pneg %p291
        %p675 = pneg %p288
        %p676 = scmp.lt.s32.totalorder %s34, 1
        %s677 = scalar_select %p676, %s34, 1
        %s678 = scalar_lea.vmem %s10, %s677
        %p679 = pneg %p317
        %p680 = pneg %p314
        %p681 = scmp.lt.s32.totalorder %s34, 1
        %s682 = scalar_select %p681, %s34, 1
        %s683 = smul.addr %s682, 64
        %s684 = smul.addr %s683, 4
        %s685 = scalar_lea.vmem %s11, %s684
        %p686 = pneg %p343
        %p687 = pneg %p340
        %p688 = scmp.lt.s32.totalorder %s34, 1
        %s689 = scalar_select %p688, %s34, 1
        %s690 = smul.addr %s689, 16
        %s691 = scalar_lea.vmem %s12, %s690
        %p692 = pneg %p369
        %p693 = pneg %p366
        %p694 = scmp.lt.s32.totalorder %s34, 1
        %s695 = scalar_select %p694, %s34, 1
        %s696 = smul.addr %s695, 256
        %s697 = smul.addr %s696, 4
        %s698 = scalar_lea.vmem %s13, %s697
        %p699 = pneg %p395
        %p700 = pneg %p392
        %p701 = scmp.lt.s32.totalorder %s34, 1
        %s702 = scalar_select %p701, %s34, 1
        %s703 = scalar_lea.vmem %s14, %s702
        %p704 = pneg %p421
        %p705 = pneg %p418
        %p706 = pneg %p442
        %p707 = pneg %p439
        %p708 = pneg %p463
        %p709 = pneg %p460
        %p710 = pneg %p489
        %p711 = pneg %p486
        %s712 = smul.u32 2, %s33
        %p713 = scmp.lt.s32.totalorder %s712, 1
        %s714 = scalar_select %p713, %s712, 1
        %s715 = smul.addr %s714, 8
        %s716 = scalar_lea.vmem %s0, %s715
        %s717 = smul.u32 2, %s33
        %s718 = smul.u32 2, %s33
        %p719 = scmp.lt.s32.totalorder %s718, 1
        %s720 = scalar_select %p719, %s718, 1
        %s721 = scalar_lea.vmem %s2, %s720
        %s722 = smul.u32 2, %s33
        %p723 = scmp.lt.s32.totalorder %s34, 1
        %s724 = scalar_select %p723, %s34, 1
        %s725 = smul.addr %s724, 4
        %s726 = smul.addr %s725, 4
        %s727 = scalar_lea.vmem %s3, %s726
        %p728 = scmp.lt.s32.totalorder %s34, 1
        %s729 = scalar_select %p728, %s34, 1
        %s730 = scalar_lea.vmem %s4, %s729
        %p731 = scmp.lt.s32.totalorder %s34, 1
        %s732 = scalar_select %p731, %s34, 1
        %s733 = smul.addr %s732, 4
        %s734 = smul.addr %s733, 4
        %s735 = scalar_lea.vmem %s5, %s734
        %p736 = scmp.lt.s32.totalorder %s34, 1
        %s737 = scalar_select %p736, %s34, 1
        %s738 = scalar_lea.vmem %s6, %s737
        %p739 = scmp.lt.s32.totalorder %s34, 1
        %s740 = scalar_select %p739, %s34, 1
        %s741 = scalar_lea.vmem %s7, %s740
        %p742 = scmp.lt.s32.totalorder %s34, 1
        %s743 = scalar_select %p742, %s34, 1
        %s744 = scalar_lea.vmem %s8, %s743
        %p745 = scmp.lt.s32.totalorder %s34, 1
        %s746 = scalar_select %p745, %s34, 1
        %s747 = scalar_lea.vmem %s9, %s746
        %p748 = scmp.lt.s32.totalorder %s34, 1
        %s749 = scalar_select %p748, %s34, 1
        %s750 = scalar_lea.vmem %s10, %s749
        %p751 = scmp.lt.s32.totalorder %s34, 1
        %s752 = scalar_select %p751, %s34, 1
        %s753 = smul.addr %s752, 64
        %s754 = smul.addr %s753, 4
        %s755 = scalar_lea.vmem %s11, %s754
        %p756 = scmp.lt.s32.totalorder %s34, 1
        %s757 = scalar_select %p756, %s34, 1
        %s758 = smul.addr %s757, 16
        %s759 = scalar_lea.vmem %s12, %s758
        %p760 = scmp.lt.s32.totalorder %s34, 1
        %s761 = scalar_select %p760, %s34, 1
        %s762 = smul.addr %s761, 256
        %s763 = smul.addr %s762, 4
        %s764 = scalar_lea.vmem %s13, %s763
        %p765 = scmp.lt.s32.totalorder %s34, 1
        %s766 = scalar_select %p765, %s34, 1
        %s767 = scalar_lea.vmem %s14, %s766
        %s768 = smul.u32 2, %s33
        %p770 = scmp.eq.s32.totalorder %s34, 0
        // Predicated region
        $region89: #{tpu_custom_call.1} parent=87 // pred_check
          %p771 = pneg %p770
        $region90: #{tpu_custom_call.1} parent=87 // pred_check_branch
          %773 = sbr.rel (%p771) target = $region92
        $region91: #{tpu_custom_call.1} parent=87 // pred_region
          %v774 = vld [vmem:[%s716] sm:$0xff]
          %v775 = vld [vmem:[%s716 + $0x8] sm:$0xff]
          %v776 = vld [vmem:[%s1] sm:$0xff]
          %v777 = vadd.f32 %v774, %v776
          %v778 = vadd.f32 %v775, %v776
          %vm779 = vcmask 261120
          %780 = vst.msk [vmem:[#allocation2] sm:$0xff] %vm779, %v777
          %781 = vst.msk [vmem:[#allocation2 + $0x8] sm:$0xff] %vm779, %v778
        $region92: #{tpu_custom_call.1} parent=87 // pred_fallthru
          _
        %v782 = vld [vmem:[#allocation2] sm:$0xff]
        %v783 = vld [vmem:[#allocation2 + $0x8] sm:$0xff]
        %v784 = vld [vmem:[%s721] sm:$0x1]
        %v785 = vld [vmem:[%s721 + $0x1] sm:$0x1]
        %v786 = vpack.c.bf16 %v783, %v782
        %v787 = vld [vmem:[%s727] sm:$0xf]
        %v788 = vld [vmem:[%s727 + $0x4] sm:$0xf]
        %v789 = vld [vmem:[%s727 + $0x8] sm:$0xf]
        %v790 = vld [vmem:[%s727 + $0xc] sm:$0xf]
        %v791 = vld [vmem:[%s730] sm:$0x1]
        %v793 = vlaneseq
        %v794 = vshrl.u32 %v793, 7
        %v795 = vsub.s32 0, %v794
        %v796 = vrot.slane %v791, %v795
        %v802 = vunpack.c.l.b16 %v787
        %v803 = vunpack.c.l.b16 %v788
        %v804 = vunpack.c.l.b16 %v789
        %v805 = vunpack.c.l.b16 %v790
        %v806 = vpack.c.b16 %v803, %v802
        %v807 = vpack.c.b16 %v805, %v804
        %vm810 = vcmask 261120
        %v812 = vsel %vm810, %v786, 0
        %814 = vmatprep.subr.bf16.mxu0 0
        %815 = vmatpush1.bf16.msra.mxu0 0
        %816 = vmatprep.subr.bf16.mxu0 0
        %817 = vmatpush1.bf16.msra.mxu0 0
        %818 = vmatprep.subr.bf16.mxu0 0
        %819 = vmatpush1.bf16.msra.mxu0 0
        %820 = vmatprep.subr.bf16.mxu0 0
        %821 = vmatpush1.bf16.msra.mxu0 0
        %822 = vmatprep.subr.bf16.mxu0 0
        %823 = vmatpush1.bf16.msra.mxu0 0
        %824 = vmatprep.subr.bf16.mxu0 0
        %825 = vmatpush1.bf16.msra.mxu0 0
        %826 = vmatprep.subr.bf16.mxu0 0
        %827 = vmatpush1.bf16.msra.mxu0 %v807
        %828 = vmatprep.subr.bf16.mxu0 0
        %829 = vmatpush1.bf16.msra.mxu0 %v806
        %830 = vmatprep.subr.bf16.mxu0 0
        %831 = vmatpush2.bf16.msra.mxu0 0
        %832 = vmatprep.subr.bf16.mxu0 0
        %833 = vmatpush2.bf16.msra.mxu0 0
        %834 = vmatprep.subr.bf16.mxu0 0
        %835 = vmatpush2.bf16.msra.mxu0 0
        %836 = vmatprep.subr.bf16.mxu0 0
        %837 = vmatpush2.bf16.msra.mxu0 0
        %838 = vmatprep.subr.bf16.mxu0 0
        %839 = vmatpush2.bf16.msra.mxu0 0
        %840 = vmatprep.subr.bf16.mxu0 0
        %841 = vmatpush2.bf16.msra.mxu0 0
        %842 = vmatprep.subr.bf16.mxu0 0
        %843 = vmatpush2.bf16.msra.mxu0 0
        %844 = vmatprep.subr.bf16.mxu0 0
        %845 = vmatpush2.bf16.msra.mxu0 0
        %846 = vmatprep.mubr.bf16.mxu0 0
        %847 = vmatmul.mubr.bf16.gmra.mxu0 %v812
        %v848 = vpop.f32.mrf.mxu0
        %v849 = vadd.f32 %v796, %v848
        %v850 = vpop.f32.mrf.mxu0
        %v851 = vpop.f32.mrf.mxu0
        %v852 = vadd.f32 %v796, %v851
        %v853 = vpop.f32.mrf.mxu0
        %854 = vdwg.mxu0
        %v855 = vld [vmem:[%s735] sm:$0xf]
        %v856 = vld [vmem:[%s735 + $0x4] sm:$0xf]
        %v857 = vld [vmem:[%s735 + $0x8] sm:$0xf]
        %v858 = vld [vmem:[%s735 + $0xc] sm:$0xf]
        %v859 = vpack.c.bf16 %v849, %v849
        %v860 = vpack.c.bf16 %v852, %v852
        %862 = vrot.lane.b32.xlu0 %v859, 96
        %v863 = vpop.permute.xlu0 %862
        %vm864 = vcmask 64512
        %v866 = vsel %vm864, %v859, 0
        %v869 = vsel %vm864, %v863, 0
        %871 = vmatprep.subr.bf16.mxu0 0
        %872 = vmatpush1.bf16.xpose.msra.mxu0 0
        %873 = vmatprep.subr.bf16.mxu0 0
        %874 = vmatpush1.bf16.xpose.msra.mxu0 0
        %875 = vmatprep.subr.bf16.mxu0 0
        %876 = vmatpush1.bf16.xpose.msra.mxu0 0
        %877 = vmatprep.subr.bf16.mxu0 0
        %878 = vmatpush1.bf16.xpose.msra.mxu0 0
        %879 = vmatprep.subr.bf16.mxu0 0
        %880 = vmatpush1.bf16.xpose.msra.mxu0 0
        %881 = vmatprep.subr.bf16.mxu0 0
        %882 = vmatpush1.bf16.xpose.msra.mxu0 0
        %883 = vmatprep.subr.bf16.mxu0 0
        %884 = vmatpush1.bf16.xpose.msra.mxu0 0
        %885 = vmatprep.subr.bf16.mxu0 0
        %886 = vmatpush1.bf16.xpose.msra.mxu0 %v869
        %887 = vmatprep.subr.bf16.mxu0 0
        %888 = vmatpush2.bf16.xpose.msra.mxu0 0
        %889 = vmatprep.subr.bf16.mxu0 0
        %890 = vmatpush2.bf16.xpose.msra.mxu0 0
        %891 = vmatprep.subr.bf16.mxu0 0
        %892 = vmatpush2.bf16.xpose.msra.mxu0 0
        %893 = vmatprep.subr.bf16.mxu0 0
        %894 = vmatpush2.bf16.xpose.msra.mxu0 0
        %895 = vmatprep.subr.bf16.mxu0 0
        %896 = vmatpush2.bf16.xpose.msra.mxu0 0
        %897 = vmatprep.subr.bf16.mxu0 0
        %898 = vmatpush2.bf16.xpose.msra.mxu0 0
        %899 = vmatprep.subr.bf16.mxu0 0
        %900 = vmatpush2.bf16.xpose.msra.mxu0 0
        %901 = vmatprep.subr.bf16.mxu0 0
        %902 = vmatpush2.bf16.xpose.msra.mxu0 0
        %903 = vmatprep.mubr.bf16.mxu0 0
        %904 = vmatmul.mubr.bf16.gmra.mxu0 %v866
        %v905 = vpop.f32.mrf.mxu0
        %v906 = vadd.f32 0.0, %v905
        %v907 = vpop.f32.mrf.mxu0
        %v908 = vpop.f32.mrf.mxu0
        %v909 = vpop.f32.mrf.mxu0
        %910 = vdwg.mxu0
        %912 = vrot.lane.b32.xlu0 %v860, 96
        %v913 = vpop.permute.xlu0 %912
        %v915 = vsel %vm864, %v860, 0
        %v918 = vsel %vm864, %v913, 0
        %920 = vmatprep.subr.bf16.mxu0 0
        %921 = vmatpush1.bf16.xpose.msra.mxu0 0
        %922 = vmatprep.subr.bf16.mxu0 0
        %923 = vmatpush1.bf16.xpose.msra.mxu0 0
        %924 = vmatprep.subr.bf16.mxu0 0
        %925 = vmatpush1.bf16.xpose.msra.mxu0 0
        %926 = vmatprep.subr.bf16.mxu0 0
        %927 = vmatpush1.bf16.xpose.msra.mxu0 0
        %928 = vmatprep.subr.bf16.mxu0 0
        %929 = vmatpush1.bf16.xpose.msra.mxu0 0
        %930 = vmatprep.subr.bf16.mxu0 0
        %931 = vmatpush1.bf16.xpose.msra.mxu0 0
        %932 = vmatprep.subr.bf16.mxu0 0
        %933 = vmatpush1.bf16.xpose.msra.mxu0 0
        %934 = vmatprep.subr.bf16.mxu0 0
        %935 = vmatpush1.bf16.xpose.msra.mxu0 %v918
        %936 = vmatprep.subr.bf16.mxu0 0
        %937 = vmatpush2.bf16.xpose.msra.mxu0 0
        %938 = vmatprep.subr.bf16.mxu0 0
        %939 = vmatpush2.bf16.xpose.msra.mxu0 0
        %940 = vmatprep.subr.bf16.mxu0 0
        %941 = vmatpush2.bf16.xpose.msra.mxu0 0
        %942 = vmatprep.subr.bf16.mxu0 0
        %943 = vmatpush2.bf16.xpose.msra.mxu0 0
        %944 = vmatprep.subr.bf16.mxu0 0
        %945 = vmatpush2.bf16.xpose.msra.mxu0 0
        %946 = vmatprep.subr.bf16.mxu0 0
        %947 = vmatpush2.bf16.xpose.msra.mxu0 0
        %948 = vmatprep.subr.bf16.mxu0 0
        %949 = vmatpush2.bf16.xpose.msra.mxu0 0
        %950 = vmatprep.subr.bf16.mxu0 0
        %951 = vmatpush2.bf16.xpose.msra.mxu0 0
        %952 = vmatprep.mubr.bf16.mxu0 0
        %953 = vmatmul.mubr.bf16.gmra.mxu0 %v915
        %v954 = vpop.f32.mrf.mxu0
        %v955 = vadd.f32 0.0, %v954
        %v956 = vpop.f32.mrf.mxu0
        %v957 = vpop.f32.mrf.mxu0
        %v958 = vpop.f32.mrf.mxu0
        %959 = vdwg.mxu0
        %v960 = vmul.f32 %v906, 0.35355338
        %v961 = vmul.f32 %v955, 0.35355338
        %v964 = vlaneseq
        %v965 = vshrl.u32 %v964, 7
        %v966 = vsub.s32 0, %v965
        %v967 = vrot.slane %v784, %v966
        %v968 = vlaneseq
        %v969 = vshrl.u32 %v968, 7
        %v970 = vsub.s32 0, %v969
        %v971 = vrot.slane %v785, %v970
        %v974 = vadd.f32 %v960, %v967
        %v975 = vadd.f32 %v961, %v971
        %v976 = vsel %vm864, %v974, -inf
        %977 = vmax.xlane.f32.xlu0 %v976
        %v978 = vpop.xlane.xlu0 %977
        %v979 = vsel %vm864, %v975, -inf
        %980 = vmax.xlane.f32.xlu0 %v979
        %v981 = vpop.xlane.xlu0 %980
        %v982 = vsub.f32 %v974, %v978
        %v983 = vsub.f32 %v975, %v981
        %v984 = vmul.f32 %v982, 1.442695
        %v985 = vpow.pop %v984
        %v986 = vmul.f32 %v983, 1.442695
        %v987 = vpow.pop %v986
        %v988 = vsel %vm864, %v985, 0.0
        %989 = vadd.xlane.f32.xlu0 %v988
        %v990 = vpop.xlane.xlu0 %989
        %v991 = vsel %vm864, %v987, 0.0
        %992 = vadd.xlane.f32.xlu0 %v991
        %v993 = vpop.xlane.xlu0 %992
        %v994 = vrcp.pop %v990
        %v995 = vrcp.pop %v993
        %v996 = vmul.f32 %v985, %v994
        %v997 = vmul.f32 %v987, %v995
        %v998 = vpack.c.bf16 %v996, %v996
        %v999 = vpack.c.bf16 %v997, %v997
        %1000 = vrot.lane.b32.xlu0 %v859, 64
        %v1001 = vpop.permute.xlu0 %1000
        %v1003 = vsel %vm864, %v998, 0
        %vm1005 = vcmask 1043456
        %v1007 = vsel %vm1005, %v1001, 0
        %1009 = vmatprep.subr.bf16.mxu0 0
        %1010 = vmatpush1.bf16.msra.mxu0 0
        %1011 = vmatprep.subr.bf16.mxu0 0
        %1012 = vmatpush1.bf16.msra.mxu0 0
        %1013 = vmatprep.subr.bf16.mxu0 0
        %1014 = vmatpush1.bf16.msra.mxu0 0
        %1015 = vmatprep.subr.bf16.mxu0 0
        %1016 = vmatpush1.bf16.msra.mxu0 0
        %1017 = vmatprep.subr.bf16.mxu0 0
        %1018 = vmatpush1.bf16.msra.mxu0 0
        %1019 = vmatprep.subr.bf16.mxu0 0
        %1020 = vmatpush1.bf16.msra.mxu0 0
        %1021 = vmatprep.subr.bf16.mxu0 0
        %1022 = vmatpush1.bf16.msra.mxu0 0
        %1023 = vmatprep.subr.bf16.mxu0 0
        %1024 = vmatpush1.bf16.msra.mxu0 %v1007
        %1025 = vmatprep.subr.bf16.mxu0 0
        %1026 = vmatpush2.bf16.msra.mxu0 0
        %1027 = vmatprep.subr.bf16.mxu0 0
        %1028 = vmatpush2.bf16.msra.mxu0 0
        %1029 = vmatprep.subr.bf16.mxu0 0
        %1030 = vmatpush2.bf16.msra.mxu0 0
        %1031 = vmatprep.subr.bf16.mxu0 0
        %1032 = vmatpush2.bf16.msra.mxu0 0
        %1033 = vmatprep.subr.bf16.mxu0 0
        %1034 = vmatpush2.bf16.msra.mxu0 0
        %1035 = vmatprep.subr.bf16.mxu0 0
        %1036 = vmatpush2.bf16.msra.mxu0 0
        %1037 = vmatprep.subr.bf16.mxu0 0
        %1038 = vmatpush2.bf16.msra.mxu0 0
        %1039 = vmatprep.subr.bf16.mxu0 0
        %1040 = vmatpush2.bf16.msra.mxu0 0
        %1041 = vmatprep.mubr.bf16.mxu0 0
        %1042 = vmatmul.mubr.bf16.gmra.mxu0 %v1003
        %v1043 = vpop.f32.mrf.mxu0
        %v1044 = vadd.f32 0.0, %v1043
        %v1045 = vpop.f32.mrf.mxu0
        %v1046 = vpop.f32.mrf.mxu0
        %v1047 = vpop.f32.mrf.mxu0
        %1048 = vdwg.mxu0
        %1049 = vrot.lane.b32.xlu0 %v860, 64
        %v1050 = vpop.permute.xlu0 %1049
        %v1052 = vsel %vm864, %v999, 0
        %v1055 = vsel %vm1005, %v1050, 0
        %1057 = vmatprep.subr.bf16.mxu0 0
        %1058 = vmatpush1.bf16.msra.mxu0 0
        %1059 = vmatprep.subr.bf16.mxu0 0
        %1060 = vmatpush1.bf16.msra.mxu0 0
        %1061 = vmatprep.subr.bf16.mxu0 0
        %1062 = vmatpush1.bf16.msra.mxu0 0
        %1063 = vmatprep.subr.bf16.mxu0 0
        %1064 = vmatpush1.bf16.msra.mxu0 0
        %1065 = vmatprep.subr.bf16.mxu0 0
        %1066 = vmatpush1.bf16.msra.mxu0 0
        %1067 = vmatprep.subr.bf16.mxu0 0
        %1068 = vmatpush1.bf16.msra.mxu0 0
        %1069 = vmatprep.subr.bf16.mxu0 0
        %1070 = vmatpush1.bf16.msra.mxu0 0
        %1071 = vmatprep.subr.bf16.mxu0 0
        %1072 = vmatpush1.bf16.msra.mxu0 %v1055
        %1073 = vmatprep.subr.bf16.mxu0 0
        %1074 = vmatpush2.bf16.msra.mxu0 0
        %1075 = vmatprep.subr.bf16.mxu0 0
        %1076 = vmatpush2.bf16.msra.mxu0 0
        %1077 = vmatprep.subr.bf16.mxu0 0
        %1078 = vmatpush2.bf16.msra.mxu0 0
        %1079 = vmatprep.subr.bf16.mxu0 0
        %1080 = vmatpush2.bf16.msra.mxu0 0
        %1081 = vmatprep.subr.bf16.mxu0 0
        %1082 = vmatpush2.bf16.msra.mxu0 0
        %1083 = vmatprep.subr.bf16.mxu0 0
        %1084 = vmatpush2.bf16.msra.mxu0 0
        %1085 = vmatprep.subr.bf16.mxu0 0
        %1086 = vmatpush2.bf16.msra.mxu0 0
        %1087 = vmatprep.subr.bf16.mxu0 0
        %1088 = vmatpush2.bf16.msra.mxu0 0
        %1089 = vmatprep.mubr.bf16.mxu0 0
        %1090 = vmatmul.mubr.bf16.gmra.mxu0 %v1052
        %v1091 = vpop.f32.mrf.mxu0
        %v1092 = vadd.f32 0.0, %v1091
        %v1093 = vpop.f32.mrf.mxu0
        %v1094 = vpop.f32.mrf.mxu0
        %v1095 = vpop.f32.mrf.mxu0
        %1096 = vdwg.mxu0
        %v1097 = vpack.c.bf16 %v1092, %v1044
        %1098 = vrot.lane.b32.xlu0 %v859, 120
        %v1099 = vpop.permute.xlu0 %1098
        %1100 = vrot.lane.b32.xlu0 %v859, 88
        %v1101 = vpop.permute.xlu0 %1100
        %v1103 = vsel %vm864, %v1099, 0
        %v1106 = vsel %vm864, %v1101, 0
        %1108 = vmatprep.subr.bf16.mxu0 0
        %1109 = vmatpush1.bf16.xpose.msra.mxu0 0
        %1110 = vmatprep.subr.bf16.mxu0 0
        %1111 = vmatpush1.bf16.xpose.msra.mxu0 0
        %1112 = vmatprep.subr.bf16.mxu0 0
        %1113 = vmatpush1.bf16.xpose.msra.mxu0 0
        %1114 = vmatprep.subr.bf16.mxu0 0
        %1115 = vmatpush1.bf16.xpose.msra.mxu0 0
        %1116 = vmatprep.subr.bf16.mxu0 0
        %1117 = vmatpush1.bf16.xpose.msra.mxu0 0
        %1118 = vmatprep.subr.bf16.mxu0 0
        %1119 = vmatpush1.bf16.xpose.msra.mxu0 0
        %1120 = vmatprep.subr.bf16.mxu0 0
        %1121 = vmatpush1.bf16.xpose.msra.mxu0 0
        %1122 = vmatprep.subr.bf16.mxu0 0
        %1123 = vmatpush1.bf16.xpose.msra.mxu0 %v1106
        %1124 = vmatprep.subr.bf16.mxu0 0
        %1125 = vmatpush2.bf16.xpose.msra.mxu0 0
        %1126 = vmatprep.subr.bf16.mxu0 0
        %1127 = vmatpush2.bf16.xpose.msra.mxu0 0
        %1128 = vmatprep.subr.bf16.mxu0 0
        %1129 = vmatpush2.bf16.xpose.msra.mxu0 0
        %1130 = vmatprep.subr.bf16.mxu0 0
        %1131 = vmatpush2.bf16.xpose.msra.mxu0 0
        %1132 = vmatprep.subr.bf16.mxu0 0
        %1133 = vmatpush2.bf16.xpose.msra.mxu0 0
        %1134 = vmatprep.subr.bf16.mxu0 0
        %1135 = vmatpush2.bf16.xpose.msra.mxu0 0
        %1136 = vmatprep.subr.bf16.mxu0 0
        %1137 = vmatpush2.bf16.xpose.msra.mxu0 0
        %1138 = vmatprep.subr.bf16.mxu0 0
        %1139 = vmatpush2.bf16.xpose.msra.mxu0 0
        %1140 = vmatprep.mubr.bf16.mxu0 0
        %1141 = vmatmul.mubr.bf16.gmra.mxu0 %v1103
        %v1142 = vpop.f32.mrf.mxu0
        %v1143 = vadd.f32 0.0, %v1142
        %v1144 = vpop.f32.mrf.mxu0
        %v1145 = vpop.f32.mrf.mxu0
        %v1146 = vpop.f32.mrf.mxu0
        %1147 = vdwg.mxu0
        %1148 = vrot.lane.b32.xlu0 %v860, 120
        %v1149 = vpop.permute.xlu0 %1148
        %1150 = vrot.lane.b32.xlu0 %v860, 88
        %v1151 = vpop.permute.xlu0 %1150
        %v1153 = vsel %vm864, %v1149, 0
        %v1156 = vsel %vm864, %v1151, 0
        %1158 = vmatprep.subr.bf16.mxu0 0
        %1159 = vmatpush1.bf16.xpose.msra.mxu0 0
        %1160 = vmatprep.subr.bf16.mxu0 0
        %1161 = vmatpush1.bf16.xpose.msra.mxu0 0
        %1162 = vmatprep.subr.bf16.mxu0 0
        %1163 = vmatpush1.bf16.xpose.msra.mxu0 0
        %1164 = vmatprep.subr.bf16.mxu0 0
        %1165 = vmatpush1.bf16.xpose.msra.mxu0 0
        %1166 = vmatprep.subr.bf16.mxu0 0
        %1167 = vmatpush1.bf16.xpose.msra.mxu0 0
        %1168 = vmatprep.subr.bf16.mxu0 0
        %1169 = vmatpush1.bf16.xpose.msra.mxu0 0
        %1170 = vmatprep.subr.bf16.mxu0 0
        %1171 = vmatpush1.bf16.xpose.msra.mxu0 0
        %1172 = vmatprep.subr.bf16.mxu0 0
        %1173 = vmatpush1.bf16.xpose.msra.mxu0 %v1156
        %1174 = vmatprep.subr.bf16.mxu0 0
        %1175 = vmatpush2.bf16.xpose.msra.mxu0 0
        %1176 = vmatprep.subr.bf16.mxu0 0
        %1177 = vmatpush2.bf16.xpose.msra.mxu0 0
        %1178 = vmatprep.subr.bf16.mxu0 0
        %1179 = vmatpush2.bf16.xpose.msra.mxu0 0
        %1180 = vmatprep.subr.bf16.mxu0 0
        %1181 = vmatpush2.bf16.xpose.msra.mxu0 0
        %1182 = vmatprep.subr.bf16.mxu0 0
        %1183 = vmatpush2.bf16.xpose.msra.mxu0 0
        %1184 = vmatprep.subr.bf16.mxu0 0
        %1185 = vmatpush2.bf16.xpose.msra.mxu0 0
        %1186 = vmatprep.subr.bf16.mxu0 0
        %1187 = vmatpush2.bf16.xpose.msra.mxu0 0
        %1188 = vmatprep.subr.bf16.mxu0 0
        %1189 = vmatpush2.bf16.xpose.msra.mxu0 0
        %1190 = vmatprep.mubr.bf16.mxu0 0
        %1191 = vmatmul.mubr.bf16.gmra.mxu0 %v1153
        %v1192 = vpop.f32.mrf.mxu0
        %v1193 = vadd.f32 0.0, %v1192
        %v1194 = vpop.f32.mrf.mxu0
        %v1195 = vpop.f32.mrf.mxu0
        %v1196 = vpop.f32.mrf.mxu0
        %1197 = vdwg.mxu0
        %v1198 = vmul.f32 %v1143, 0.35355338
        %v1199 = vmul.f32 %v1193, 0.35355338
        %v1200 = vadd.f32 %v1198, %v967
        %v1201 = vadd.f32 %v1199, %v971
        %v1202 = vsel %vm864, %v1200, -inf
        %1203 = vmax.xlane.f32.xlu0 %v1202
        %v1204 = vpop.xlane.xlu0 %1203
        %v1205 = vsel %vm864, %v1201, -inf
        %1206 = vmax.xlane.f32.xlu0 %v1205
        %v1207 = vpop.xlane.xlu0 %1206
        %v1208 = vsub.f32 %v1200, %v1204
        %v1209 = vsub.f32 %v1201, %v1207
        %v1210 = vmul.f32 %v1208, 1.442695
        %v1211 = vpow.pop %v1210
        %v1212 = vmul.f32 %v1209, 1.442695
        %v1213 = vpow.pop %v1212
        %v1214 = vsel %vm864, %v1211, 0.0
        %1215 = vadd.xlane.f32.xlu0 %v1214
        %v1216 = vpop.xlane.xlu0 %1215
        %v1217 = vsel %vm864, %v1213, 0.0
        %1218 = vadd.xlane.f32.xlu0 %v1217
        %v1219 = vpop.xlane.xlu0 %1218
        %v1220 = vrcp.pop %v1216
        %v1221 = vrcp.pop %v1219
        %v1222 = vmul.f32 %v1211, %v1220
        %v1223 = vmul.f32 %v1213, %v1221
        %v1224 = vpack.c.bf16 %v1222, %v1222
        %v1225 = vpack.c.bf16 %v1223, %v1223
        %1226 = vrot.lane.b32.xlu0 %v859, 56
        %v1227 = vpop.permute.xlu0 %1226
        %v1229 = vsel %vm864, %v1224, 0
        %v1232 = vsel %vm1005, %v1227, 0
        %1234 = vmatprep.subr.bf16.mxu0 0
        %1235 = vmatpush1.bf16.msra.mxu0 0
        %1236 = vmatprep.subr.bf16.mxu0 0
        %1237 = vmatpush1.bf16.msra.mxu0 0
        %1238 = vmatprep.subr.bf16.mxu0 0
        %1239 = vmatpush1.bf16.msra.mxu0 0
        %1240 = vmatprep.subr.bf16.mxu0 0
        %1241 = vmatpush1.bf16.msra.mxu0 0
        %1242 = vmatprep.subr.bf16.mxu0 0
        %1243 = vmatpush1.bf16.msra.mxu0 0
        %1244 = vmatprep.subr.bf16.mxu0 0
        %1245 = vmatpush1.bf16.msra.mxu0 0
        %1246 = vmatprep.subr.bf16.mxu0 0
        %1247 = vmatpush1.bf16.msra.mxu0 0
        %1248 = vmatprep.subr.bf16.mxu0 0
        %1249 = vmatpush1.bf16.msra.mxu0 %v1232
        %1250 = vmatprep.subr.bf16.mxu0 0
        %1251 = vmatpush2.bf16.msra.mxu0 0
        %1252 = vmatprep.subr.bf16.mxu0 0
        %1253 = vmatpush2.bf16.msra.mxu0 0
        %1254 = vmatprep.subr.bf16.mxu0 0
        %1255 = vmatpush2.bf16.msra.mxu0 0
        %1256 = vmatprep.subr.bf16.mxu0 0
        %1257 = vmatpush2.bf16.msra.mxu0 0
        %1258 = vmatprep.subr.bf16.mxu0 0
        %1259 = vmatpush2.bf16.msra.mxu0 0
        %1260 = vmatprep.subr.bf16.mxu0 0
        %1261 = vmatpush2.bf16.msra.mxu0 0
        %1262 = vmatprep.subr.bf16.mxu0 0
        %1263 = vmatpush2.bf16.msra.mxu0 0
        %1264 = vmatprep.subr.bf16.mxu0 0
        %1265 = vmatpush2.bf16.msra.mxu0 0
        %1266 = vmatprep.mubr.bf16.mxu0 0
        %1267 = vmatmul.mubr.bf16.gmra.mxu0 %v1229
        %v1268 = vpop.f32.mrf.mxu0
        %v1269 = vadd.f32 0.0, %v1268
        %v1270 = vpop.f32.mrf.mxu0
        %v1271 = vpop.f32.mrf.mxu0
        %v1272 = vpop.f32.mrf.mxu0
        %1273 = vdwg.mxu0
        %1274 = vrot.lane.b32.xlu0 %v860, 56
        %v1275 = vpop.permute.xlu0 %1274
        %v1277 = vsel %vm864, %v1225, 0
        %v1280 = vsel %vm1005, %v1275, 0
        %1282 = vmatprep.subr.bf16.mxu0 0
        %1283 = vmatpush1.bf16.msra.mxu0 0
        %1284 = vmatprep.subr.bf16.mxu0 0
        %1285 = vmatpush1.bf16.msra.mxu0 0
        %1286 = vmatprep.subr.bf16.mxu0 0
        %1287 = vmatpush1.bf16.msra.mxu0 0
        %1288 = vmatprep.subr.bf16.mxu0 0
        %1289 = vmatpush1.bf16.msra.mxu0 0
        %1290 = vmatprep.subr.bf16.mxu0 0
        %1291 = vmatpush1.bf16.msra.mxu0 0
        %1292 = vmatprep.subr.bf16.mxu0 0
        %1293 = vmatpush1.bf16.msra.mxu0 0
        %1294 = vmatprep.subr.bf16.mxu0 0
        %1295 = vmatpush1.bf16.msra.mxu0 0
        %1296 = vmatprep.subr.bf16.mxu0 0
        %1297 = vmatpush1.bf16.msra.mxu0 %v1280
        %1298 = vmatprep.subr.bf16.mxu0 0
        %1299 = vmatpush2.bf16.msra.mxu0 0
        %1300 = vmatprep.subr.bf16.mxu0 0
        %1301 = vmatpush2.bf16.msra.mxu0 0
        %1302 = vmatprep.subr.bf16.mxu0 0
        %1303 = vmatpush2.bf16.msra.mxu0 0
        %1304 = vmatprep.subr.bf16.mxu0 0
        %1305 = vmatpush2.bf16.msra.mxu0 0
        %1306 = vmatprep.subr.bf16.mxu0 0
        %1307 = vmatpush2.bf16.msra.mxu0 0
        %1308 = vmatprep.subr.bf16.mxu0 0
        %1309 = vmatpush2.bf16.msra.mxu0 0
        %1310 = vmatprep.subr.bf16.mxu0 0
        %1311 = vmatpush2.bf16.msra.mxu0 0
        %1312 = vmatprep.subr.bf16.mxu0 0
        %1313 = vmatpush2.bf16.msra.mxu0 0
        %1314 = vmatprep.mubr.bf16.mxu0 0
        %1315 = vmatmul.mubr.bf16.gmra.mxu0 %v1277
        %v1316 = vpop.f32.mrf.mxu0
        %v1317 = vadd.f32 0.0, %v1316
        %v1318 = vpop.f32.mrf.mxu0
        %v1319 = vpop.f32.mrf.mxu0
        %v1320 = vpop.f32.mrf.mxu0
        %1321 = vdwg.mxu0
        %v1322 = vpack.c.bf16 %v1317, %v1269
        %v1324 = vsel %vm864, %v1322, 0
        %v1327 = vsel %vm1005, %v856, 0
        %1329 = vmatprep.subr.bf16.mxu0 0
        %1330 = vmatpush1.bf16.msra.mxu0 0
        %1331 = vmatprep.subr.bf16.mxu0 0
        %1332 = vmatpush1.bf16.msra.mxu0 0
        %1333 = vmatprep.subr.bf16.mxu0 0
        %1334 = vmatpush1.bf16.msra.mxu0 0
        %1335 = vmatprep.subr.bf16.mxu0 0
        %1336 = vmatpush1.bf16.msra.mxu0 0
        %1337 = vmatprep.subr.bf16.mxu0 0
        %1338 = vmatpush1.bf16.msra.mxu0 0
        %1339 = vmatprep.subr.bf16.mxu0 0
        %1340 = vmatpush1.bf16.msra.mxu0 0
        %1341 = vmatprep.subr.bf16.mxu0 0
        %1342 = vmatpush1.bf16.msra.mxu0 0
        %1343 = vmatprep.subr.bf16.mxu0 0
        %1344 = vmatpush1.bf16.msra.mxu0 %v1327
        %1345 = vmatprep.subr.bf16.mxu0 0
        %1346 = vmatpush2.bf16.msra.mxu0 0
        %1347 = vmatprep.subr.bf16.mxu0 0
        %1348 = vmatpush2.bf16.msra.mxu0 0
        %1349 = vmatprep.subr.bf16.mxu0 0
        %1350 = vmatpush2.bf16.msra.mxu0 0
        %1351 = vmatprep.subr.bf16.mxu0 0
        %1352 = vmatpush2.bf16.msra.mxu0 0
        %1353 = vmatprep.subr.bf16.mxu0 0
        %1354 = vmatpush2.bf16.msra.mxu0 0
        %1355 = vmatprep.subr.bf16.mxu0 0
        %1356 = vmatpush2.bf16.msra.mxu0 0
        %1357 = vmatprep.subr.bf16.mxu0 0
        %1358 = vmatpush2.bf16.msra.mxu0 0
        %1359 = vmatprep.subr.bf16.mxu0 0
        %1360 = vmatpush2.bf16.msra.mxu0 0
        %1361 = vmatprep.mubr.bf16.mxu0 0
        %1362 = vmatmul.mubr.bf16.gmra.mxu0 %v1324
        %v1363 = vpop.f32.mrf.mxu0
        %v1364 = vadd.f32 0.0, %v1363
        %v1365 = vpop.f32.mrf.mxu0
        %v1366 = vpop.f32.mrf.mxu0
        %v1367 = vadd.f32 0.0, %v1366
        %v1368 = vpop.f32.mrf.mxu0
        %1369 = vdwg.mxu0
        %v1371 = vsel %vm864, %v1097, 0
        %v1374 = vsel %vm1005, %v855, 0
        %1376 = vmatprep.subr.bf16.mxu0 0
        %1377 = vmatpush1.bf16.msra.mxu0 0
        %1378 = vmatprep.subr.bf16.mxu0 0
        %1379 = vmatpush1.bf16.msra.mxu0 0
        %1380 = vmatprep.subr.bf16.mxu0 0
        %1381 = vmatpush1.bf16.msra.mxu0 0
        %1382 = vmatprep.subr.bf16.mxu0 0
        %1383 = vmatpush1.bf16.msra.mxu0 0
        %1384 = vmatprep.subr.bf16.mxu0 0
        %1385 = vmatpush1.bf16.msra.mxu0 0
        %1386 = vmatprep.subr.bf16.mxu0 0
        %1387 = vmatpush1.bf16.msra.mxu0 0
        %1388 = vmatprep.subr.bf16.mxu0 0
        %1389 = vmatpush1.bf16.msra.mxu0 0
        %1390 = vmatprep.subr.bf16.mxu0 0
        %1391 = vmatpush1.bf16.msra.mxu0 %v1374
        %1392 = vmatprep.subr.bf16.mxu0 0
        %1393 = vmatpush2.bf16.msra.mxu0 0
        %1394 = vmatprep.subr.bf16.mxu0 0
        %1395 = vmatpush2.bf16.msra.mxu0 0
        %1396 = vmatprep.subr.bf16.mxu0 0
        %1397 = vmatpush2.bf16.msra.mxu0 0
        %1398 = vmatprep.subr.bf16.mxu0 0
        %1399 = vmatpush2.bf16.msra.mxu0 0
        %1400 = vmatprep.subr.bf16.mxu0 0
        %1401 = vmatpush2.bf16.msra.mxu0 0
        %1402 = vmatprep.subr.bf16.mxu0 0
        %1403 = vmatpush2.bf16.msra.mxu0 0
        %1404 = vmatprep.subr.bf16.mxu0 0
        %1405 = vmatpush2.bf16.msra.mxu0 0
        %1406 = vmatprep.subr.bf16.mxu0 0
        %1407 = vmatpush2.bf16.msra.mxu0 0
        %1408 = vmatprep.mubr.bf16.mxu0 0
        %1409 = vmatmul.mubr.bf16.gmra.mxu0 %v1371
        %v1410 = vpop.f32.mrf.mxu0
        %v1411 = vadd.f32 %v1364, %v1410
        %v1412 = vpop.f32.mrf.mxu0
        %v1413 = vpop.f32.mrf.mxu0
        %v1414 = vadd.f32 %v1367, %v1413
        %v1415 = vpop.f32.mrf.mxu0
        %1416 = vdwg.mxu0
        %1417 = vrot.lane.b32.xlu0 %v859, 112
        %v1418 = vpop.permute.xlu0 %1417
        %1419 = vrot.lane.b32.xlu0 %v859, 80
        %v1420 = vpop.permute.xlu0 %1419
        %v1422 = vsel %vm864, %v1418, 0
        %v1425 = vsel %vm864, %v1420, 0
        %1427 = vmatprep.subr.bf16.mxu0 0
        %1428 = vmatpush1.bf16.xpose.msra.mxu0 0
        %1429 = vmatprep.subr.bf16.mxu0 0
        %1430 = vmatpush1.bf16.xpose.msra.mxu0 0
        %1431 = vmatprep.subr.bf16.mxu0 0
        %1432 = vmatpush1.bf16.xpose.msra.mxu0 0
        %1433 = vmatprep.subr.bf16.mxu0 0
        %1434 = vmatpush1.bf16.xpose.msra.mxu0 0
        %1435 = vmatprep.subr.bf16.mxu0 0
        %1436 = vmatpush1.bf16.xpose.msra.mxu0 0
        %1437 = vmatprep.subr.bf16.mxu0 0
        %1438 = vmatpush1.bf16.xpose.msra.mxu0 0
        %1439 = vmatprep.subr.bf16.mxu0 0
        %1440 = vmatpush1.bf16.xpose.msra.mxu0 0
        %1441 = vmatprep.subr.bf16.mxu0 0
        %1442 = vmatpush1.bf16.xpose.msra.mxu0 %v1425
        %1443 = vmatprep.subr.bf16.mxu0 0
        %1444 = vmatpush2.bf16.xpose.msra.mxu0 0
        %1445 = vmatprep.subr.bf16.mxu0 0
        %1446 = vmatpush2.bf16.xpose.msra.mxu0 0
        %1447 = vmatprep.subr.bf16.mxu0 0
        %1448 = vmatpush2.bf16.xpose.msra.mxu0 0
        %1449 = vmatprep.subr.bf16.mxu0 0
        %1450 = vmatpush2.bf16.xpose.msra.mxu0 0
        %1451 = vmatprep.subr.bf16.mxu0 0
        %1452 = vmatpush2.bf16.xpose.msra.mxu0 0
        %1453 = vmatprep.subr.bf16.mxu0 0
        %1454 = vmatpush2.bf16.xpose.msra.mxu0 0
        %1455 = vmatprep.subr.bf16.mxu0 0
        %1456 = vmatpush2.bf16.xpose.msra.mxu0 0
        %1457 = vmatprep.subr.bf16.mxu0 0
        %1458 = vmatpush2.bf16.xpose.msra.mxu0 0
        %1459 = vmatprep.mubr.bf16.mxu0 0
        %1460 = vmatmul.mubr.bf16.gmra.mxu0 %v1422
        %v1461 = vpop.f32.mrf.mxu0
        %v1462 = vadd.f32 0.0, %v1461
        %v1463 = vpop.f32.mrf.mxu0
        %v1464 = vpop.f32.mrf.mxu0
        %v1465 = vpop.f32.mrf.mxu0
        %1466 = vdwg.mxu0
        %1467 = vrot.lane.b32.xlu0 %v860, 112
        %v1468 = vpop.permute.xlu0 %1467
        %1469 = vrot.lane.b32.xlu0 %v860, 80
        %v1470 = vpop.permute.xlu0 %1469
        %v1472 = vsel %vm864, %v1468, 0
        %v1475 = vsel %vm864, %v1470, 0
        %1477 = vmatprep.subr.bf16.mxu0 0
        %1478 = vmatpush1.bf16.xpose.msra.mxu0 0
        %1479 = vmatprep.subr.bf16.mxu0 0
        %1480 = vmatpush1.bf16.xpose.msra.mxu0 0
        %1481 = vmatprep.subr.bf16.mxu0 0
        %1482 = vmatpush1.bf16.xpose.msra.mxu0 0
        %1483 = vmatprep.subr.bf16.mxu0 0
        %1484 = vmatpush1.bf16.xpose.msra.mxu0 0
        %1485 = vmatprep.subr.bf16.mxu0 0
        %1486 = vmatpush1.bf16.xpose.msra.mxu0 0
        %1487 = vmatprep.subr.bf16.mxu0 0
        %1488 = vmatpush1.bf16.xpose.msra.mxu0 0
        %1489 = vmatprep.subr.bf16.mxu0 0
        %1490 = vmatpush1.bf16.xpose.msra.mxu0 0
        %1491 = vmatprep.subr.bf16.mxu0 0
        %1492 = vmatpush1.bf16.xpose.msra.mxu0 %v1475
        %1493 = vmatprep.subr.bf16.mxu0 0
        %1494 = vmatpush2.bf16.xpose.msra.mxu0 0
        %1495 = vmatprep.subr.bf16.mxu0 0
        %1496 = vmatpush2.bf16.xpose.msra.mxu0 0
        %1497 = vmatprep.subr.bf16.mxu0 0
        %1498 = vmatpush2.bf16.xpose.msra.mxu0 0
        %1499 = vmatprep.subr.bf16.mxu0 0
        %1500 = vmatpush2.bf16.xpose.msra.mxu0 0
        %1501 = vmatprep.subr.bf16.mxu0 0
        %1502 = vmatpush2.bf16.xpose.msra.mxu0 0
        %1503 = vmatprep.subr.bf16.mxu0 0
        %1504 = vmatpush2.bf16.xpose.msra.mxu0 0
        %1505 = vmatprep.subr.bf16.mxu0 0
        %1506 = vmatpush2.bf16.xpose.msra.mxu0 0
        %1507 = vmatprep.subr.bf16.mxu0 0
        %1508 = vmatpush2.bf16.xpose.msra.mxu0 0
        %1509 = vmatprep.mubr.bf16.mxu0 0
        %1510 = vmatmul.mubr.bf16.gmra.mxu0 %v1472
        %v1511 = vpop.f32.mrf.mxu0
        %v1512 = vadd.f32 0.0, %v1511
        %v1513 = vpop.f32.mrf.mxu0
        %v1514 = vpop.f32.mrf.mxu0
        %v1515 = vpop.f32.mrf.mxu0
        %1516 = vdwg.mxu0
        %v1517 = vmul.f32 %v1462, 0.35355338
        %v1518 = vmul.f32 %v1512, 0.35355338
        %v1519 = vadd.f32 %v1517, %v967
        %v1520 = vadd.f32 %v1518, %v971
        %v1521 = vsel %vm864, %v1519, -inf
        %1522 = vmax.xlane.f32.xlu0 %v1521
        %v1523 = vpop.xlane.xlu0 %1522
        %v1524 = vsel %vm864, %v1520, -inf
        %1525 = vmax.xlane.f32.xlu0 %v1524
        %v1526 = vpop.xlane.xlu0 %1525
        %v1527 = vsub.f32 %v1519, %v1523
        %v1528 = vsub.f32 %v1520, %v1526
        %v1529 = vmul.f32 %v1527, 1.442695
        %v1530 = vpow.pop %v1529
        %v1531 = vmul.f32 %v1528, 1.442695
        %v1532 = vpow.pop %v1531
        %v1533 = vsel %vm864, %v1530, 0.0
        %1534 = vadd.xlane.f32.xlu0 %v1533
        %v1535 = vpop.xlane.xlu0 %1534
        %v1536 = vsel %vm864, %v1532, 0.0
        %1537 = vadd.xlane.f32.xlu0 %v1536
        %v1538 = vpop.xlane.xlu0 %1537
        %v1539 = vrcp.pop %v1535
        %v1540 = vrcp.pop %v1538
        %v1541 = vmul.f32 %v1530, %v1539
        %v1542 = vmul.f32 %v1532, %v1540
        %v1543 = vpack.c.bf16 %v1541, %v1541
        %v1544 = vpack.c.bf16 %v1542, %v1542
        %1545 = vrot.lane.b32.xlu0 %v859, 48
        %v1546 = vpop.permute.xlu0 %1545
        %v1548 = vsel %vm864, %v1543, 0
        %v1551 = vsel %vm1005, %v1546, 0
        %1553 = vmatprep.subr.bf16.mxu0 0
        %1554 = vmatpush1.bf16.msra.mxu0 0
        %1555 = vmatprep.subr.bf16.mxu0 0
        %1556 = vmatpush1.bf16.msra.mxu0 0
        %1557 = vmatprep.subr.bf16.mxu0 0
        %1558 = vmatpush1.bf16.msra.mxu0 0
        %1559 = vmatprep.subr.bf16.mxu0 0
        %1560 = vmatpush1.bf16.msra.mxu0 0
        %1561 = vmatprep.subr.bf16.mxu0 0
        %1562 = vmatpush1.bf16.msra.mxu0 0
        %1563 = vmatprep.subr.bf16.mxu0 0
        %1564 = vmatpush1.bf16.msra.mxu0 0
        %1565 = vmatprep.subr.bf16.mxu0 0
        %1566 = vmatpush1.bf16.msra.mxu0 0
        %1567 = vmatprep.subr.bf16.mxu0 0
        %1568 = vmatpush1.bf16.msra.mxu0 %v1551
        %1569 = vmatprep.subr.bf16.mxu0 0
        %1570 = vmatpush2.bf16.msra.mxu0 0
        %1571 = vmatprep.subr.bf16.mxu0 0
        %1572 = vmatpush2.bf16.msra.mxu0 0
        %1573 = vmatprep.subr.bf16.mxu0 0
        %1574 = vmatpush2.bf16.msra.mxu0 0
        %1575 = vmatprep.subr.bf16.mxu0 0
        %1576 = vmatpush2.bf16.msra.mxu0 0
        %1577 = vmatprep.subr.bf16.mxu0 0
        %1578 = vmatpush2.bf16.msra.mxu0 0
        %1579 = vmatprep.subr.bf16.mxu0 0
        %1580 = vmatpush2.bf16.msra.mxu0 0
        %1581 = vmatprep.subr.bf16.mxu0 0
        %1582 = vmatpush2.bf16.msra.mxu0 0
        %1583 = vmatprep.subr.bf16.mxu0 0
        %1584 = vmatpush2.bf16.msra.mxu0 0
        %1585 = vmatprep.mubr.bf16.mxu0 0
        %1586 = vmatmul.mubr.bf16.gmra.mxu0 %v1548
        %v1587 = vpop.f32.mrf.mxu0
        %v1588 = vadd.f32 0.0, %v1587
        %v1589 = vpop.f32.mrf.mxu0
        %v1590 = vpop.f32.mrf.mxu0
        %v1591 = vpop.f32.mrf.mxu0
        %1592 = vdwg.mxu0
        %1593 = vrot.lane.b32.xlu0 %v860, 48
        %v1594 = vpop.permute.xlu0 %1593
        %v1596 = vsel %vm864, %v1544, 0
        %v1599 = vsel %vm1005, %v1594, 0
        %1601 = vmatprep.subr.bf16.mxu0 0
        %1602 = vmatpush1.bf16.msra.mxu0 0
        %1603 = vmatprep.subr.bf16.mxu0 0
        %1604 = vmatpush1.bf16.msra.mxu0 0
        %1605 = vmatprep.subr.bf16.mxu0 0
        %1606 = vmatpush1.bf16.msra.mxu0 0
        %1607 = vmatprep.subr.bf16.mxu0 0
        %1608 = vmatpush1.bf16.msra.mxu0 0
        %1609 = vmatprep.subr.bf16.mxu0 0
        %1610 = vmatpush1.bf16.msra.mxu0 0
        %1611 = vmatprep.subr.bf16.mxu0 0
        %1612 = vmatpush1.bf16.msra.mxu0 0
        %1613 = vmatprep.subr.bf16.mxu0 0
        %1614 = vmatpush1.bf16.msra.mxu0 0
        %1615 = vmatprep.subr.bf16.mxu0 0
        %1616 = vmatpush1.bf16.msra.mxu0 %v1599
        %1617 = vmatprep.subr.bf16.mxu0 0
        %1618 = vmatpush2.bf16.msra.mxu0 0
        %1619 = vmatprep.subr.bf16.mxu0 0
        %1620 = vmatpush2.bf16.msra.mxu0 0
        %1621 = vmatprep.subr.bf16.mxu0 0
        %1622 = vmatpush2.bf16.msra.mxu0 0
        %1623 = vmatprep.subr.bf16.mxu0 0
        %1624 = vmatpush2.bf16.msra.mxu0 0
        %1625 = vmatprep.subr.bf16.mxu0 0
        %1626 = vmatpush2.bf16.msra.mxu0 0
        %1627 = vmatprep.subr.bf16.mxu0 0
        %1628 = vmatpush2.bf16.msra.mxu0 0
        %1629 = vmatprep.subr.bf16.mxu0 0
        %1630 = vmatpush2.bf16.msra.mxu0 0
        %1631 = vmatprep.subr.bf16.mxu0 0
        %1632 = vmatpush2.bf16.msra.mxu0 0
        %1633 = vmatprep.mubr.bf16.mxu0 0
        %1634 = vmatmul.mubr.bf16.gmra.mxu0 %v1596
        %v1635 = vpop.f32.mrf.mxu0
        %v1636 = vadd.f32 0.0, %v1635
        %v1637 = vpop.f32.mrf.mxu0
        %v1638 = vpop.f32.mrf.mxu0
        %v1639 = vpop.f32.mrf.mxu0
        %1640 = vdwg.mxu0
        %v1641 = vpack.c.bf16 %v1636, %v1588
        %v1643 = vsel %vm864, %v1641, 0
        %v1646 = vsel %vm1005, %v857, 0
        %1648 = vmatprep.subr.bf16.mxu0 0
        %1649 = vmatpush1.bf16.msra.mxu0 0
        %1650 = vmatprep.subr.bf16.mxu0 0
        %1651 = vmatpush1.bf16.msra.mxu0 0
        %1652 = vmatprep.subr.bf16.mxu0 0
        %1653 = vmatpush1.bf16.msra.mxu0 0
        %1654 = vmatprep.subr.bf16.mxu0 0
        %1655 = vmatpush1.bf16.msra.mxu0 0
        %1656 = vmatprep.subr.bf16.mxu0 0
        %1657 = vmatpush1.bf16.msra.mxu0 0
        %1658 = vmatprep.subr.bf16.mxu0 0
        %1659 = vmatpush1.bf16.msra.mxu0 0
        %1660 = vmatprep.subr.bf16.mxu0 0
        %1661 = vmatpush1.bf16.msra.mxu0 0
        %1662 = vmatprep.subr.bf16.mxu0 0
        %1663 = vmatpush1.bf16.msra.mxu0 %v1646
        %1664 = vmatprep.subr.bf16.mxu0 0
        %1665 = vmatpush2.bf16.msra.mxu0 0
        %1666 = vmatprep.subr.bf16.mxu0 0
        %1667 = vmatpush2.bf16.msra.mxu0 0
        %1668 = vmatprep.subr.bf16.mxu0 0
        %1669 = vmatpush2.bf16.msra.mxu0 0
        %1670 = vmatprep.subr.bf16.mxu0 0
        %1671 = vmatpush2.bf16.msra.mxu0 0
        %1672 = vmatprep.subr.bf16.mxu0 0
        %1673 = vmatpush2.bf16.msra.mxu0 0
        %1674 = vmatprep.subr.bf16.mxu0 0
        %1675 = vmatpush2.bf16.msra.mxu0 0
        %1676 = vmatprep.subr.bf16.mxu0 0
        %1677 = vmatpush2.bf16.msra.mxu0 0
        %1678 = vmatprep.subr.bf16.mxu0 0
        %1679 = vmatpush2.bf16.msra.mxu0 0
        %1680 = vmatprep.mubr.bf16.mxu0 0
        %1681 = vmatmul.mubr.bf16.gmra.mxu0 %v1643
        %v1682 = vpop.f32.mrf.mxu0
        %v1683 = vadd.f32 0.0, %v1682
        %v1684 = vpop.f32.mrf.mxu0
        %v1685 = vpop.f32.mrf.mxu0
        %v1686 = vadd.f32 0.0, %v1685
        %v1687 = vpop.f32.mrf.mxu0
        %1688 = vdwg.mxu0
        %v1689 = vadd.f32 %v1411, %v1683
        %v1690 = vadd.f32 %v1414, %v1686
        %1691 = vrot.lane.b32.xlu0 %v859, 104
        %v1692 = vpop.permute.xlu0 %1691
        %1693 = vrot.lane.b32.xlu0 %v859, 72
        %v1694 = vpop.permute.xlu0 %1693
        %v1696 = vsel %vm864, %v1692, 0
        %v1699 = vsel %vm864, %v1694, 0
        %1701 = vmatprep.subr.bf16.mxu0 0
        %1702 = vmatpush1.bf16.xpose.msra.mxu0 0
        %1703 = vmatprep.subr.bf16.mxu0 0
        %1704 = vmatpush1.bf16.xpose.msra.mxu0 0
        %1705 = vmatprep.subr.bf16.mxu0 0
        %1706 = vmatpush1.bf16.xpose.msra.mxu0 0
        %1707 = vmatprep.subr.bf16.mxu0 0
        %1708 = vmatpush1.bf16.xpose.msra.mxu0 0
        %1709 = vmatprep.subr.bf16.mxu0 0
        %1710 = vmatpush1.bf16.xpose.msra.mxu0 0
        %1711 = vmatprep.subr.bf16.mxu0 0
        %1712 = vmatpush1.bf16.xpose.msra.mxu0 0
        %1713 = vmatprep.subr.bf16.mxu0 0
        %1714 = vmatpush1.bf16.xpose.msra.mxu0 0
        %1715 = vmatprep.subr.bf16.mxu0 0
        %1716 = vmatpush1.bf16.xpose.msra.mxu0 %v1699
        %1717 = vmatprep.subr.bf16.mxu0 0
        %1718 = vmatpush2.bf16.xpose.msra.mxu0 0
        %1719 = vmatprep.subr.bf16.mxu0 0
        %1720 = vmatpush2.bf16.xpose.msra.mxu0 0
        %1721 = vmatprep.subr.bf16.mxu0 0
        %1722 = vmatpush2.bf16.xpose.msra.mxu0 0
        %1723 = vmatprep.subr.bf16.mxu0 0
        %1724 = vmatpush2.bf16.xpose.msra.mxu0 0
        %1725 = vmatprep.subr.bf16.mxu0 0
        %1726 = vmatpush2.bf16.xpose.msra.mxu0 0
        %1727 = vmatprep.subr.bf16.mxu0 0
        %1728 = vmatpush2.bf16.xpose.msra.mxu0 0
        %1729 = vmatprep.subr.bf16.mxu0 0
        %1730 = vmatpush2.bf16.xpose.msra.mxu0 0
        %1731 = vmatprep.subr.bf16.mxu0 0
        %1732 = vmatpush2.bf16.xpose.msra.mxu0 0
        %1733 = vmatprep.mubr.bf16.mxu0 0
        %1734 = vmatmul.mubr.bf16.gmra.mxu0 %v1696
        %v1735 = vpop.f32.mrf.mxu0
        %v1736 = vadd.f32 0.0, %v1735
        %v1737 = vpop.f32.mrf.mxu0
        %v1738 = vpop.f32.mrf.mxu0
        %v1739 = vpop.f32.mrf.mxu0
        %1740 = vdwg.mxu0
        %1741 = vrot.lane.b32.xlu0 %v860, 104
        %v1742 = vpop.permute.xlu0 %1741
        %1743 = vrot.lane.b32.xlu0 %v860, 72
        %v1744 = vpop.permute.xlu0 %1743
        %v1746 = vsel %vm864, %v1742, 0
        %v1749 = vsel %vm864, %v1744, 0
        %1751 = vmatprep.subr.bf16.mxu0 0
        %1752 = vmatpush1.bf16.xpose.msra.mxu0 0
        %1753 = vmatprep.subr.bf16.mxu0 0
        %1754 = vmatpush1.bf16.xpose.msra.mxu0 0
        %1755 = vmatprep.subr.bf16.mxu0 0
        %1756 = vmatpush1.bf16.xpose.msra.mxu0 0
        %1757 = vmatprep.subr.bf16.mxu0 0
        %1758 = vmatpush1.bf16.xpose.msra.mxu0 0
        %1759 = vmatprep.subr.bf16.mxu0 0
        %1760 = vmatpush1.bf16.xpose.msra.mxu0 0
        %1761 = vmatprep.subr.bf16.mxu0 0
        %1762 = vmatpush1.bf16.xpose.msra.mxu0 0
        %1763 = vmatprep.subr.bf16.mxu0 0
        %1764 = vmatpush1.bf16.xpose.msra.mxu0 0
        %1765 = vmatprep.subr.bf16.mxu0 0
        %1766 = vmatpush1.bf16.xpose.msra.mxu0 %v1749
        %1767 = vmatprep.subr.bf16.mxu0 0
        %1768 = vmatpush2.bf16.xpose.msra.mxu0 0
        %1769 = vmatprep.subr.bf16.mxu0 0
        %1770 = vmatpush2.bf16.xpose.msra.mxu0 0
        %1771 = vmatprep.subr.bf16.mxu0 0
        %1772 = vmatpush2.bf16.xpose.msra.mxu0 0
        %1773 = vmatprep.subr.bf16.mxu0 0
        %1774 = vmatpush2.bf16.xpose.msra.mxu0 0
        %1775 = vmatprep.subr.bf16.mxu0 0
        %1776 = vmatpush2.bf16.xpose.msra.mxu0 0
        %1777 = vmatprep.subr.bf16.mxu0 0
        %1778 = vmatpush2.bf16.xpose.msra.mxu0 0
        %1779 = vmatprep.subr.bf16.mxu0 0
        %1780 = vmatpush2.bf16.xpose.msra.mxu0 0
        %1781 = vmatprep.subr.bf16.mxu0 0
        %1782 = vmatpush2.bf16.xpose.msra.mxu0 0
        %1783 = vmatprep.mubr.bf16.mxu0 0
        %1784 = vmatmul.mubr.bf16.gmra.mxu0 %v1746
        %v1785 = vpop.f32.mrf.mxu0
        %v1786 = vadd.f32 0.0, %v1785
        %v1787 = vpop.f32.mrf.mxu0
        %v1788 = vpop.f32.mrf.mxu0
        %v1789 = vpop.f32.mrf.mxu0
        %1790 = vdwg.mxu0
        %v1791 = vmul.f32 %v1736, 0.35355338
        %v1792 = vmul.f32 %v1786, 0.35355338
        %v1793 = vadd.f32 %v1791, %v967
        %v1794 = vadd.f32 %v1792, %v971
        %v1795 = vsel %vm864, %v1793, -inf
        %1796 = vmax.xlane.f32.xlu0 %v1795
        %v1797 = vpop.xlane.xlu0 %1796
        %v1798 = vsel %vm864, %v1794, -inf
        %1799 = vmax.xlane.f32.xlu0 %v1798
        %v1800 = vpop.xlane.xlu0 %1799
        %v1801 = vsub.f32 %v1793, %v1797
        %v1802 = vsub.f32 %v1794, %v1800
        %v1803 = vmul.f32 %v1801, 1.442695
        %v1804 = vpow.pop %v1803
        %v1805 = vmul.f32 %v1802, 1.442695
        %v1806 = vpow.pop %v1805
        %v1807 = vsel %vm864, %v1804, 0.0
        %1808 = vadd.xlane.f32.xlu0 %v1807
        %v1809 = vpop.xlane.xlu0 %1808
        %v1810 = vsel %vm864, %v1806, 0.0
        %1811 = vadd.xlane.f32.xlu0 %v1810
        %v1812 = vpop.xlane.xlu0 %1811
        %v1813 = vrcp.pop %v1809
        %v1814 = vrcp.pop %v1812
        %v1815 = vmul.f32 %v1804, %v1813
        %v1816 = vmul.f32 %v1806, %v1814
        %v1817 = vpack.c.bf16 %v1815, %v1815
        %v1818 = vpack.c.bf16 %v1816, %v1816
        %1819 = vrot.lane.b32.xlu0 %v859, 40
        %v1820 = vpop.permute.xlu0 %1819
        %v1822 = vsel %vm864, %v1817, 0
        %v1825 = vsel %vm1005, %v1820, 0
        %1827 = vmatprep.subr.bf16.mxu0 0
        %1828 = vmatpush1.bf16.msra.mxu0 0
        %1829 = vmatprep.subr.bf16.mxu0 0
        %1830 = vmatpush1.bf16.msra.mxu0 0
        %1831 = vmatprep.subr.bf16.mxu0 0
        %1832 = vmatpush1.bf16.msra.mxu0 0
        %1833 = vmatprep.subr.bf16.mxu0 0
        %1834 = vmatpush1.bf16.msra.mxu0 0
        %1835 = vmatprep.subr.bf16.mxu0 0
        %1836 = vmatpush1.bf16.msra.mxu0 0
        %1837 = vmatprep.subr.bf16.mxu0 0
        %1838 = vmatpush1.bf16.msra.mxu0 0
        %1839 = vmatprep.subr.bf16.mxu0 0
        %1840 = vmatpush1.bf16.msra.mxu0 0
        %1841 = vmatprep.subr.bf16.mxu0 0
        %1842 = vmatpush1.bf16.msra.mxu0 %v1825
        %1843 = vmatprep.subr.bf16.mxu0 0
        %1844 = vmatpush2.bf16.msra.mxu0 0
        %1845 = vmatprep.subr.bf16.mxu0 0
        %1846 = vmatpush2.bf16.msra.mxu0 0
        %1847 = vmatprep.subr.bf16.mxu0 0
        %1848 = vmatpush2.bf16.msra.mxu0 0
        %1849 = vmatprep.subr.bf16.mxu0 0
        %1850 = vmatpush2.bf16.msra.mxu0 0
        %1851 = vmatprep.subr.bf16.mxu0 0
        %1852 = vmatpush2.bf16.msra.mxu0 0
        %1853 = vmatprep.subr.bf16.mxu0 0
        %1854 = vmatpush2.bf16.msra.mxu0 0
        %1855 = vmatprep.subr.bf16.mxu0 0
        %1856 = vmatpush2.bf16.msra.mxu0 0
        %1857 = vmatprep.subr.bf16.mxu0 0
        %1858 = vmatpush2.bf16.msra.mxu0 0
        %1859 = vmatprep.mubr.bf16.mxu0 0
        %1860 = vmatmul.mubr.bf16.gmra.mxu0 %v1822
        %v1861 = vpop.f32.mrf.mxu0
        %v1862 = vadd.f32 0.0, %v1861
        %v1863 = vpop.f32.mrf.mxu0
        %v1864 = vpop.f32.mrf.mxu0
        %v1865 = vpop.f32.mrf.mxu0
        %1866 = vdwg.mxu0
        %1867 = vrot.lane.b32.xlu0 %v860, 40
        %v1868 = vpop.permute.xlu0 %1867
        %v1870 = vsel %vm864, %v1818, 0
        %v1873 = vsel %vm1005, %v1868, 0
        %1875 = vmatprep.subr.bf16.mxu0 0
        %1876 = vmatpush1.bf16.msra.mxu0 0
        %1877 = vmatprep.subr.bf16.mxu0 0
        %1878 = vmatpush1.bf16.msra.mxu0 0
        %1879 = vmatprep.subr.bf16.mxu0 0
        %1880 = vmatpush1.bf16.msra.mxu0 0
        %1881 = vmatprep.subr.bf16.mxu0 0
        %1882 = vmatpush1.bf16.msra.mxu0 0
        %1883 = vmatprep.subr.bf16.mxu0 0
        %1884 = vmatpush1.bf16.msra.mxu0 0
        %1885 = vmatprep.subr.bf16.mxu0 0
        %1886 = vmatpush1.bf16.msra.mxu0 0
        %1887 = vmatprep.subr.bf16.mxu0 0
        %1888 = vmatpush1.bf16.msra.mxu0 0
        %1889 = vmatprep.subr.bf16.mxu0 0
        %1890 = vmatpush1.bf16.msra.mxu0 %v1873
        %1891 = vmatprep.subr.bf16.mxu0 0
        %1892 = vmatpush2.bf16.msra.mxu0 0
        %1893 = vmatprep.subr.bf16.mxu0 0
        %1894 = vmatpush2.bf16.msra.mxu0 0
        %1895 = vmatprep.subr.bf16.mxu0 0
        %1896 = vmatpush2.bf16.msra.mxu0 0
        %1897 = vmatprep.subr.bf16.mxu0 0
        %1898 = vmatpush2.bf16.msra.mxu0 0
        %1899 = vmatprep.subr.bf16.mxu0 0
        %1900 = vmatpush2.bf16.msra.mxu0 0
        %1901 = vmatprep.subr.bf16.mxu0 0
        %1902 = vmatpush2.bf16.msra.mxu0 0
        %1903 = vmatprep.subr.bf16.mxu0 0
        %1904 = vmatpush2.bf16.msra.mxu0 0
        %1905 = vmatprep.subr.bf16.mxu0 0
        %1906 = vmatpush2.bf16.msra.mxu0 0
        %1907 = vmatprep.mubr.bf16.mxu0 0
        %1908 = vmatmul.mubr.bf16.gmra.mxu0 %v1870
        %v1909 = vpop.f32.mrf.mxu0
        %v1910 = vadd.f32 0.0, %v1909
        %v1911 = vpop.f32.mrf.mxu0
        %v1912 = vpop.f32.mrf.mxu0
        %v1913 = vpop.f32.mrf.mxu0
        %1914 = vdwg.mxu0
        %v1915 = vpack.c.bf16 %v1910, %v1862
        %v1917 = vsel %vm864, %v1915, 0
        %v1920 = vsel %vm1005, %v858, 0
        %1922 = vmatprep.subr.bf16.mxu0 0
        %1923 = vmatpush1.bf16.msra.mxu0 0
        %1924 = vmatprep.subr.bf16.mxu0 0
        %1925 = vmatpush1.bf16.msra.mxu0 0
        %1926 = vmatprep.subr.bf16.mxu0 0
        %1927 = vmatpush1.bf16.msra.mxu0 0
        %1928 = vmatprep.subr.bf16.mxu0 0
        %1929 = vmatpush1.bf16.msra.mxu0 0
        %1930 = vmatprep.subr.bf16.mxu0 0
        %1931 = vmatpush1.bf16.msra.mxu0 0
        %1932 = vmatprep.subr.bf16.mxu0 0
        %1933 = vmatpush1.bf16.msra.mxu0 0
        %1934 = vmatprep.subr.bf16.mxu0 0
        %1935 = vmatpush1.bf16.msra.mxu0 0
        %1936 = vmatprep.subr.bf16.mxu0 0
        %1937 = vmatpush1.bf16.msra.mxu0 %v1920
        %1938 = vmatprep.subr.bf16.mxu0 0
        %1939 = vmatpush2.bf16.msra.mxu0 0
        %1940 = vmatprep.subr.bf16.mxu0 0
        %1941 = vmatpush2.bf16.msra.mxu0 0
        %1942 = vmatprep.subr.bf16.mxu0 0
        %1943 = vmatpush2.bf16.msra.mxu0 0
        %1944 = vmatprep.subr.bf16.mxu0 0
        %1945 = vmatpush2.bf16.msra.mxu0 0
        %1946 = vmatprep.subr.bf16.mxu0 0
        %1947 = vmatpush2.bf16.msra.mxu0 0
        %1948 = vmatprep.subr.bf16.mxu0 0
        %1949 = vmatpush2.bf16.msra.mxu0 0
        %1950 = vmatprep.subr.bf16.mxu0 0
        %1951 = vmatpush2.bf16.msra.mxu0 0
        %1952 = vmatprep.subr.bf16.mxu0 0
        %1953 = vmatpush2.bf16.msra.mxu0 0
        %1954 = vmatprep.mubr.bf16.mxu0 0
        %1955 = vmatmul.mubr.bf16.gmra.mxu0 %v1917
        %v1956 = vpop.f32.mrf.mxu0
        %v1957 = vadd.f32 0.0, %v1956
        %v1958 = vpop.f32.mrf.mxu0
        %v1959 = vpop.f32.mrf.mxu0
        %v1960 = vadd.f32 0.0, %v1959
        %v1961 = vpop.f32.mrf.mxu0
        %1962 = vdwg.mxu0
        %v1963 = vadd.f32 %v1689, %v1957
        %v1964 = vadd.f32 %v1690, %v1960
        %v1965 = vld [vmem:[%s738] sm:$0x1]
        %v1967 = vlaneseq
        %v1968 = vshrl.u32 %v1967, 7
        %v1969 = vsub.s32 0, %v1968
        %v1970 = vrot.slane %v1965, %v1969
        %v1972 = vadd.f32 %v1963, %v1970
        %v1973 = vadd.f32 %v1964, %v1970
        %v1974 = vadd.f32 %v782, %v1972
        %v1975 = vadd.f32 %v783, %v1973
        %v1976 = vld [vmem:[%s741] sm:$0x1]
        %v1977 = vld [vmem:[%s744] sm:$0x1]
        %v1978 = vsel %vm810, %v1974, 0.0
        %1979 = vadd.xlane.f32.xlu0 %v1978
        %v1980 = vpop.xlane.xlu0 %1979
        %v1981 = vsel %vm810, %v1975, 0.0
        %1982 = vadd.xlane.f32.xlu0 %v1981
        %v1983 = vpop.xlane.xlu0 %1982
        %v1984 = vrcp.pop 32.0
        %v1985 = vmul.f32 %v1980, %v1984
        %v1986 = vmul.f32 %v1983, %v1984
        %v1987 = vsub.f32 %v1974, %v1985
        %v1988 = vsub.f32 %v1975, %v1986
        %v1989 = vmul.f32 %v1987, %v1987
        %v1990 = vmul.f32 %v1988, %v1988
        %v1991 = vsel %vm810, %v1989, 0.0
        %1992 = vadd.xlane.f32.xlu0 %v1991
        %v1993 = vpop.xlane.xlu0 %1992
        %v1994 = vsel %vm810, %v1990, 0.0
        %1995 = vadd.xlane.f32.xlu0 %v1994
        %v1996 = vpop.xlane.xlu0 %1995
        %v1997 = vmul.f32 %v1993, %v1984
        %v1998 = vmul.f32 %v1996, %v1984
        %v1999 = vadd.f32 %v1997, 1e-05
        %v2000 = vadd.f32 %v1998, 1e-05
        %v2001 = vrsqrt.pop %v1999
        %v2002 = vrsqrt.pop %v2000
        %v2003 = vmul.f32 %v1987, %v2001
        %v2004 = vmul.f32 %v1988, %v2002
        %v2006 = vlaneseq
        %v2007 = vshrl.u32 %v2006, 7
        %v2008 = vsub.s32 0, %v2007
        %v2009 = vrot.slane %v1976, %v2008
        %v2011 = vmul.f32 %v2003, %v2009
        %v2012 = vmul.f32 %v2004, %v2009
        %v2014 = vlaneseq
        %v2015 = vshrl.u32 %v2014, 7
        %v2016 = vsub.s32 0, %v2015
        %v2017 = vrot.slane %v1977, %v2016
        %v2019 = vadd.f32 %v2011, %v2017
        %v2020 = vadd.f32 %v2012, %v2017
        %v2021 = vpack.c.bf16 %v2020, %v2019
        %v2022 = vld [vmem:[%s755] sm:$0xff]
        %v2023 = vld [vmem:[%s755 + $0x8] sm:$0xff]
        %v2024 = vld [vmem:[%s755 + $0x40] sm:$0xff]
        %v2025 = vld [vmem:[%s755 + $0x48] sm:$0xff]
        %v2026 = vld [vmem:[%s755 + $0x80] sm:$0xff]
        %v2027 = vld [vmem:[%s755 + $0x88] sm:$0xff]
        %v2028 = vld [vmem:[%s755 + $0xc0] sm:$0xff]
        %v2029 = vld [vmem:[%s755 + $0xc8] sm:$0xff]
        %v2030 = vld [vmem:[%s759] sm:$0xf]
        %v2032 = vlaneseq
        %v2033 = vshrl.u32 %v2032, 7
        %v2034 = vsub.s32 0, %v2033
        %v2035 = vrot.slane %v2030, %v2034
        %v2036 = vlaneseq
        %v2037 = vshrl.u32 %v2036, 7
        %v2038 = vsub.s32 1, %v2037
        %v2039 = vrot.slane %v2030, %v2038
        %v2040 = vlaneseq
        %v2041 = vshrl.u32 %v2040, 7
        %v2042 = vsub.s32 2, %v2041
        %v2043 = vrot.slane %v2030, %v2042
        %v2044 = vlaneseq
        %v2045 = vshrl.u32 %v2044, 7
        %v2046 = vsub.s32 3, %v2045
        %v2047 = vrot.slane %v2030, %v2046
        %v2060 = vunpack.c.l.b16 %v2022
        %v2061 = vunpack.c.h.b16 %v2022
        %v2062 = vunpack.c.l.b16 %v2023
        %v2063 = vunpack.c.h.b16 %v2023
        %v2064 = vunpack.c.l.b16 %v2024
        %v2065 = vunpack.c.h.b16 %v2024
        %v2066 = vunpack.c.l.b16 %v2025
        %v2067 = vunpack.c.h.b16 %v2025
        %v2068 = vunpack.c.l.b16 %v2026
        %v2069 = vunpack.c.h.b16 %v2026
        %v2070 = vunpack.c.l.b16 %v2027
        %v2071 = vunpack.c.h.b16 %v2027
        %v2072 = vunpack.c.l.b16 %v2028
        %v2073 = vunpack.c.h.b16 %v2028
        %v2074 = vunpack.c.l.b16 %v2029
        %v2075 = vunpack.c.h.b16 %v2029
        %v2076 = vpack.c.b16 %v2064, %v2060
        %v2077 = vpack.c.b16 %v2065, %v2061
        %v2078 = vpack.c.b16 %v2066, %v2062
        %v2079 = vpack.c.b16 %v2067, %v2063
        %v2080 = vpack.c.b16 %v2072, %v2068
        %v2081 = vpack.c.b16 %v2073, %v2069
        %v2082 = vpack.c.b16 %v2074, %v2070
        %v2083 = vpack.c.b16 %v2075, %v2071
        %v2093 = vsel %vm810, %v2021, 0
        %2095 = vmatprep.subr.bf16.mxu0 0
        %2096 = vmatpush1.bf16.msra.mxu0 0
        %2097 = vmatprep.subr.bf16.mxu0 0
        %2098 = vmatpush1.bf16.msra.mxu0 0
        %2099 = vmatprep.subr.bf16.mxu0 0
        %2100 = vmatpush1.bf16.msra.mxu0 0
        %2101 = vmatprep.subr.bf16.mxu0 0
        %2102 = vmatpush1.bf16.msra.mxu0 0
        %2103 = vmatprep.subr.bf16.mxu0 0
        %2104 = vmatpush1.bf16.msra.mxu0 0
        %2105 = vmatprep.subr.bf16.mxu0 0
        %2106 = vmatpush1.bf16.msra.mxu0 0
        %2107 = vmatprep.subr.bf16.mxu0 %v2081
        %2108 = vmatpush1.bf16.msra.mxu0 %v2080
        %2109 = vmatprep.subr.bf16.mxu0 %v2077
        %2110 = vmatpush1.bf16.msra.mxu0 %v2076
        %2111 = vmatprep.subr.bf16.mxu0 0
        %2112 = vmatpush2.bf16.msra.mxu0 0
        %2113 = vmatprep.subr.bf16.mxu0 0
        %2114 = vmatpush2.bf16.msra.mxu0 0
        %2115 = vmatprep.subr.bf16.mxu0 0
        %2116 = vmatpush2.bf16.msra.mxu0 0
        %2117 = vmatprep.subr.bf16.mxu0 0
        %2118 = vmatpush2.bf16.msra.mxu0 0
        %2119 = vmatprep.subr.bf16.mxu0 0
        %2120 = vmatpush2.bf16.msra.mxu0 0
        %2121 = vmatprep.subr.bf16.mxu0 0
        %2122 = vmatpush2.bf16.msra.mxu0 0
        %2123 = vmatprep.subr.bf16.mxu0 0
        %2124 = vmatpush2.bf16.msra.mxu0 0
        %2125 = vmatprep.subr.bf16.mxu0 0
        %2126 = vmatpush2.bf16.msra.mxu0 0
        %2127 = vmatprep.mubr.bf16.mxu0 0
        %2128 = vmatmul.mubr.bf16.gmra.mxu0 %v2093
        %v2129 = vpop.f32.mrf.mxu0
        %v2130 = vadd.f32 %v2035, %v2129
        %v2131 = vpop.f32.mrf.mxu0
        %v2132 = vadd.f32 %v2039, %v2131
        %v2133 = vpop.f32.mrf.mxu0
        %v2134 = vadd.f32 %v2035, %v2133
        %v2135 = vpop.f32.mrf.mxu0
        %v2136 = vadd.f32 %v2039, %v2135
        %2137 = vdwg.mxu0
        %2138 = vmatprep.subr.bf16.mxu0 0
        %2139 = vmatpush1.bf16.msra.mxu0 0
        %2140 = vmatprep.subr.bf16.mxu0 0
        %2141 = vmatpush1.bf16.msra.mxu0 0
        %2142 = vmatprep.subr.bf16.mxu0 0
        %2143 = vmatpush1.bf16.msra.mxu0 0
        %2144 = vmatprep.subr.bf16.mxu0 0
        %2145 = vmatpush1.bf16.msra.mxu0 0
        %2146 = vmatprep.subr.bf16.mxu0 0
        %2147 = vmatpush1.bf16.msra.mxu0 0
        %2148 = vmatprep.subr.bf16.mxu0 0
        %2149 = vmatpush1.bf16.msra.mxu0 0
        %2150 = vmatprep.subr.bf16.mxu0 %v2083
        %2151 = vmatpush1.bf16.msra.mxu0 %v2082
        %2152 = vmatprep.subr.bf16.mxu0 %v2079
        %2153 = vmatpush1.bf16.msra.mxu0 %v2078
        %2154 = vmatprep.subr.bf16.mxu0 0
        %2155 = vmatpush2.bf16.msra.mxu0 0
        %2156 = vmatprep.subr.bf16.mxu0 0
        %2157 = vmatpush2.bf16.msra.mxu0 0
        %2158 = vmatprep.subr.bf16.mxu0 0
        %2159 = vmatpush2.bf16.msra.mxu0 0
        %2160 = vmatprep.subr.bf16.mxu0 0
        %2161 = vmatpush2.bf16.msra.mxu0 0
        %2162 = vmatprep.subr.bf16.mxu0 0
        %2163 = vmatpush2.bf16.msra.mxu0 0
        %2164 = vmatprep.subr.bf16.mxu0 0
        %2165 = vmatpush2.bf16.msra.mxu0 0
        %2166 = vmatprep.subr.bf16.mxu0 0
        %2167 = vmatpush2.bf16.msra.mxu0 0
        %2168 = vmatprep.subr.bf16.mxu0 0
        %2169 = vmatpush2.bf16.msra.mxu0 0
        %2170 = vmatprep.mubr.bf16.mxu0 0
        %2171 = vmatmul.mubr.bf16.gmra.mxu0 %v2093
        %v2172 = vpop.f32.mrf.mxu0
        %v2173 = vadd.f32 %v2043, %v2172
        %v2174 = vpop.f32.mrf.mxu0
        %v2175 = vadd.f32 %v2047, %v2174
        %v2176 = vpop.f32.mrf.mxu0
        %v2177 = vadd.f32 %v2043, %v2176
        %v2178 = vpop.f32.mrf.mxu0
        %v2179 = vadd.f32 %v2047, %v2178
        %2180 = vdwg.mxu0
        %v2181 = vmax.f32 %v2130, 0.0
        %v2182 = vmax.f32 %v2132, 0.0
        %v2183 = vmax.f32 %v2173, 0.0
        %v2184 = vmax.f32 %v2175, 0.0
        %v2185 = vmax.f32 %v2134, 0.0
        %v2186 = vmax.f32 %v2136, 0.0
        %v2187 = vmax.f32 %v2177, 0.0
        %v2188 = vmax.f32 %v2179, 0.0
        %v2189 = vpack.c.bf16 %v2185, %v2181
        %v2190 = vpack.c.bf16 %v2186, %v2182
        %v2191 = vpack.c.bf16 %v2187, %v2183
        %v2192 = vpack.c.bf16 %v2188, %v2184
        %v2193 = vld [vmem:[%s764] sm:$0xf]
        %v2194 = vld [vmem:[%s764 + $0x4] sm:$0xf]
        %v2195 = vld [vmem:[%s764 + $0x8] sm:$0xf]
        %v2196 = vld [vmem:[%s764 + $0xc] sm:$0xf]
        %v2197 = vld [vmem:[%s764 + $0x10] sm:$0xf]
        %v2198 = vld [vmem:[%s764 + $0x14] sm:$0xf]
        %v2199 = vld [vmem:[%s764 + $0x18] sm:$0xf]
        %v2200 = vld [vmem:[%s764 + $0x1c] sm:$0xf]
        %v2201 = vld [vmem:[%s764 + $0x20] sm:$0xf]
        %v2202 = vld [vmem:[%s764 + $0x24] sm:$0xf]
        %v2203 = vld [vmem:[%s764 + $0x28] sm:$0xf]
        %v2204 = vld [vmem:[%s764 + $0x2c] sm:$0xf]
        %v2205 = vld [vmem:[%s764 + $0x30] sm:$0xf]
        %v2206 = vld [vmem:[%s764 + $0x34] sm:$0xf]
        %v2207 = vld [vmem:[%s764 + $0x38] sm:$0xf]
        %v2208 = vld [vmem:[%s764 + $0x3c] sm:$0xf]
        %v2209 = vld [vmem:[%s764 + $0x40] sm:$0xf]
        %v2210 = vld [vmem:[%s764 + $0x44] sm:$0xf]
        %v2211 = vld [vmem:[%s764 + $0x48] sm:$0xf]
        %v2212 = vld [vmem:[%s764 + $0x4c] sm:$0xf]
        %v2213 = vld [vmem:[%s764 + $0x50] sm:$0xf]
        %v2214 = vld [vmem:[%s764 + $0x54] sm:$0xf]
        %v2215 = vld [vmem:[%s764 + $0x58] sm:$0xf]
        %v2216 = vld [vmem:[%s764 + $0x5c] sm:$0xf]
        %v2217 = vld [vmem:[%s764 + $0x60] sm:$0xf]
        %v2218 = vld [vmem:[%s764 + $0x64] sm:$0xf]
        %v2219 = vld [vmem:[%s764 + $0x68] sm:$0xf]
        %v2220 = vld [vmem:[%s764 + $0x6c] sm:$0xf]
        %v2221 = vld [vmem:[%s764 + $0x70] sm:$0xf]
        %v2222 = vld [vmem:[%s764 + $0x74] sm:$0xf]
        %v2223 = vld [vmem:[%s764 + $0x78] sm:$0xf]
        %v2224 = vld [vmem:[%s764 + $0x7c] sm:$0xf]
        %v2225 = vld [vmem:[%s764 + $0x80] sm:$0xf]
        %v2226 = vld [vmem:[%s764 + $0x84] sm:$0xf]
        %v2227 = vld [vmem:[%s764 + $0x88] sm:$0xf]
        %v2228 = vld [vmem:[%s764 + $0x8c] sm:$0xf]
        %v2229 = vld [vmem:[%s764 + $0x90] sm:$0xf]
        %v2230 = vld [vmem:[%s764 + $0x94] sm:$0xf]
        %v2231 = vld [vmem:[%s764 + $0x98] sm:$0xf]
        %v2232 = vld [vmem:[%s764 + $0x9c] sm:$0xf]
        %v2233 = vld [vmem:[%s764 + $0xa0] sm:$0xf]
        %v2234 = vld [vmem:[%s764 + $0xa4] sm:$0xf]
        %v2235 = vld [vmem:[%s764 + $0xa8] sm:$0xf]
        %v2236 = vld [vmem:[%s764 + $0xac] sm:$0xf]
        %v2237 = vld [vmem:[%s764 + $0xb0] sm:$0xf]
        %v2238 = vld [vmem:[%s764 + $0xb4] sm:$0xf]
        %v2239 = vld [vmem:[%s764 + $0xb8] sm:$0xf]
        %v2240 = vld [vmem:[%s764 + $0xbc] sm:$0xf]
        %v2241 = vld [vmem:[%s764 + $0xc0] sm:$0xf]
        %v2242 = vld [vmem:[%s764 + $0xc4] sm:$0xf]
        %v2243 = vld [vmem:[%s764 + $0xc8] sm:$0xf]
        %v2244 = vld [vmem:[%s764 + $0xcc] sm:$0xf]
        %v2245 = vld [vmem:[%s764 + $0xd0] sm:$0xf]
        %v2246 = vld [vmem:[%s764 + $0xd4] sm:$0xf]
        %v2247 = vld [vmem:[%s764 + $0xd8] sm:$0xf]
        %v2248 = vld [vmem:[%s764 + $0xdc] sm:$0xf]
        %v2249 = vld [vmem:[%s764 + $0xe0] sm:$0xf]
        %v2250 = vld [vmem:[%s764 + $0xe4] sm:$0xf]
        %v2251 = vld [vmem:[%s764 + $0xe8] sm:$0xf]
        %v2252 = vld [vmem:[%s764 + $0xec] sm:$0xf]
        %v2253 = vld [vmem:[%s764 + $0xf0] sm:$0xf]
        %v2254 = vld [vmem:[%s764 + $0xf4] sm:$0xf]
        %v2255 = vld [vmem:[%s764 + $0xf8] sm:$0xf]
        %v2256 = vld [vmem:[%s764 + $0xfc] sm:$0xf]
        %v2257 = vld [vmem:[%s755 + $0x10] sm:$0xff]
        %v2258 = vld [vmem:[%s755 + $0x18] sm:$0xff]
        %v2259 = vld [vmem:[%s755 + $0x50] sm:$0xff]
        %v2260 = vld [vmem:[%s755 + $0x58] sm:$0xff]
        %v2261 = vld [vmem:[%s755 + $0x90] sm:$0xff]
        %v2262 = vld [vmem:[%s755 + $0x98] sm:$0xff]
        %v2263 = vld [vmem:[%s755 + $0xd0] sm:$0xff]
        %v2264 = vld [vmem:[%s755 + $0xd8] sm:$0xff]
        %v2265 = vld [vmem:[%s759 + $0x4] sm:$0xf]
        %v2267 = vlaneseq
        %v2268 = vshrl.u32 %v2267, 7
        %v2269 = vsub.s32 0, %v2268
        %v2270 = vrot.slane %v2265, %v2269
        %v2271 = vlaneseq
        %v2272 = vshrl.u32 %v2271, 7
        %v2273 = vsub.s32 1, %v2272
        %v2274 = vrot.slane %v2265, %v2273
        %v2275 = vlaneseq
        %v2276 = vshrl.u32 %v2275, 7
        %v2277 = vsub.s32 2, %v2276
        %v2278 = vrot.slane %v2265, %v2277
        %v2279 = vlaneseq
        %v2280 = vshrl.u32 %v2279, 7
        %v2281 = vsub.s32 3, %v2280
        %v2282 = vrot.slane %v2265, %v2281
        %v2295 = vunpack.c.l.b16 %v2257
        %v2296 = vunpack.c.h.b16 %v2257
        %v2297 = vunpack.c.l.b16 %v2258
        %v2298 = vunpack.c.h.b16 %v2258
        %v2299 = vunpack.c.l.b16 %v2259
        %v2300 = vunpack.c.h.b16 %v2259
        %v2301 = vunpack.c.l.b16 %v2260
        %v2302 = vunpack.c.h.b16 %v2260
        %v2303 = vunpack.c.l.b16 %v2261
        %v2304 = vunpack.c.h.b16 %v2261
        %v2305 = vunpack.c.l.b16 %v2262
        %v2306 = vunpack.c.h.b16 %v2262
        %v2307 = vunpack.c.l.b16 %v2263
        %v2308 = vunpack.c.h.b16 %v2263
        %v2309 = vunpack.c.l.b16 %v2264
        %v2310 = vunpack.c.h.b16 %v2264
        %v2311 = vpack.c.b16 %v2299, %v2295
        %v2312 = vpack.c.b16 %v2300, %v2296
        %v2313 = vpack.c.b16 %v2301, %v2297
        %v2314 = vpack.c.b16 %v2302, %v2298
        %v2315 = vpack.c.b16 %v2307, %v2303
        %v2316 = vpack.c.b16 %v2308, %v2304
        %v2317 = vpack.c.b16 %v2309, %v2305
        %v2318 = vpack.c.b16 %v2310, %v2306
        %2327 = vmatprep.subr.bf16.mxu0 0
        %2328 = vmatpush1.bf16.msra.mxu0 0
        %2329 = vmatprep.subr.bf16.mxu0 0
        %2330 = vmatpush1.bf16.msra.mxu0 0
        %2331 = vmatprep.subr.bf16.mxu0 0
        %2332 = vmatpush1.bf16.msra.mxu0 0
        %2333 = vmatprep.subr.bf16.mxu0 0
        %2334 = vmatpush1.bf16.msra.mxu0 0
        %2335 = vmatprep.subr.bf16.mxu0 0
        %2336 = vmatpush1.bf16.msra.mxu0 0
        %2337 = vmatprep.subr.bf16.mxu0 0
        %2338 = vmatpush1.bf16.msra.mxu0 0
        %2339 = vmatprep.subr.bf16.mxu0 %v2316
        %2340 = vmatpush1.bf16.msra.mxu0 %v2315
        %2341 = vmatprep.subr.bf16.mxu0 %v2312
        %2342 = vmatpush1.bf16.msra.mxu0 %v2311
        %2343 = vmatprep.subr.bf16.mxu0 0
        %2344 = vmatpush2.bf16.msra.mxu0 0
        %2345 = vmatprep.subr.bf16.mxu0 0
        %2346 = vmatpush2.bf16.msra.mxu0 0
        %2347 = vmatprep.subr.bf16.mxu0 0
        %2348 = vmatpush2.bf16.msra.mxu0 0
        %2349 = vmatprep.subr.bf16.mxu0 0
        %2350 = vmatpush2.bf16.msra.mxu0 0
        %2351 = vmatprep.subr.bf16.mxu0 0
        %2352 = vmatpush2.bf16.msra.mxu0 0
        %2353 = vmatprep.subr.bf16.mxu0 0
        %2354 = vmatpush2.bf16.msra.mxu0 0
        %2355 = vmatprep.subr.bf16.mxu0 0
        %2356 = vmatpush2.bf16.msra.mxu0 0
        %2357 = vmatprep.subr.bf16.mxu0 0
        %2358 = vmatpush2.bf16.msra.mxu0 0
        %2359 = vmatprep.mubr.bf16.mxu0 0
        %2360 = vmatmul.mubr.bf16.gmra.mxu0 %v2093
        %v2361 = vpop.f32.mrf.mxu0
        %v2362 = vadd.f32 %v2270, %v2361
        %v2363 = vpop.f32.mrf.mxu0
        %v2364 = vadd.f32 %v2274, %v2363
        %v2365 = vpop.f32.mrf.mxu0
        %v2366 = vadd.f32 %v2270, %v2365
        %v2367 = vpop.f32.mrf.mxu0
        %v2368 = vadd.f32 %v2274, %v2367
        %2369 = vdwg.mxu0
        %2370 = vmatprep.subr.bf16.mxu0 0
        %2371 = vmatpush1.bf16.msra.mxu0 0
        %2372 = vmatprep.subr.bf16.mxu0 0
        %2373 = vmatpush1.bf16.msra.mxu0 0
        %2374 = vmatprep.subr.bf16.mxu0 0
        %2375 = vmatpush1.bf16.msra.mxu0 0
        %2376 = vmatprep.subr.bf16.mxu0 0
        %2377 = vmatpush1.bf16.msra.mxu0 0
        %2378 = vmatprep.subr.bf16.mxu0 0
        %2379 = vmatpush1.bf16.msra.mxu0 0
        %2380 = vmatprep.subr.bf16.mxu0 0
        %2381 = vmatpush1.bf16.msra.mxu0 0
        %2382 = vmatprep.subr.bf16.mxu0 %v2318
        %2383 = vmatpush1.bf16.msra.mxu0 %v2317
        %2384 = vmatprep.subr.bf16.mxu0 %v2314
        %2385 = vmatpush1.bf16.msra.mxu0 %v2313
        %2386 = vmatprep.subr.bf16.mxu0 0
        %2387 = vmatpush2.bf16.msra.mxu0 0
        %2388 = vmatprep.subr.bf16.mxu0 0
        %2389 = vmatpush2.bf16.msra.mxu0 0
        %2390 = vmatprep.subr.bf16.mxu0 0
        %2391 = vmatpush2.bf16.msra.mxu0 0
        %2392 = vmatprep.subr.bf16.mxu0 0
        %2393 = vmatpush2.bf16.msra.mxu0 0
        %2394 = vmatprep.subr.bf16.mxu0 0
        %2395 = vmatpush2.bf16.msra.mxu0 0
        %2396 = vmatprep.subr.bf16.mxu0 0
        %2397 = vmatpush2.bf16.msra.mxu0 0
        %2398 = vmatprep.subr.bf16.mxu0 0
        %2399 = vmatpush2.bf16.msra.mxu0 0
        %2400 = vmatprep.subr.bf16.mxu0 0
        %2401 = vmatpush2.bf16.msra.mxu0 0
        %2402 = vmatprep.mubr.bf16.mxu0 0
        %2403 = vmatmul.mubr.bf16.gmra.mxu0 %v2093
        %v2404 = vpop.f32.mrf.mxu0
        %v2405 = vadd.f32 %v2278, %v2404
        %v2406 = vpop.f32.mrf.mxu0
        %v2407 = vadd.f32 %v2282, %v2406
        %v2408 = vpop.f32.mrf.mxu0
        %v2409 = vadd.f32 %v2278, %v2408
        %v2410 = vpop.f32.mrf.mxu0
        %v2411 = vadd.f32 %v2282, %v2410
        %2412 = vdwg.mxu0
        %v2413 = vmax.f32 %v2362, 0.0
        %v2414 = vmax.f32 %v2364, 0.0
        %v2415 = vmax.f32 %v2405, 0.0
        %v2416 = vmax.f32 %v2407, 0.0
        %v2417 = vmax.f32 %v2366, 0.0
        %v2418 = vmax.f32 %v2368, 0.0
        %v2419 = vmax.f32 %v2409, 0.0
        %v2420 = vmax.f32 %v2411, 0.0
        %v2421 = vpack.c.bf16 %v2417, %v2413
        %v2422 = vpack.c.bf16 %v2418, %v2414
        %v2423 = vpack.c.bf16 %v2419, %v2415
        %v2424 = vpack.c.bf16 %v2420, %v2416
        %v2425 = vld [vmem:[%s764 + $0x100] sm:$0xf]
        %v2426 = vld [vmem:[%s764 + $0x104] sm:$0xf]
        %v2427 = vld [vmem:[%s764 + $0x108] sm:$0xf]
        %v2428 = vld [vmem:[%s764 + $0x10c] sm:$0xf]
        %v2429 = vld [vmem:[%s764 + $0x110] sm:$0xf]
        %v2430 = vld [vmem:[%s764 + $0x114] sm:$0xf]
        %v2431 = vld [vmem:[%s764 + $0x118] sm:$0xf]
        %v2432 = vld [vmem:[%s764 + $0x11c] sm:$0xf]
        %v2433 = vld [vmem:[%s764 + $0x120] sm:$0xf]
        %v2434 = vld [vmem:[%s764 + $0x124] sm:$0xf]
        %v2435 = vld [vmem:[%s764 + $0x128] sm:$0xf]
        %v2436 = vld [vmem:[%s764 + $0x12c] sm:$0xf]
        %v2437 = vld [vmem:[%s764 + $0x130] sm:$0xf]
        %v2438 = vld [vmem:[%s764 + $0x134] sm:$0xf]
        %v2439 = vld [vmem:[%s764 + $0x138] sm:$0xf]
        %v2440 = vld [vmem:[%s764 + $0x13c] sm:$0xf]
        %v2441 = vld [vmem:[%s764 + $0x140] sm:$0xf]
        %v2442 = vld [vmem:[%s764 + $0x144] sm:$0xf]
        %v2443 = vld [vmem:[%s764 + $0x148] sm:$0xf]
        %v2444 = vld [vmem:[%s764 + $0x14c] sm:$0xf]
        %v2445 = vld [vmem:[%s764 + $0x150] sm:$0xf]
        %v2446 = vld [vmem:[%s764 + $0x154] sm:$0xf]
        %v2447 = vld [vmem:[%s764 + $0x158] sm:$0xf]
        %v2448 = vld [vmem:[%s764 + $0x15c] sm:$0xf]
        %v2449 = vld [vmem:[%s764 + $0x160] sm:$0xf]
        %v2450 = vld [vmem:[%s764 + $0x164] sm:$0xf]
        %v2451 = vld [vmem:[%s764 + $0x168] sm:$0xf]
        %v2452 = vld [vmem:[%s764 + $0x16c] sm:$0xf]
        %v2453 = vld [vmem:[%s764 + $0x170] sm:$0xf]
        %v2454 = vld [vmem:[%s764 + $0x174] sm:$0xf]
        %v2455 = vld [vmem:[%s764 + $0x178] sm:$0xf]
        %v2456 = vld [vmem:[%s764 + $0x17c] sm:$0xf]
        %v2457 = vld [vmem:[%s764 + $0x180] sm:$0xf]
        %v2458 = vld [vmem:[%s764 + $0x184] sm:$0xf]
        %v2459 = vld [vmem:[%s764 + $0x188] sm:$0xf]
        %v2460 = vld [vmem:[%s764 + $0x18c] sm:$0xf]
        %v2461 = vld [vmem:[%s764 + $0x190] sm:$0xf]
        %v2462 = vld [vmem:[%s764 + $0x194] sm:$0xf]
        %v2463 = vld [vmem:[%s764 + $0x198] sm:$0xf]
        %v2464 = vld [vmem:[%s764 + $0x19c] sm:$0xf]
        %v2465 = vld [vmem:[%s764 + $0x1a0] sm:$0xf]
        %v2466 = vld [vmem:[%s764 + $0x1a4] sm:$0xf]
        %v2467 = vld [vmem:[%s764 + $0x1a8] sm:$0xf]
        %v2468 = vld [vmem:[%s764 + $0x1ac] sm:$0xf]
        %v2469 = vld [vmem:[%s764 + $0x1b0] sm:$0xf]
        %v2470 = vld [vmem:[%s764 + $0x1b4] sm:$0xf]
        %v2471 = vld [vmem:[%s764 + $0x1b8] sm:$0xf]
        %v2472 = vld [vmem:[%s764 + $0x1bc] sm:$0xf]
        %v2473 = vld [vmem:[%s764 + $0x1c0] sm:$0xf]
        %v2474 = vld [vmem:[%s764 + $0x1c4] sm:$0xf]
        %v2475 = vld [vmem:[%s764 + $0x1c8] sm:$0xf]
        %v2476 = vld [vmem:[%s764 + $0x1cc] sm:$0xf]
        %v2477 = vld [vmem:[%s764 + $0x1d0] sm:$0xf]
        %v2478 = vld [vmem:[%s764 + $0x1d4] sm:$0xf]
        %v2479 = vld [vmem:[%s764 + $0x1d8] sm:$0xf]
        %v2480 = vld [vmem:[%s764 + $0x1dc] sm:$0xf]
        %v2481 = vld [vmem:[%s764 + $0x1e0] sm:$0xf]
        %v2482 = vld [vmem:[%s764 + $0x1e4] sm:$0xf]
        %v2483 = vld [vmem:[%s764 + $0x1e8] sm:$0xf]
        %v2484 = vld [vmem:[%s764 + $0x1ec] sm:$0xf]
        %v2485 = vld [vmem:[%s764 + $0x1f0] sm:$0xf]
        %v2486 = vld [vmem:[%s764 + $0x1f4] sm:$0xf]
        %v2487 = vld [vmem:[%s764 + $0x1f8] sm:$0xf]
        %v2488 = vld [vmem:[%s764 + $0x1fc] sm:$0xf]
        %v2553 = vunpack.c.l.b16 %v2425
        %v2554 = vunpack.c.l.b16 %v2426
        %v2555 = vunpack.c.l.b16 %v2427
        %v2556 = vunpack.c.l.b16 %v2428
        %v2557 = vunpack.c.l.b16 %v2429
        %v2558 = vunpack.c.l.b16 %v2430
        %v2559 = vunpack.c.l.b16 %v2431
        %v2560 = vunpack.c.l.b16 %v2432
        %v2561 = vunpack.c.l.b16 %v2433
        %v2562 = vunpack.c.l.b16 %v2434
        %v2563 = vunpack.c.l.b16 %v2435
        %v2564 = vunpack.c.l.b16 %v2436
        %v2565 = vunpack.c.l.b16 %v2437
        %v2566 = vunpack.c.l.b16 %v2438
        %v2567 = vunpack.c.l.b16 %v2439
        %v2568 = vunpack.c.l.b16 %v2440
        %v2569 = vunpack.c.l.b16 %v2441
        %v2570 = vunpack.c.l.b16 %v2442
        %v2571 = vunpack.c.l.b16 %v2443
        %v2572 = vunpack.c.l.b16 %v2444
        %v2573 = vunpack.c.l.b16 %v2445
        %v2574 = vunpack.c.l.b16 %v2446
        %v2575 = vunpack.c.l.b16 %v2447
        %v2576 = vunpack.c.l.b16 %v2448
        %v2577 = vunpack.c.l.b16 %v2449
        %v2578 = vunpack.c.l.b16 %v2450
        %v2579 = vunpack.c.l.b16 %v2451
        %v2580 = vunpack.c.l.b16 %v2452
        %v2581 = vunpack.c.l.b16 %v2453
        %v2582 = vunpack.c.l.b16 %v2454
        %v2583 = vunpack.c.l.b16 %v2455
        %v2584 = vunpack.c.l.b16 %v2456
        %v2585 = vunpack.c.l.b16 %v2457
        %v2586 = vunpack.c.l.b16 %v2458
        %v2587 = vunpack.c.l.b16 %v2459
        %v2588 = vunpack.c.l.b16 %v2460
        %v2589 = vunpack.c.l.b16 %v2461
        %v2590 = vunpack.c.l.b16 %v2462
        %v2591 = vunpack.c.l.b16 %v2463
        %v2592 = vunpack.c.l.b16 %v2464
        %v2593 = vunpack.c.l.b16 %v2465
        %v2594 = vunpack.c.l.b16 %v2466
        %v2595 = vunpack.c.l.b16 %v2467
        %v2596 = vunpack.c.l.b16 %v2468
        %v2597 = vunpack.c.l.b16 %v2469
        %v2598 = vunpack.c.l.b16 %v2470
        %v2599 = vunpack.c.l.b16 %v2471
        %v2600 = vunpack.c.l.b16 %v2472
        %v2601 = vunpack.c.l.b16 %v2473
        %v2602 = vunpack.c.l.b16 %v2474
        %v2603 = vunpack.c.l.b16 %v2475
        %v2604 = vunpack.c.l.b16 %v2476
        %v2605 = vunpack.c.l.b16 %v2477
        %v2606 = vunpack.c.l.b16 %v2478
        %v2607 = vunpack.c.l.b16 %v2479
        %v2608 = vunpack.c.l.b16 %v2480
        %v2609 = vunpack.c.l.b16 %v2481
        %v2610 = vunpack.c.l.b16 %v2482
        %v2611 = vunpack.c.l.b16 %v2483
        %v2612 = vunpack.c.l.b16 %v2484
        %v2613 = vunpack.c.l.b16 %v2485
        %v2614 = vunpack.c.l.b16 %v2486
        %v2615 = vunpack.c.l.b16 %v2487
        %v2616 = vunpack.c.l.b16 %v2488
        %v2617 = vpack.c.b16 %v2554, %v2553
        %v2618 = vpack.c.b16 %v2556, %v2555
        %v2619 = vpack.c.b16 %v2558, %v2557
        %v2620 = vpack.c.b16 %v2560, %v2559
        %v2621 = vpack.c.b16 %v2562, %v2561
        %v2622 = vpack.c.b16 %v2564, %v2563
        %v2623 = vpack.c.b16 %v2566, %v2565
        %v2624 = vpack.c.b16 %v2568, %v2567
        %v2625 = vpack.c.b16 %v2570, %v2569
        %v2626 = vpack.c.b16 %v2572, %v2571
        %v2627 = vpack.c.b16 %v2574, %v2573
        %v2628 = vpack.c.b16 %v2576, %v2575
        %v2629 = vpack.c.b16 %v2578, %v2577
        %v2630 = vpack.c.b16 %v2580, %v2579
        %v2631 = vpack.c.b16 %v2582, %v2581
        %v2632 = vpack.c.b16 %v2584, %v2583
        %v2633 = vpack.c.b16 %v2586, %v2585
        %v2634 = vpack.c.b16 %v2588, %v2587
        %v2635 = vpack.c.b16 %v2590, %v2589
        %v2636 = vpack.c.b16 %v2592, %v2591
        %v2637 = vpack.c.b16 %v2594, %v2593
        %v2638 = vpack.c.b16 %v2596, %v2595
        %v2639 = vpack.c.b16 %v2598, %v2597
        %v2640 = vpack.c.b16 %v2600, %v2599
        %v2641 = vpack.c.b16 %v2602, %v2601
        %v2642 = vpack.c.b16 %v2604, %v2603
        %v2643 = vpack.c.b16 %v2606, %v2605
        %v2644 = vpack.c.b16 %v2608, %v2607
        %v2645 = vpack.c.b16 %v2610, %v2609
        %v2646 = vpack.c.b16 %v2612, %v2611
        %v2647 = vpack.c.b16 %v2614, %v2613
        %v2648 = vpack.c.b16 %v2616, %v2615
        %2681 = vmatprep.subr.bf16.mxu0 0
        %2682 = vmatpush1.bf16.msra.mxu0 %v2624
        %2683 = vmatprep.subr.bf16.mxu0 0
        %2684 = vmatpush1.bf16.msra.mxu0 %v2623
        %2685 = vmatprep.subr.bf16.mxu0 0
        %2686 = vmatpush1.bf16.msra.mxu0 %v2622
        %2687 = vmatprep.subr.bf16.mxu0 0
        %2688 = vmatpush1.bf16.msra.mxu0 %v2621
        %2689 = vmatprep.subr.bf16.mxu0 0
        %2690 = vmatpush1.bf16.msra.mxu0 %v2620
        %2691 = vmatprep.subr.bf16.mxu0 0
        %2692 = vmatpush1.bf16.msra.mxu0 %v2619
        %2693 = vmatprep.subr.bf16.mxu0 0
        %2694 = vmatpush1.bf16.msra.mxu0 %v2618
        %2695 = vmatprep.subr.bf16.mxu0 0
        %2696 = vmatpush1.bf16.msra.mxu0 %v2617
        %2697 = vmatprep.subr.bf16.mxu0 0
        %2698 = vmatpush2.bf16.msra.mxu0 %v2632
        %2699 = vmatprep.subr.bf16.mxu0 0
        %2700 = vmatpush2.bf16.msra.mxu0 %v2631
        %2701 = vmatprep.subr.bf16.mxu0 0
        %2702 = vmatpush2.bf16.msra.mxu0 %v2630
        %2703 = vmatprep.subr.bf16.mxu0 0
        %2704 = vmatpush2.bf16.msra.mxu0 %v2629
        %2705 = vmatprep.subr.bf16.mxu0 0
        %2706 = vmatpush2.bf16.msra.mxu0 %v2628
        %2707 = vmatprep.subr.bf16.mxu0 0
        %2708 = vmatpush2.bf16.msra.mxu0 %v2627
        %2709 = vmatprep.subr.bf16.mxu0 0
        %2710 = vmatpush2.bf16.msra.mxu0 %v2626
        %2711 = vmatprep.subr.bf16.mxu0 0
        %2712 = vmatpush2.bf16.msra.mxu0 %v2625
        %2713 = vmatprep.mubr.bf16.mxu0 %v2422
        %2714 = vmatmul.mubr.bf16.gmra.mxu0 %v2421
        %v2715 = vpop.f32.mrf.mxu0
        %v2716 = vadd.f32 0.0, %v2715
        %v2717 = vpop.f32.mrf.mxu0
        %v2718 = vpop.f32.mrf.mxu0
        %v2719 = vadd.f32 0.0, %v2718
        %v2720 = vpop.f32.mrf.mxu0
        %2721 = vdwg.mxu0
        %2722 = vmatprep.subr.bf16.mxu0 0
        %2723 = vmatpush1.bf16.msra.mxu0 %v2640
        %2724 = vmatprep.subr.bf16.mxu0 0
        %2725 = vmatpush1.bf16.msra.mxu0 %v2639
        %2726 = vmatprep.subr.bf16.mxu0 0
        %2727 = vmatpush1.bf16.msra.mxu0 %v2638
        %2728 = vmatprep.subr.bf16.mxu0 0
        %2729 = vmatpush1.bf16.msra.mxu0 %v2637
        %2730 = vmatprep.subr.bf16.mxu0 0
        %2731 = vmatpush1.bf16.msra.mxu0 %v2636
        %2732 = vmatprep.subr.bf16.mxu0 0
        %2733 = vmatpush1.bf16.msra.mxu0 %v2635
        %2734 = vmatprep.subr.bf16.mxu0 0
        %2735 = vmatpush1.bf16.msra.mxu0 %v2634
        %2736 = vmatprep.subr.bf16.mxu0 0
        %2737 = vmatpush1.bf16.msra.mxu0 %v2633
        %2738 = vmatprep.subr.bf16.mxu0 0
        %2739 = vmatpush2.bf16.msra.mxu0 %v2648
        %2740 = vmatprep.subr.bf16.mxu0 0
        %2741 = vmatpush2.bf16.msra.mxu0 %v2647
        %2742 = vmatprep.subr.bf16.mxu0 0
        %2743 = vmatpush2.bf16.msra.mxu0 %v2646
        %2744 = vmatprep.subr.bf16.mxu0 0
        %2745 = vmatpush2.bf16.msra.mxu0 %v2645
        %2746 = vmatprep.subr.bf16.mxu0 0
        %2747 = vmatpush2.bf16.msra.mxu0 %v2644
        %2748 = vmatprep.subr.bf16.mxu0 0
        %2749 = vmatpush2.bf16.msra.mxu0 %v2643
        %2750 = vmatprep.subr.bf16.mxu0 0
        %2751 = vmatpush2.bf16.msra.mxu0 %v2642
        %2752 = vmatprep.subr.bf16.mxu0 0
        %2753 = vmatpush2.bf16.msra.mxu0 %v2641
        %2754 = vmatprep.mubr.bf16.mxu0 %v2424
        %2755 = vmatmul.mubr.bf16.gmra.mxu0 %v2423
        %v2756 = vpop.f32.mrf.mxu0
        %v2757 = vadd.f32 %v2716, %v2756
        %v2758 = vpop.f32.mrf.mxu0
        %v2759 = vpop.f32.mrf.mxu0
        %v2760 = vadd.f32 %v2719, %v2759
        %v2761 = vpop.f32.mrf.mxu0
        %2762 = vdwg.mxu0
        %v2827 = vunpack.c.l.b16 %v2193
        %v2828 = vunpack.c.l.b16 %v2194
        %v2829 = vunpack.c.l.b16 %v2195
        %v2830 = vunpack.c.l.b16 %v2196
        %v2831 = vunpack.c.l.b16 %v2197
        %v2832 = vunpack.c.l.b16 %v2198
        %v2833 = vunpack.c.l.b16 %v2199
        %v2834 = vunpack.c.l.b16 %v2200
        %v2835 = vunpack.c.l.b16 %v2201
        %v2836 = vunpack.c.l.b16 %v2202
        %v2837 = vunpack.c.l.b16 %v2203
        %v2838 = vunpack.c.l.b16 %v2204
        %v2839 = vunpack.c.l.b16 %v2205
        %v2840 = vunpack.c.l.b16 %v2206
        %v2841 = vunpack.c.l.b16 %v2207
        %v2842 = vunpack.c.l.b16 %v2208
        %v2843 = vunpack.c.l.b16 %v2209
        %v2844 = vunpack.c.l.b16 %v2210
        %v2845 = vunpack.c.l.b16 %v2211
        %v2846 = vunpack.c.l.b16 %v2212
        %v2847 = vunpack.c.l.b16 %v2213
        %v2848 = vunpack.c.l.b16 %v2214
        %v2849 = vunpack.c.l.b16 %v2215
        %v2850 = vunpack.c.l.b16 %v2216
        %v2851 = vunpack.c.l.b16 %v2217
        %v2852 = vunpack.c.l.b16 %v2218
        %v2853 = vunpack.c.l.b16 %v2219
        %v2854 = vunpack.c.l.b16 %v2220
        %v2855 = vunpack.c.l.b16 %v2221
        %v2856 = vunpack.c.l.b16 %v2222
        %v2857 = vunpack.c.l.b16 %v2223
        %v2858 = vunpack.c.l.b16 %v2224
        %v2859 = vunpack.c.l.b16 %v2225
        %v2860 = vunpack.c.l.b16 %v2226
        %v2861 = vunpack.c.l.b16 %v2227
        %v2862 = vunpack.c.l.b16 %v2228
        %v2863 = vunpack.c.l.b16 %v2229
        %v2864 = vunpack.c.l.b16 %v2230
        %v2865 = vunpack.c.l.b16 %v2231
        %v2866 = vunpack.c.l.b16 %v2232
        %v2867 = vunpack.c.l.b16 %v2233
        %v2868 = vunpack.c.l.b16 %v2234
        %v2869 = vunpack.c.l.b16 %v2235
        %v2870 = vunpack.c.l.b16 %v2236
        %v2871 = vunpack.c.l.b16 %v2237
        %v2872 = vunpack.c.l.b16 %v2238
        %v2873 = vunpack.c.l.b16 %v2239
        %v2874 = vunpack.c.l.b16 %v2240
        %v2875 = vunpack.c.l.b16 %v2241
        %v2876 = vunpack.c.l.b16 %v2242
        %v2877 = vunpack.c.l.b16 %v2243
        %v2878 = vunpack.c.l.b16 %v2244
        %v2879 = vunpack.c.l.b16 %v2245
        %v2880 = vunpack.c.l.b16 %v2246
        %v2881 = vunpack.c.l.b16 %v2247
        %v2882 = vunpack.c.l.b16 %v2248
        %v2883 = vunpack.c.l.b16 %v2249
        %v2884 = vunpack.c.l.b16 %v2250
        %v2885 = vunpack.c.l.b16 %v2251
        %v2886 = vunpack.c.l.b16 %v2252
        %v2887 = vunpack.c.l.b16 %v2253
        %v2888 = vunpack.c.l.b16 %v2254
        %v2889 = vunpack.c.l.b16 %v2255
        %v2890 = vunpack.c.l.b16 %v2256
        %v2891 = vpack.c.b16 %v2828, %v2827
        %v2892 = vpack.c.b16 %v2830, %v2829
        %v2893 = vpack.c.b16 %v2832, %v2831
        %v2894 = vpack.c.b16 %v2834, %v2833
        %v2895 = vpack.c.b16 %v2836, %v2835
        %v2896 = vpack.c.b16 %v2838, %v2837
        %v2897 = vpack.c.b16 %v2840, %v2839
        %v2898 = vpack.c.b16 %v2842, %v2841
        %v2899 = vpack.c.b16 %v2844, %v2843
        %v2900 = vpack.c.b16 %v2846, %v2845
        %v2901 = vpack.c.b16 %v2848, %v2847
        %v2902 = vpack.c.b16 %v2850, %v2849
        %v2903 = vpack.c.b16 %v2852, %v2851
        %v2904 = vpack.c.b16 %v2854, %v2853
        %v2905 = vpack.c.b16 %v2856, %v2855
        %v2906 = vpack.c.b16 %v2858, %v2857
        %v2907 = vpack.c.b16 %v2860, %v2859
        %v2908 = vpack.c.b16 %v2862, %v2861
        %v2909 = vpack.c.b16 %v2864, %v2863
        %v2910 = vpack.c.b16 %v2866, %v2865
        %v2911 = vpack.c.b16 %v2868, %v2867
        %v2912 = vpack.c.b16 %v2870, %v2869
        %v2913 = vpack.c.b16 %v2872, %v2871
        %v2914 = vpack.c.b16 %v2874, %v2873
        %v2915 = vpack.c.b16 %v2876, %v2875
        %v2916 = vpack.c.b16 %v2878, %v2877
        %v2917 = vpack.c.b16 %v2880, %v2879
        %v2918 = vpack.c.b16 %v2882, %v2881
        %v2919 = vpack.c.b16 %v2884, %v2883
        %v2920 = vpack.c.b16 %v2886, %v2885
        %v2921 = vpack.c.b16 %v2888, %v2887
        %v2922 = vpack.c.b16 %v2890, %v2889
        %2955 = vmatprep.subr.bf16.mxu0 0
        %2956 = vmatpush1.bf16.msra.mxu0 %v2898
        %2957 = vmatprep.subr.bf16.mxu0 0
        %2958 = vmatpush1.bf16.msra.mxu0 %v2897
        %2959 = vmatprep.subr.bf16.mxu0 0
        %2960 = vmatpush1.bf16.msra.mxu0 %v2896
        %2961 = vmatprep.subr.bf16.mxu0 0
        %2962 = vmatpush1.bf16.msra.mxu0 %v2895
        %2963 = vmatprep.subr.bf16.mxu0 0
        %2964 = vmatpush1.bf16.msra.mxu0 %v2894
        %2965 = vmatprep.subr.bf16.mxu0 0
        %2966 = vmatpush1.bf16.msra.mxu0 %v2893
        %2967 = vmatprep.subr.bf16.mxu0 0
        %2968 = vmatpush1.bf16.msra.mxu0 %v2892
        %2969 = vmatprep.subr.bf16.mxu0 0
        %2970 = vmatpush1.bf16.msra.mxu0 %v2891
        %2971 = vmatprep.subr.bf16.mxu0 0
        %2972 = vmatpush2.bf16.msra.mxu0 %v2906
        %2973 = vmatprep.subr.bf16.mxu0 0
        %2974 = vmatpush2.bf16.msra.mxu0 %v2905
        %2975 = vmatprep.subr.bf16.mxu0 0
        %2976 = vmatpush2.bf16.msra.mxu0 %v2904
        %2977 = vmatprep.subr.bf16.mxu0 0
        %2978 = vmatpush2.bf16.msra.mxu0 %v2903
        %2979 = vmatprep.subr.bf16.mxu0 0
        %2980 = vmatpush2.bf16.msra.mxu0 %v2902
        %2981 = vmatprep.subr.bf16.mxu0 0
        %2982 = vmatpush2.bf16.msra.mxu0 %v2901
        %2983 = vmatprep.subr.bf16.mxu0 0
        %2984 = vmatpush2.bf16.msra.mxu0 %v2900
        %2985 = vmatprep.subr.bf16.mxu0 0
        %2986 = vmatpush2.bf16.msra.mxu0 %v2899
        %2987 = vmatprep.mubr.bf16.mxu0 %v2190
        %2988 = vmatmul.mubr.bf16.gmra.mxu0 %v2189
        %v2989 = vpop.f32.mrf.mxu0
        %v2990 = vadd.f32 %v2757, %v2989
        %v2991 = vpop.f32.mrf.mxu0
        %v2992 = vpop.f32.mrf.mxu0
        %v2993 = vadd.f32 %v2760, %v2992
        %v2994 = vpop.f32.mrf.mxu0
        %2995 = vdwg.mxu0
        %2996 = vmatprep.subr.bf16.mxu0 0
        %2997 = vmatpush1.bf16.msra.mxu0 %v2914
        %2998 = vmatprep.subr.bf16.mxu0 0
        %2999 = vmatpush1.bf16.msra.mxu0 %v2913
        %3000 = vmatprep.subr.bf16.mxu0 0
        %3001 = vmatpush1.bf16.msra.mxu0 %v2912
        %3002 = vmatprep.subr.bf16.mxu0 0
        %3003 = vmatpush1.bf16.msra.mxu0 %v2911
        %3004 = vmatprep.subr.bf16.mxu0 0
        %3005 = vmatpush1.bf16.msra.mxu0 %v2910
        %3006 = vmatprep.subr.bf16.mxu0 0
        %3007 = vmatpush1.bf16.msra.mxu0 %v2909
        %3008 = vmatprep.subr.bf16.mxu0 0
        %3009 = vmatpush1.bf16.msra.mxu0 %v2908
        %3010 = vmatprep.subr.bf16.mxu0 0
        %3011 = vmatpush1.bf16.msra.mxu0 %v2907
        %3012 = vmatprep.subr.bf16.mxu0 0
        %3013 = vmatpush2.bf16.msra.mxu0 %v2922
        %3014 = vmatprep.subr.bf16.mxu0 0
        %3015 = vmatpush2.bf16.msra.mxu0 %v2921
        %3016 = vmatprep.subr.bf16.mxu0 0
        %3017 = vmatpush2.bf16.msra.mxu0 %v2920
        %3018 = vmatprep.subr.bf16.mxu0 0
        %3019 = vmatpush2.bf16.msra.mxu0 %v2919
        %3020 = vmatprep.subr.bf16.mxu0 0
        %3021 = vmatpush2.bf16.msra.mxu0 %v2918
        %3022 = vmatprep.subr.bf16.mxu0 0
        %3023 = vmatpush2.bf16.msra.mxu0 %v2917
        %3024 = vmatprep.subr.bf16.mxu0 0
        %3025 = vmatpush2.bf16.msra.mxu0 %v2916
        %3026 = vmatprep.subr.bf16.mxu0 0
        %3027 = vmatpush2.bf16.msra.mxu0 %v2915
        %3028 = vmatprep.mubr.bf16.mxu0 %v2192
        %3029 = vmatmul.mubr.bf16.gmra.mxu0 %v2191
        %v3030 = vpop.f32.mrf.mxu0
        %v3031 = vadd.f32 %v2990, %v3030
        %v3032 = vpop.f32.mrf.mxu0
        %v3033 = vpop.f32.mrf.mxu0
        %v3034 = vadd.f32 %v2993, %v3033
        %v3035 = vpop.f32.mrf.mxu0
        %3036 = vdwg.mxu0
        %v3037 = vld [vmem:[%s755 + $0x20] sm:$0xff]
        %v3038 = vld [vmem:[%s755 + $0x28] sm:$0xff]
        %v3039 = vld [vmem:[%s755 + $0x60] sm:$0xff]
        %v3040 = vld [vmem:[%s755 + $0x68] sm:$0xff]
        %v3041 = vld [vmem:[%s755 + $0xa0] sm:$0xff]
        %v3042 = vld [vmem:[%s755 + $0xa8] sm:$0xff]
        %v3043 = vld [vmem:[%s755 + $0xe0] sm:$0xff]
        %v3044 = vld [vmem:[%s755 + $0xe8] sm:$0xff]
        %v3045 = vld [vmem:[%s759 + $0x8] sm:$0xf]
        %v3047 = vlaneseq
        %v3048 = vshrl.u32 %v3047, 7
        %v3049 = vsub.s32 0, %v3048
        %v3050 = vrot.slane %v3045, %v3049
        %v3051 = vlaneseq
        %v3052 = vshrl.u32 %v3051, 7
        %v3053 = vsub.s32 1, %v3052
        %v3054 = vrot.slane %v3045, %v3053
        %v3055 = vlaneseq
        %v3056 = vshrl.u32 %v3055, 7
        %v3057 = vsub.s32 2, %v3056
        %v3058 = vrot.slane %v3045, %v3057
        %v3059 = vlaneseq
        %v3060 = vshrl.u32 %v3059, 7
        %v3061 = vsub.s32 3, %v3060
        %v3062 = vrot.slane %v3045, %v3061
        %v3075 = vunpack.c.l.b16 %v3037
        %v3076 = vunpack.c.h.b16 %v3037
        %v3077 = vunpack.c.l.b16 %v3038
        %v3078 = vunpack.c.h.b16 %v3038
        %v3079 = vunpack.c.l.b16 %v3039
        %v3080 = vunpack.c.h.b16 %v3039
        %v3081 = vunpack.c.l.b16 %v3040
        %v3082 = vunpack.c.h.b16 %v3040
        %v3083 = vunpack.c.l.b16 %v3041
        %v3084 = vunpack.c.h.b16 %v3041
        %v3085 = vunpack.c.l.b16 %v3042
        %v3086 = vunpack.c.h.b16 %v3042
        %v3087 = vunpack.c.l.b16 %v3043
        %v3088 = vunpack.c.h.b16 %v3043
        %v3089 = vunpack.c.l.b16 %v3044
        %v3090 = vunpack.c.h.b16 %v3044
        %v3091 = vpack.c.b16 %v3079, %v3075
        %v3092 = vpack.c.b16 %v3080, %v3076
        %v3093 = vpack.c.b16 %v3081, %v3077
        %v3094 = vpack.c.b16 %v3082, %v3078
        %v3095 = vpack.c.b16 %v3087, %v3083
        %v3096 = vpack.c.b16 %v3088, %v3084
        %v3097 = vpack.c.b16 %v3089, %v3085
        %v3098 = vpack.c.b16 %v3090, %v3086
        %3107 = vmatprep.subr.bf16.mxu0 0
        %3108 = vmatpush1.bf16.msra.mxu0 0
        %3109 = vmatprep.subr.bf16.mxu0 0
        %3110 = vmatpush1.bf16.msra.mxu0 0
        %3111 = vmatprep.subr.bf16.mxu0 0
        %3112 = vmatpush1.bf16.msra.mxu0 0
        %3113 = vmatprep.subr.bf16.mxu0 0
        %3114 = vmatpush1.bf16.msra.mxu0 0
        %3115 = vmatprep.subr.bf16.mxu0 0
        %3116 = vmatpush1.bf16.msra.mxu0 0
        %3117 = vmatprep.subr.bf16.mxu0 0
        %3118 = vmatpush1.bf16.msra.mxu0 0
        %3119 = vmatprep.subr.bf16.mxu0 %v3096
        %3120 = vmatpush1.bf16.msra.mxu0 %v3095
        %3121 = vmatprep.subr.bf16.mxu0 %v3092
        %3122 = vmatpush1.bf16.msra.mxu0 %v3091
        %3123 = vmatprep.subr.bf16.mxu0 0
        %3124 = vmatpush2.bf16.msra.mxu0 0
        %3125 = vmatprep.subr.bf16.mxu0 0
        %3126 = vmatpush2.bf16.msra.mxu0 0
        %3127 = vmatprep.subr.bf16.mxu0 0
        %3128 = vmatpush2.bf16.msra.mxu0 0
        %3129 = vmatprep.subr.bf16.mxu0 0
        %3130 = vmatpush2.bf16.msra.mxu0 0
        %3131 = vmatprep.subr.bf16.mxu0 0
        %3132 = vmatpush2.bf16.msra.mxu0 0
        %3133 = vmatprep.subr.bf16.mxu0 0
        %3134 = vmatpush2.bf16.msra.mxu0 0
        %3135 = vmatprep.subr.bf16.mxu0 0
        %3136 = vmatpush2.bf16.msra.mxu0 0
        %3137 = vmatprep.subr.bf16.mxu0 0
        %3138 = vmatpush2.bf16.msra.mxu0 0
        %3139 = vmatprep.mubr.bf16.mxu0 0
        %3140 = vmatmul.mubr.bf16.gmra.mxu0 %v2093
        %v3141 = vpop.f32.mrf.mxu0
        %v3142 = vadd.f32 %v3050, %v3141
        %v3143 = vpop.f32.mrf.mxu0
        %v3144 = vadd.f32 %v3054, %v3143
        %v3145 = vpop.f32.mrf.mxu0
        %v3146 = vadd.f32 %v3050, %v3145
        %v3147 = vpop.f32.mrf.mxu0
        %v3148 = vadd.f32 %v3054, %v3147
        %3149 = vdwg.mxu0
        %3150 = vmatprep.subr.bf16.mxu0 0
        %3151 = vmatpush1.bf16.msra.mxu0 0
        %3152 = vmatprep.subr.bf16.mxu0 0
        %3153 = vmatpush1.bf16.msra.mxu0 0
        %3154 = vmatprep.subr.bf16.mxu0 0
        %3155 = vmatpush1.bf16.msra.mxu0 0
        %3156 = vmatprep.subr.bf16.mxu0 0
        %3157 = vmatpush1.bf16.msra.mxu0 0
        %3158 = vmatprep.subr.bf16.mxu0 0
        %3159 = vmatpush1.bf16.msra.mxu0 0
        %3160 = vmatprep.subr.bf16.mxu0 0
        %3161 = vmatpush1.bf16.msra.mxu0 0
        %3162 = vmatprep.subr.bf16.mxu0 %v3098
        %3163 = vmatpush1.bf16.msra.mxu0 %v3097
        %3164 = vmatprep.subr.bf16.mxu0 %v3094
        %3165 = vmatpush1.bf16.msra.mxu0 %v3093
        %3166 = vmatprep.subr.bf16.mxu0 0
        %3167 = vmatpush2.bf16.msra.mxu0 0
        %3168 = vmatprep.subr.bf16.mxu0 0
        %3169 = vmatpush2.bf16.msra.mxu0 0
        %3170 = vmatprep.subr.bf16.mxu0 0
        %3171 = vmatpush2.bf16.msra.mxu0 0
        %3172 = vmatprep.subr.bf16.mxu0 0
        %3173 = vmatpush2.bf16.msra.mxu0 0
        %3174 = vmatprep.subr.bf16.mxu0 0
        %3175 = vmatpush2.bf16.msra.mxu0 0
        %3176 = vmatprep.subr.bf16.mxu0 0
        %3177 = vmatpush2.bf16.msra.mxu0 0
        %3178 = vmatprep.subr.bf16.mxu0 0
        %3179 = vmatpush2.bf16.msra.mxu0 0
        %3180 = vmatprep.subr.bf16.mxu0 0
        %3181 = vmatpush2.bf16.msra.mxu0 0
        %3182 = vmatprep.mubr.bf16.mxu0 0
        %3183 = vmatmul.mubr.bf16.gmra.mxu0 %v2093
        %v3184 = vpop.f32.mrf.mxu0
        %v3185 = vadd.f32 %v3058, %v3184
        %v3186 = vpop.f32.mrf.mxu0
        %v3187 = vadd.f32 %v3062, %v3186
        %v3188 = vpop.f32.mrf.mxu0
        %v3189 = vadd.f32 %v3058, %v3188
        %v3190 = vpop.f32.mrf.mxu0
        %v3191 = vadd.f32 %v3062, %v3190
        %3192 = vdwg.mxu0
        %v3193 = vmax.f32 %v3142, 0.0
        %v3194 = vmax.f32 %v3144, 0.0
        %v3195 = vmax.f32 %v3185, 0.0
        %v3196 = vmax.f32 %v3187, 0.0
        %v3197 = vmax.f32 %v3146, 0.0
        %v3198 = vmax.f32 %v3148, 0.0
        %v3199 = vmax.f32 %v3189, 0.0
        %v3200 = vmax.f32 %v3191, 0.0
        %v3201 = vpack.c.bf16 %v3197, %v3193
        %v3202 = vpack.c.bf16 %v3198, %v3194
        %v3203 = vpack.c.bf16 %v3199, %v3195
        %v3204 = vpack.c.bf16 %v3200, %v3196
        %v3205 = vld [vmem:[%s764 + $0x200] sm:$0xf]
        %v3206 = vld [vmem:[%s764 + $0x204] sm:$0xf]
        %v3207 = vld [vmem:[%s764 + $0x208] sm:$0xf]
        %v3208 = vld [vmem:[%s764 + $0x20c] sm:$0xf]
        %v3209 = vld [vmem:[%s764 + $0x210] sm:$0xf]
        %v3210 = vld [vmem:[%s764 + $0x214] sm:$0xf]
        %v3211 = vld [vmem:[%s764 + $0x218] sm:$0xf]
        %v3212 = vld [vmem:[%s764 + $0x21c] sm:$0xf]
        %v3213 = vld [vmem:[%s764 + $0x220] sm:$0xf]
        %v3214 = vld [vmem:[%s764 + $0x224] sm:$0xf]
        %v3215 = vld [vmem:[%s764 + $0x228] sm:$0xf]
        %v3216 = vld [vmem:[%s764 + $0x22c] sm:$0xf]
        %v3217 = vld [vmem:[%s764 + $0x230] sm:$0xf]
        %v3218 = vld [vmem:[%s764 + $0x234] sm:$0xf]
        %v3219 = vld [vmem:[%s764 + $0x238] sm:$0xf]
        %v3220 = vld [vmem:[%s764 + $0x23c] sm:$0xf]
        %v3221 = vld [vmem:[%s764 + $0x240] sm:$0xf]
        %v3222 = vld [vmem:[%s764 + $0x244] sm:$0xf]
        %v3223 = vld [vmem:[%s764 + $0x248] sm:$0xf]
        %v3224 = vld [vmem:[%s764 + $0x24c] sm:$0xf]
        %v3225 = vld [vmem:[%s764 + $0x250] sm:$0xf]
        %v3226 = vld [vmem:[%s764 + $0x254] sm:$0xf]
        %v3227 = vld [vmem:[%s764 + $0x258] sm:$0xf]
        %v3228 = vld [vmem:[%s764 + $0x25c] sm:$0xf]
        %v3229 = vld [vmem:[%s764 + $0x260] sm:$0xf]
        %v3230 = vld [vmem:[%s764 + $0x264] sm:$0xf]
        %v3231 = vld [vmem:[%s764 + $0x268] sm:$0xf]
        %v3232 = vld [vmem:[%s764 + $0x26c] sm:$0xf]
        %v3233 = vld [vmem:[%s764 + $0x270] sm:$0xf]
        %v3234 = vld [vmem:[%s764 + $0x274] sm:$0xf]
        %v3235 = vld [vmem:[%s764 + $0x278] sm:$0xf]
        %v3236 = vld [vmem:[%s764 + $0x27c] sm:$0xf]
        %v3237 = vld [vmem:[%s764 + $0x280] sm:$0xf]
        %v3238 = vld [vmem:[%s764 + $0x284] sm:$0xf]
        %v3239 = vld [vmem:[%s764 + $0x288] sm:$0xf]
        %v3240 = vld [vmem:[%s764 + $0x28c] sm:$0xf]
        %v3241 = vld [vmem:[%s764 + $0x290] sm:$0xf]
        %v3242 = vld [vmem:[%s764 + $0x294] sm:$0xf]
        %v3243 = vld [vmem:[%s764 + $0x298] sm:$0xf]
        %v3244 = vld [vmem:[%s764 + $0x29c] sm:$0xf]
        %v3245 = vld [vmem:[%s764 + $0x2a0] sm:$0xf]
        %v3246 = vld [vmem:[%s764 + $0x2a4] sm:$0xf]
        %v3247 = vld [vmem:[%s764 + $0x2a8] sm:$0xf]
        %v3248 = vld [vmem:[%s764 + $0x2ac] sm:$0xf]
        %v3249 = vld [vmem:[%s764 + $0x2b0] sm:$0xf]
        %v3250 = vld [vmem:[%s764 + $0x2b4] sm:$0xf]
        %v3251 = vld [vmem:[%s764 + $0x2b8] sm:$0xf]
        %v3252 = vld [vmem:[%s764 + $0x2bc] sm:$0xf]
        %v3253 = vld [vmem:[%s764 + $0x2c0] sm:$0xf]
        %v3254 = vld [vmem:[%s764 + $0x2c4] sm:$0xf]
        %v3255 = vld [vmem:[%s764 + $0x2c8] sm:$0xf]
        %v3256 = vld [vmem:[%s764 + $0x2cc] sm:$0xf]
        %v3257 = vld [vmem:[%s764 + $0x2d0] sm:$0xf]
        %v3258 = vld [vmem:[%s764 + $0x2d4] sm:$0xf]
        %v3259 = vld [vmem:[%s764 + $0x2d8] sm:$0xf]
        %v3260 = vld [vmem:[%s764 + $0x2dc] sm:$0xf]
        %v3261 = vld [vmem:[%s764 + $0x2e0] sm:$0xf]
        %v3262 = vld [vmem:[%s764 + $0x2e4] sm:$0xf]
        %v3263 = vld [vmem:[%s764 + $0x2e8] sm:$0xf]
        %v3264 = vld [vmem:[%s764 + $0x2ec] sm:$0xf]
        %v3265 = vld [vmem:[%s764 + $0x2f0] sm:$0xf]
        %v3266 = vld [vmem:[%s764 + $0x2f4] sm:$0xf]
        %v3267 = vld [vmem:[%s764 + $0x2f8] sm:$0xf]
        %v3268 = vld [vmem:[%s764 + $0x2fc] sm:$0xf]
        %v3333 = vunpack.c.l.b16 %v3205
        %v3334 = vunpack.c.l.b16 %v3206
        %v3335 = vunpack.c.l.b16 %v3207
        %v3336 = vunpack.c.l.b16 %v3208
        %v3337 = vunpack.c.l.b16 %v3209
        %v3338 = vunpack.c.l.b16 %v3210
        %v3339 = vunpack.c.l.b16 %v3211
        %v3340 = vunpack.c.l.b16 %v3212
        %v3341 = vunpack.c.l.b16 %v3213
        %v3342 = vunpack.c.l.b16 %v3214
        %v3343 = vunpack.c.l.b16 %v3215
        %v3344 = vunpack.c.l.b16 %v3216
        %v3345 = vunpack.c.l.b16 %v3217
        %v3346 = vunpack.c.l.b16 %v3218
        %v3347 = vunpack.c.l.b16 %v3219
        %v3348 = vunpack.c.l.b16 %v3220
        %v3349 = vunpack.c.l.b16 %v3221
        %v3350 = vunpack.c.l.b16 %v3222
        %v3351 = vunpack.c.l.b16 %v3223
        %v3352 = vunpack.c.l.b16 %v3224
        %v3353 = vunpack.c.l.b16 %v3225
        %v3354 = vunpack.c.l.b16 %v3226
        %v3355 = vunpack.c.l.b16 %v3227
        %v3356 = vunpack.c.l.b16 %v3228
        %v3357 = vunpack.c.l.b16 %v3229
        %v3358 = vunpack.c.l.b16 %v3230
        %v3359 = vunpack.c.l.b16 %v3231
        %v3360 = vunpack.c.l.b16 %v3232
        %v3361 = vunpack.c.l.b16 %v3233
        %v3362 = vunpack.c.l.b16 %v3234
        %v3363 = vunpack.c.l.b16 %v3235
        %v3364 = vunpack.c.l.b16 %v3236
        %v3365 = vunpack.c.l.b16 %v3237
        %v3366 = vunpack.c.l.b16 %v3238
        %v3367 = vunpack.c.l.b16 %v3239
        %v3368 = vunpack.c.l.b16 %v3240
        %v3369 = vunpack.c.l.b16 %v3241
        %v3370 = vunpack.c.l.b16 %v3242
        %v3371 = vunpack.c.l.b16 %v3243
        %v3372 = vunpack.c.l.b16 %v3244
        %v3373 = vunpack.c.l.b16 %v3245
        %v3374 = vunpack.c.l.b16 %v3246
        %v3375 = vunpack.c.l.b16 %v3247
        %v3376 = vunpack.c.l.b16 %v3248
        %v3377 = vunpack.c.l.b16 %v3249
        %v3378 = vunpack.c.l.b16 %v3250
        %v3379 = vunpack.c.l.b16 %v3251
        %v3380 = vunpack.c.l.b16 %v3252
        %v3381 = vunpack.c.l.b16 %v3253
        %v3382 = vunpack.c.l.b16 %v3254
        %v3383 = vunpack.c.l.b16 %v3255
        %v3384 = vunpack.c.l.b16 %v3256
        %v3385 = vunpack.c.l.b16 %v3257
        %v3386 = vunpack.c.l.b16 %v3258
        %v3387 = vunpack.c.l.b16 %v3259
        %v3388 = vunpack.c.l.b16 %v3260
        %v3389 = vunpack.c.l.b16 %v3261
        %v3390 = vunpack.c.l.b16 %v3262
        %v3391 = vunpack.c.l.b16 %v3263
        %v3392 = vunpack.c.l.b16 %v3264
        %v3393 = vunpack.c.l.b16 %v3265
        %v3394 = vunpack.c.l.b16 %v3266
        %v3395 = vunpack.c.l.b16 %v3267
        %v3396 = vunpack.c.l.b16 %v3268
        %v3397 = vpack.c.b16 %v3334, %v3333
        %v3398 = vpack.c.b16 %v3336, %v3335
        %v3399 = vpack.c.b16 %v3338, %v3337
        %v3400 = vpack.c.b16 %v3340, %v3339
        %v3401 = vpack.c.b16 %v3342, %v3341
        %v3402 = vpack.c.b16 %v3344, %v3343
        %v3403 = vpack.c.b16 %v3346, %v3345
        %v3404 = vpack.c.b16 %v3348, %v3347
        %v3405 = vpack.c.b16 %v3350, %v3349
        %v3406 = vpack.c.b16 %v3352, %v3351
        %v3407 = vpack.c.b16 %v3354, %v3353
        %v3408 = vpack.c.b16 %v3356, %v3355
        %v3409 = vpack.c.b16 %v3358, %v3357
        %v3410 = vpack.c.b16 %v3360, %v3359
        %v3411 = vpack.c.b16 %v3362, %v3361
        %v3412 = vpack.c.b16 %v3364, %v3363
        %v3413 = vpack.c.b16 %v3366, %v3365
        %v3414 = vpack.c.b16 %v3368, %v3367
        %v3415 = vpack.c.b16 %v3370, %v3369
        %v3416 = vpack.c.b16 %v3372, %v3371
        %v3417 = vpack.c.b16 %v3374, %v3373
        %v3418 = vpack.c.b16 %v3376, %v3375
        %v3419 = vpack.c.b16 %v3378, %v3377
        %v3420 = vpack.c.b16 %v3380, %v3379
        %v3421 = vpack.c.b16 %v3382, %v3381
        %v3422 = vpack.c.b16 %v3384, %v3383
        %v3423 = vpack.c.b16 %v3386, %v3385
        %v3424 = vpack.c.b16 %v3388, %v3387
        %v3425 = vpack.c.b16 %v3390, %v3389
        %v3426 = vpack.c.b16 %v3392, %v3391
        %v3427 = vpack.c.b16 %v3394, %v3393
        %v3428 = vpack.c.b16 %v3396, %v3395
        %3461 = vmatprep.subr.bf16.mxu0 0
        %3462 = vmatpush1.bf16.msra.mxu0 %v3404
        %3463 = vmatprep.subr.bf16.mxu0 0
        %3464 = vmatpush1.bf16.msra.mxu0 %v3403
        %3465 = vmatprep.subr.bf16.mxu0 0
        %3466 = vmatpush1.bf16.msra.mxu0 %v3402
        %3467 = vmatprep.subr.bf16.mxu0 0
        %3468 = vmatpush1.bf16.msra.mxu0 %v3401
        %3469 = vmatprep.subr.bf16.mxu0 0
        %3470 = vmatpush1.bf16.msra.mxu0 %v3400
        %3471 = vmatprep.subr.bf16.mxu0 0
        %3472 = vmatpush1.bf16.msra.mxu0 %v3399
        %3473 = vmatprep.subr.bf16.mxu0 0
        %3474 = vmatpush1.bf16.msra.mxu0 %v3398
        %3475 = vmatprep.subr.bf16.mxu0 0
        %3476 = vmatpush1.bf16.msra.mxu0 %v3397
        %3477 = vmatprep.subr.bf16.mxu0 0
        %3478 = vmatpush2.bf16.msra.mxu0 %v3412
        %3479 = vmatprep.subr.bf16.mxu0 0
        %3480 = vmatpush2.bf16.msra.mxu0 %v3411
        %3481 = vmatprep.subr.bf16.mxu0 0
        %3482 = vmatpush2.bf16.msra.mxu0 %v3410
        %3483 = vmatprep.subr.bf16.mxu0 0
        %3484 = vmatpush2.bf16.msra.mxu0 %v3409
        %3485 = vmatprep.subr.bf16.mxu0 0
        %3486 = vmatpush2.bf16.msra.mxu0 %v3408
        %3487 = vmatprep.subr.bf16.mxu0 0
        %3488 = vmatpush2.bf16.msra.mxu0 %v3407
        %3489 = vmatprep.subr.bf16.mxu0 0
        %3490 = vmatpush2.bf16.msra.mxu0 %v3406
        %3491 = vmatprep.subr.bf16.mxu0 0
        %3492 = vmatpush2.bf16.msra.mxu0 %v3405
        %3493 = vmatprep.mubr.bf16.mxu0 %v3202
        %3494 = vmatmul.mubr.bf16.gmra.mxu0 %v3201
        %v3495 = vpop.f32.mrf.mxu0
        %v3496 = vadd.f32 0.0, %v3495
        %v3497 = vpop.f32.mrf.mxu0
        %v3498 = vpop.f32.mrf.mxu0
        %v3499 = vadd.f32 0.0, %v3498
        %v3500 = vpop.f32.mrf.mxu0
        %3501 = vdwg.mxu0
        %3502 = vmatprep.subr.bf16.mxu0 0
        %3503 = vmatpush1.bf16.msra.mxu0 %v3420
        %3504 = vmatprep.subr.bf16.mxu0 0
        %3505 = vmatpush1.bf16.msra.mxu0 %v3419
        %3506 = vmatprep.subr.bf16.mxu0 0
        %3507 = vmatpush1.bf16.msra.mxu0 %v3418
        %3508 = vmatprep.subr.bf16.mxu0 0
        %3509 = vmatpush1.bf16.msra.mxu0 %v3417
        %3510 = vmatprep.subr.bf16.mxu0 0
        %3511 = vmatpush1.bf16.msra.mxu0 %v3416
        %3512 = vmatprep.subr.bf16.mxu0 0
        %3513 = vmatpush1.bf16.msra.mxu0 %v3415
        %3514 = vmatprep.subr.bf16.mxu0 0
        %3515 = vmatpush1.bf16.msra.mxu0 %v3414
        %3516 = vmatprep.subr.bf16.mxu0 0
        %3517 = vmatpush1.bf16.msra.mxu0 %v3413
        %3518 = vmatprep.subr.bf16.mxu0 0
        %3519 = vmatpush2.bf16.msra.mxu0 %v3428
        %3520 = vmatprep.subr.bf16.mxu0 0
        %3521 = vmatpush2.bf16.msra.mxu0 %v3427
        %3522 = vmatprep.subr.bf16.mxu0 0
        %3523 = vmatpush2.bf16.msra.mxu0 %v3426
        %3524 = vmatprep.subr.bf16.mxu0 0
        %3525 = vmatpush2.bf16.msra.mxu0 %v3425
        %3526 = vmatprep.subr.bf16.mxu0 0
        %3527 = vmatpush2.bf16.msra.mxu0 %v3424
        %3528 = vmatprep.subr.bf16.mxu0 0
        %3529 = vmatpush2.bf16.msra.mxu0 %v3423
        %3530 = vmatprep.subr.bf16.mxu0 0
        %3531 = vmatpush2.bf16.msra.mxu0 %v3422
        %3532 = vmatprep.subr.bf16.mxu0 0
        %3533 = vmatpush2.bf16.msra.mxu0 %v3421
        %3534 = vmatprep.mubr.bf16.mxu0 %v3204
        %3535 = vmatmul.mubr.bf16.gmra.mxu0 %v3203
        %v3536 = vpop.f32.mrf.mxu0
        %v3537 = vadd.f32 %v3496, %v3536
        %v3538 = vpop.f32.mrf.mxu0
        %v3539 = vpop.f32.mrf.mxu0
        %v3540 = vadd.f32 %v3499, %v3539
        %v3541 = vpop.f32.mrf.mxu0
        %3542 = vdwg.mxu0
        %v3543 = vadd.f32 %v3031, %v3537
        %v3544 = vadd.f32 %v3034, %v3540
        %v3545 = vld [vmem:[%s755 + $0x30] sm:$0xff]
        %v3546 = vld [vmem:[%s755 + $0x38] sm:$0xff]
        %v3547 = vld [vmem:[%s755 + $0x70] sm:$0xff]
        %v3548 = vld [vmem:[%s755 + $0x78] sm:$0xff]
        %v3549 = vld [vmem:[%s755 + $0xb0] sm:$0xff]
        %v3550 = vld [vmem:[%s755 + $0xb8] sm:$0xff]
        %v3551 = vld [vmem:[%s755 + $0xf0] sm:$0xff]
        %v3552 = vld [vmem:[%s755 + $0xf8] sm:$0xff]
        %v3553 = vld [vmem:[%s759 + $0xc] sm:$0xf]
        %v3555 = vlaneseq
        %v3556 = vshrl.u32 %v3555, 7
        %v3557 = vsub.s32 0, %v3556
        %v3558 = vrot.slane %v3553, %v3557
        %v3559 = vlaneseq
        %v3560 = vshrl.u32 %v3559, 7
        %v3561 = vsub.s32 1, %v3560
        %v3562 = vrot.slane %v3553, %v3561
        %v3563 = vlaneseq
        %v3564 = vshrl.u32 %v3563, 7
        %v3565 = vsub.s32 2, %v3564
        %v3566 = vrot.slane %v3553, %v3565
        %v3567 = vlaneseq
        %v3568 = vshrl.u32 %v3567, 7
        %v3569 = vsub.s32 3, %v3568
        %v3570 = vrot.slane %v3553, %v3569
        %v3583 = vunpack.c.l.b16 %v3545
        %v3584 = vunpack.c.h.b16 %v3545
        %v3585 = vunpack.c.l.b16 %v3546
        %v3586 = vunpack.c.h.b16 %v3546
        %v3587 = vunpack.c.l.b16 %v3547
        %v3588 = vunpack.c.h.b16 %v3547
        %v3589 = vunpack.c.l.b16 %v3548
        %v3590 = vunpack.c.h.b16 %v3548
        %v3591 = vunpack.c.l.b16 %v3549
        %v3592 = vunpack.c.h.b16 %v3549
        %v3593 = vunpack.c.l.b16 %v3550
        %v3594 = vunpack.c.h.b16 %v3550
        %v3595 = vunpack.c.l.b16 %v3551
        %v3596 = vunpack.c.h.b16 %v3551
        %v3597 = vunpack.c.l.b16 %v3552
        %v3598 = vunpack.c.h.b16 %v3552
        %v3599 = vpack.c.b16 %v3587, %v3583
        %v3600 = vpack.c.b16 %v3588, %v3584
        %v3601 = vpack.c.b16 %v3589, %v3585
        %v3602 = vpack.c.b16 %v3590, %v3586
        %v3603 = vpack.c.b16 %v3595, %v3591
        %v3604 = vpack.c.b16 %v3596, %v3592
        %v3605 = vpack.c.b16 %v3597, %v3593
        %v3606 = vpack.c.b16 %v3598, %v3594
        %3615 = vmatprep.subr.bf16.mxu0 0
        %3616 = vmatpush1.bf16.msra.mxu0 0
        %3617 = vmatprep.subr.bf16.mxu0 0
        %3618 = vmatpush1.bf16.msra.mxu0 0
        %3619 = vmatprep.subr.bf16.mxu0 0
        %3620 = vmatpush1.bf16.msra.mxu0 0
        %3621 = vmatprep.subr.bf16.mxu0 0
        %3622 = vmatpush1.bf16.msra.mxu0 0
        %3623 = vmatprep.subr.bf16.mxu0 0
        %3624 = vmatpush1.bf16.msra.mxu0 0
        %3625 = vmatprep.subr.bf16.mxu0 0
        %3626 = vmatpush1.bf16.msra.mxu0 0
        %3627 = vmatprep.subr.bf16.mxu0 %v3604
        %3628 = vmatpush1.bf16.msra.mxu0 %v3603
        %3629 = vmatprep.subr.bf16.mxu0 %v3600
        %3630 = vmatpush1.bf16.msra.mxu0 %v3599
        %3631 = vmatprep.subr.bf16.mxu0 0
        %3632 = vmatpush2.bf16.msra.mxu0 0
        %3633 = vmatprep.subr.bf16.mxu0 0
        %3634 = vmatpush2.bf16.msra.mxu0 0
        %3635 = vmatprep.subr.bf16.mxu0 0
        %3636 = vmatpush2.bf16.msra.mxu0 0
        %3637 = vmatprep.subr.bf16.mxu0 0
        %3638 = vmatpush2.bf16.msra.mxu0 0
        %3639 = vmatprep.subr.bf16.mxu0 0
        %3640 = vmatpush2.bf16.msra.mxu0 0
        %3641 = vmatprep.subr.bf16.mxu0 0
        %3642 = vmatpush2.bf16.msra.mxu0 0
        %3643 = vmatprep.subr.bf16.mxu0 0
        %3644 = vmatpush2.bf16.msra.mxu0 0
        %3645 = vmatprep.subr.bf16.mxu0 0
        %3646 = vmatpush2.bf16.msra.mxu0 0
        %3647 = vmatprep.mubr.bf16.mxu0 0
        %3648 = vmatmul.mubr.bf16.gmra.mxu0 %v2093
        %v3649 = vpop.f32.mrf.mxu0
        %v3650 = vadd.f32 %v3558, %v3649
        %v3651 = vpop.f32.mrf.mxu0
        %v3652 = vadd.f32 %v3562, %v3651
        %v3653 = vpop.f32.mrf.mxu0
        %v3654 = vadd.f32 %v3558, %v3653
        %v3655 = vpop.f32.mrf.mxu0
        %v3656 = vadd.f32 %v3562, %v3655
        %3657 = vdwg.mxu0
        %3658 = vmatprep.subr.bf16.mxu0 0
        %3659 = vmatpush1.bf16.msra.mxu0 0
        %3660 = vmatprep.subr.bf16.mxu0 0
        %3661 = vmatpush1.bf16.msra.mxu0 0
        %3662 = vmatprep.subr.bf16.mxu0 0
        %3663 = vmatpush1.bf16.msra.mxu0 0
        %3664 = vmatprep.subr.bf16.mxu0 0
        %3665 = vmatpush1.bf16.msra.mxu0 0
        %3666 = vmatprep.subr.bf16.mxu0 0
        %3667 = vmatpush1.bf16.msra.mxu0 0
        %3668 = vmatprep.subr.bf16.mxu0 0
        %3669 = vmatpush1.bf16.msra.mxu0 0
        %3670 = vmatprep.subr.bf16.mxu0 %v3606
        %3671 = vmatpush1.bf16.msra.mxu0 %v3605
        %3672 = vmatprep.subr.bf16.mxu0 %v3602
        %3673 = vmatpush1.bf16.msra.mxu0 %v3601
        %3674 = vmatprep.subr.bf16.mxu0 0
        %3675 = vmatpush2.bf16.msra.mxu0 0
        %3676 = vmatprep.subr.bf16.mxu0 0
        %3677 = vmatpush2.bf16.msra.mxu0 0
        %3678 = vmatprep.subr.bf16.mxu0 0
        %3679 = vmatpush2.bf16.msra.mxu0 0
        %3680 = vmatprep.subr.bf16.mxu0 0
        %3681 = vmatpush2.bf16.msra.mxu0 0
        %3682 = vmatprep.subr.bf16.mxu0 0
        %3683 = vmatpush2.bf16.msra.mxu0 0
        %3684 = vmatprep.subr.bf16.mxu0 0
        %3685 = vmatpush2.bf16.msra.mxu0 0
        %3686 = vmatprep.subr.bf16.mxu0 0
        %3687 = vmatpush2.bf16.msra.mxu0 0
        %3688 = vmatprep.subr.bf16.mxu0 0
        %3689 = vmatpush2.bf16.msra.mxu0 0
        %3690 = vmatprep.mubr.bf16.mxu0 0
        %3691 = vmatmul.mubr.bf16.gmra.mxu0 %v2093
        %v3692 = vpop.f32.mrf.mxu0
        %v3693 = vadd.f32 %v3566, %v3692
        %v3694 = vpop.f32.mrf.mxu0
        %v3695 = vadd.f32 %v3570, %v3694
        %v3696 = vpop.f32.mrf.mxu0
        %v3697 = vadd.f32 %v3566, %v3696
        %v3698 = vpop.f32.mrf.mxu0
        %v3699 = vadd.f32 %v3570, %v3698
        %3700 = vdwg.mxu0
        %v3701 = vmax.f32 %v3650, 0.0
        %v3702 = vmax.f32 %v3652, 0.0
        %v3703 = vmax.f32 %v3693, 0.0
        %v3704 = vmax.f32 %v3695, 0.0
        %v3705 = vmax.f32 %v3654, 0.0
        %v3706 = vmax.f32 %v3656, 0.0
        %v3707 = vmax.f32 %v3697, 0.0
        %v3708 = vmax.f32 %v3699, 0.0
        %v3709 = vpack.c.bf16 %v3705, %v3701
        %v3710 = vpack.c.bf16 %v3706, %v3702
        %v3711 = vpack.c.bf16 %v3707, %v3703
        %v3712 = vpack.c.bf16 %v3708, %v3704
        %v3713 = vld [vmem:[%s764 + $0x300] sm:$0xf]
        %v3714 = vld [vmem:[%s764 + $0x304] sm:$0xf]
        %v3715 = vld [vmem:[%s764 + $0x308] sm:$0xf]
        %v3716 = vld [vmem:[%s764 + $0x30c] sm:$0xf]
        %v3717 = vld [vmem:[%s764 + $0x310] sm:$0xf]
        %v3718 = vld [vmem:[%s764 + $0x314] sm:$0xf]
        %v3719 = vld [vmem:[%s764 + $0x318] sm:$0xf]
        %v3720 = vld [vmem:[%s764 + $0x31c] sm:$0xf]
        %v3721 = vld [vmem:[%s764 + $0x320] sm:$0xf]
        %v3722 = vld [vmem:[%s764 + $0x324] sm:$0xf]
        %v3723 = vld [vmem:[%s764 + $0x328] sm:$0xf]
        %v3724 = vld [vmem:[%s764 + $0x32c] sm:$0xf]
        %v3725 = vld [vmem:[%s764 + $0x330] sm:$0xf]
        %v3726 = vld [vmem:[%s764 + $0x334] sm:$0xf]
        %v3727 = vld [vmem:[%s764 + $0x338] sm:$0xf]
        %v3728 = vld [vmem:[%s764 + $0x33c] sm:$0xf]
        %v3729 = vld [vmem:[%s764 + $0x340] sm:$0xf]
        %v3730 = vld [vmem:[%s764 + $0x344] sm:$0xf]
        %v3731 = vld [vmem:[%s764 + $0x348] sm:$0xf]
        %v3732 = vld [vmem:[%s764 + $0x34c] sm:$0xf]
        %v3733 = vld [vmem:[%s764 + $0x350] sm:$0xf]
        %v3734 = vld [vmem:[%s764 + $0x354] sm:$0xf]
        %v3735 = vld [vmem:[%s764 + $0x358] sm:$0xf]
        %v3736 = vld [vmem:[%s764 + $0x35c] sm:$0xf]
        %v3737 = vld [vmem:[%s764 + $0x360] sm:$0xf]
        %v3738 = vld [vmem:[%s764 + $0x364] sm:$0xf]
        %v3739 = vld [vmem:[%s764 + $0x368] sm:$0xf]
        %v3740 = vld [vmem:[%s764 + $0x36c] sm:$0xf]
        %v3741 = vld [vmem:[%s764 + $0x370] sm:$0xf]
        %v3742 = vld [vmem:[%s764 + $0x374] sm:$0xf]
        %v3743 = vld [vmem:[%s764 + $0x378] sm:$0xf]
        %v3744 = vld [vmem:[%s764 + $0x37c] sm:$0xf]
        %v3745 = vld [vmem:[%s764 + $0x380] sm:$0xf]
        %v3746 = vld [vmem:[%s764 + $0x384] sm:$0xf]
        %v3747 = vld [vmem:[%s764 + $0x388] sm:$0xf]
        %v3748 = vld [vmem:[%s764 + $0x38c] sm:$0xf]
        %v3749 = vld [vmem:[%s764 + $0x390] sm:$0xf]
        %v3750 = vld [vmem:[%s764 + $0x394] sm:$0xf]
        %v3751 = vld [vmem:[%s764 + $0x398] sm:$0xf]
        %v3752 = vld [vmem:[%s764 + $0x39c] sm:$0xf]
        %v3753 = vld [vmem:[%s764 + $0x3a0] sm:$0xf]
        %v3754 = vld [vmem:[%s764 + $0x3a4] sm:$0xf]
        %v3755 = vld [vmem:[%s764 + $0x3a8] sm:$0xf]
        %v3756 = vld [vmem:[%s764 + $0x3ac] sm:$0xf]
        %v3757 = vld [vmem:[%s764 + $0x3b0] sm:$0xf]
        %v3758 = vld [vmem:[%s764 + $0x3b4] sm:$0xf]
        %v3759 = vld [vmem:[%s764 + $0x3b8] sm:$0xf]
        %v3760 = vld [vmem:[%s764 + $0x3bc] sm:$0xf]
        %v3761 = vld [vmem:[%s764 + $0x3c0] sm:$0xf]
        %v3762 = vld [vmem:[%s764 + $0x3c4] sm:$0xf]
        %v3763 = vld [vmem:[%s764 + $0x3c8] sm:$0xf]
        %v3764 = vld [vmem:[%s764 + $0x3cc] sm:$0xf]
        %v3765 = vld [vmem:[%s764 + $0x3d0] sm:$0xf]
        %v3766 = vld [vmem:[%s764 + $0x3d4] sm:$0xf]
        %v3767 = vld [vmem:[%s764 + $0x3d8] sm:$0xf]
        %v3768 = vld [vmem:[%s764 + $0x3dc] sm:$0xf]
        %v3769 = vld [vmem:[%s764 + $0x3e0] sm:$0xf]
        %v3770 = vld [vmem:[%s764 + $0x3e4] sm:$0xf]
        %v3771 = vld [vmem:[%s764 + $0x3e8] sm:$0xf]
        %v3772 = vld [vmem:[%s764 + $0x3ec] sm:$0xf]
        %v3773 = vld [vmem:[%s764 + $0x3f0] sm:$0xf]
        %v3774 = vld [vmem:[%s764 + $0x3f4] sm:$0xf]
        %v3775 = vld [vmem:[%s764 + $0x3f8] sm:$0xf]
        %v3776 = vld [vmem:[%s764 + $0x3fc] sm:$0xf]
        %v3841 = vunpack.c.l.b16 %v3713
        %v3842 = vunpack.c.l.b16 %v3714
        %v3843 = vunpack.c.l.b16 %v3715
        %v3844 = vunpack.c.l.b16 %v3716
        %v3845 = vunpack.c.l.b16 %v3717
        %v3846 = vunpack.c.l.b16 %v3718
        %v3847 = vunpack.c.l.b16 %v3719
        %v3848 = vunpack.c.l.b16 %v3720
        %v3849 = vunpack.c.l.b16 %v3721
        %v3850 = vunpack.c.l.b16 %v3722
        %v3851 = vunpack.c.l.b16 %v3723
        %v3852 = vunpack.c.l.b16 %v3724
        %v3853 = vunpack.c.l.b16 %v3725
        %v3854 = vunpack.c.l.b16 %v3726
        %v3855 = vunpack.c.l.b16 %v3727
        %v3856 = vunpack.c.l.b16 %v3728
        %v3857 = vunpack.c.l.b16 %v3729
        %v3858 = vunpack.c.l.b16 %v3730
        %v3859 = vunpack.c.l.b16 %v3731
        %v3860 = vunpack.c.l.b16 %v3732
        %v3861 = vunpack.c.l.b16 %v3733
        %v3862 = vunpack.c.l.b16 %v3734
        %v3863 = vunpack.c.l.b16 %v3735
        %v3864 = vunpack.c.l.b16 %v3736
        %v3865 = vunpack.c.l.b16 %v3737
        %v3866 = vunpack.c.l.b16 %v3738
        %v3867 = vunpack.c.l.b16 %v3739
        %v3868 = vunpack.c.l.b16 %v3740
        %v3869 = vunpack.c.l.b16 %v3741
        %v3870 = vunpack.c.l.b16 %v3742
        %v3871 = vunpack.c.l.b16 %v3743
        %v3872 = vunpack.c.l.b16 %v3744
        %v3873 = vunpack.c.l.b16 %v3745
        %v3874 = vunpack.c.l.b16 %v3746
        %v3875 = vunpack.c.l.b16 %v3747
        %v3876 = vunpack.c.l.b16 %v3748
        %v3877 = vunpack.c.l.b16 %v3749
        %v3878 = vunpack.c.l.b16 %v3750
        %v3879 = vunpack.c.l.b16 %v3751
        %v3880 = vunpack.c.l.b16 %v3752
        %v3881 = vunpack.c.l.b16 %v3753
        %v3882 = vunpack.c.l.b16 %v3754
        %v3883 = vunpack.c.l.b16 %v3755
        %v3884 = vunpack.c.l.b16 %v3756
        %v3885 = vunpack.c.l.b16 %v3757
        %v3886 = vunpack.c.l.b16 %v3758
        %v3887 = vunpack.c.l.b16 %v3759
        %v3888 = vunpack.c.l.b16 %v3760
        %v3889 = vunpack.c.l.b16 %v3761
        %v3890 = vunpack.c.l.b16 %v3762
        %v3891 = vunpack.c.l.b16 %v3763
        %v3892 = vunpack.c.l.b16 %v3764
        %v3893 = vunpack.c.l.b16 %v3765
        %v3894 = vunpack.c.l.b16 %v3766
        %v3895 = vunpack.c.l.b16 %v3767
        %v3896 = vunpack.c.l.b16 %v3768
        %v3897 = vunpack.c.l.b16 %v3769
        %v3898 = vunpack.c.l.b16 %v3770
        %v3899 = vunpack.c.l.b16 %v3771
        %v3900 = vunpack.c.l.b16 %v3772
        %v3901 = vunpack.c.l.b16 %v3773
        %v3902 = vunpack.c.l.b16 %v3774
        %v3903 = vunpack.c.l.b16 %v3775
        %v3904 = vunpack.c.l.b16 %v3776
        %v3905 = vpack.c.b16 %v3842, %v3841
        %v3906 = vpack.c.b16 %v3844, %v3843
        %v3907 = vpack.c.b16 %v3846, %v3845
        %v3908 = vpack.c.b16 %v3848, %v3847
        %v3909 = vpack.c.b16 %v3850, %v3849
        %v3910 = vpack.c.b16 %v3852, %v3851
        %v3911 = vpack.c.b16 %v3854, %v3853
        %v3912 = vpack.c.b16 %v3856, %v3855
        %v3913 = vpack.c.b16 %v3858, %v3857
        %v3914 = vpack.c.b16 %v3860, %v3859
        %v3915 = vpack.c.b16 %v3862, %v3861
        %v3916 = vpack.c.b16 %v3864, %v3863
        %v3917 = vpack.c.b16 %v3866, %v3865
        %v3918 = vpack.c.b16 %v3868, %v3867
        %v3919 = vpack.c.b16 %v3870, %v3869
        %v3920 = vpack.c.b16 %v3872, %v3871
        %v3921 = vpack.c.b16 %v3874, %v3873
        %v3922 = vpack.c.b16 %v3876, %v3875
        %v3923 = vpack.c.b16 %v3878, %v3877
        %v3924 = vpack.c.b16 %v3880, %v3879
        %v3925 = vpack.c.b16 %v3882, %v3881
        %v3926 = vpack.c.b16 %v3884, %v3883
        %v3927 = vpack.c.b16 %v3886, %v3885
        %v3928 = vpack.c.b16 %v3888, %v3887
        %v3929 = vpack.c.b16 %v3890, %v3889
        %v3930 = vpack.c.b16 %v3892, %v3891
        %v3931 = vpack.c.b16 %v3894, %v3893
        %v3932 = vpack.c.b16 %v3896, %v3895
        %v3933 = vpack.c.b16 %v3898, %v3897
        %v3934 = vpack.c.b16 %v3900, %v3899
        %v3935 = vpack.c.b16 %v3902, %v3901
        %v3936 = vpack.c.b16 %v3904, %v3903
        %3969 = vmatprep.subr.bf16.mxu0 0
        %3970 = vmatpush1.bf16.msra.mxu0 %v3912
        %3971 = vmatprep.subr.bf16.mxu0 0
        %3972 = vmatpush1.bf16.msra.mxu0 %v3911
        %3973 = vmatprep.subr.bf16.mxu0 0
        %3974 = vmatpush1.bf16.msra.mxu0 %v3910
        %3975 = vmatprep.subr.bf16.mxu0 0
        %3976 = vmatpush1.bf16.msra.mxu0 %v3909
        %3977 = vmatprep.subr.bf16.mxu0 0
        %3978 = vmatpush1.bf16.msra.mxu0 %v3908
        %3979 = vmatprep.subr.bf16.mxu0 0
        %3980 = vmatpush1.bf16.msra.mxu0 %v3907
        %3981 = vmatprep.subr.bf16.mxu0 0
        %3982 = vmatpush1.bf16.msra.mxu0 %v3906
        %3983 = vmatprep.subr.bf16.mxu0 0
        %3984 = vmatpush1.bf16.msra.mxu0 %v3905
        %3985 = vmatprep.subr.bf16.mxu0 0
        %3986 = vmatpush2.bf16.msra.mxu0 %v3920
        %3987 = vmatprep.subr.bf16.mxu0 0
        %3988 = vmatpush2.bf16.msra.mxu0 %v3919
        %3989 = vmatprep.subr.bf16.mxu0 0
        %3990 = vmatpush2.bf16.msra.mxu0 %v3918
        %3991 = vmatprep.subr.bf16.mxu0 0
        %3992 = vmatpush2.bf16.msra.mxu0 %v3917
        %3993 = vmatprep.subr.bf16.mxu0 0
        %3994 = vmatpush2.bf16.msra.mxu0 %v3916
        %3995 = vmatprep.subr.bf16.mxu0 0
        %3996 = vmatpush2.bf16.msra.mxu0 %v3915
        %3997 = vmatprep.subr.bf16.mxu0 0
        %3998 = vmatpush2.bf16.msra.mxu0 %v3914
        %3999 = vmatprep.subr.bf16.mxu0 0
        %4000 = vmatpush2.bf16.msra.mxu0 %v3913
        %4001 = vmatprep.mubr.bf16.mxu0 %v3710
        %4002 = vmatmul.mubr.bf16.gmra.mxu0 %v3709
        %v4003 = vpop.f32.mrf.mxu0
        %v4004 = vadd.f32 0.0, %v4003
        %v4005 = vpop.f32.mrf.mxu0
        %v4006 = vpop.f32.mrf.mxu0
        %v4007 = vadd.f32 0.0, %v4006
        %v4008 = vpop.f32.mrf.mxu0
        %4009 = vdwg.mxu0
        %4010 = vmatprep.subr.bf16.mxu0 0
        %4011 = vmatpush1.bf16.msra.mxu0 %v3928
        %4012 = vmatprep.subr.bf16.mxu0 0
        %4013 = vmatpush1.bf16.msra.mxu0 %v3927
        %4014 = vmatprep.subr.bf16.mxu0 0
        %4015 = vmatpush1.bf16.msra.mxu0 %v3926
        %4016 = vmatprep.subr.bf16.mxu0 0
        %4017 = vmatpush1.bf16.msra.mxu0 %v3925
        %4018 = vmatprep.subr.bf16.mxu0 0
        %4019 = vmatpush1.bf16.msra.mxu0 %v3924
        %4020 = vmatprep.subr.bf16.mxu0 0
        %4021 = vmatpush1.bf16.msra.mxu0 %v3923
        %4022 = vmatprep.subr.bf16.mxu0 0
        %4023 = vmatpush1.bf16.msra.mxu0 %v3922
        %4024 = vmatprep.subr.bf16.mxu0 0
        %4025 = vmatpush1.bf16.msra.mxu0 %v3921
        %4026 = vmatprep.subr.bf16.mxu0 0
        %4027 = vmatpush2.bf16.msra.mxu0 %v3936
        %4028 = vmatprep.subr.bf16.mxu0 0
        %4029 = vmatpush2.bf16.msra.mxu0 %v3935
        %4030 = vmatprep.subr.bf16.mxu0 0
        %4031 = vmatpush2.bf16.msra.mxu0 %v3934
        %4032 = vmatprep.subr.bf16.mxu0 0
        %4033 = vmatpush2.bf16.msra.mxu0 %v3933
        %4034 = vmatprep.subr.bf16.mxu0 0
        %4035 = vmatpush2.bf16.msra.mxu0 %v3932
        %4036 = vmatprep.subr.bf16.mxu0 0
        %4037 = vmatpush2.bf16.msra.mxu0 %v3931
        %4038 = vmatprep.subr.bf16.mxu0 0
        %4039 = vmatpush2.bf16.msra.mxu0 %v3930
        %4040 = vmatprep.subr.bf16.mxu0 0
        %4041 = vmatpush2.bf16.msra.mxu0 %v3929
        %4042 = vmatprep.mubr.bf16.mxu0 %v3712
        %4043 = vmatmul.mubr.bf16.gmra.mxu0 %v3711
        %v4044 = vpop.f32.mrf.mxu0
        %v4045 = vadd.f32 %v4004, %v4044
        %v4046 = vpop.f32.mrf.mxu0
        %v4047 = vpop.f32.mrf.mxu0
        %v4048 = vadd.f32 %v4007, %v4047
        %v4049 = vpop.f32.mrf.mxu0
        %4050 = vdwg.mxu0
        %v4051 = vadd.f32 %v3543, %v4045
        %v4052 = vadd.f32 %v3544, %v4048
        %v4053 = vld [vmem:[%s767] sm:$0x1]
        %v4055 = vlaneseq
        %v4056 = vshrl.u32 %v4055, 7
        %v4057 = vsub.s32 0, %v4056
        %v4058 = vrot.slane %v4053, %v4057
        %v4060 = vadd.f32 %v4051, %v4058
        %v4061 = vadd.f32 %v4052, %v4058
        %v4062 = vadd.f32 %v2019, %v4060
        %v4063 = vadd.f32 %v2020, %v4061
        %v4064 = vld [vmem:[%s747] sm:$0x1]
        %v4065 = vld [vmem:[%s750] sm:$0x1]
        %v4066 = vsel %vm810, %v4062, 0.0
        %4067 = vadd.xlane.f32.xlu0 %v4066
        %v4068 = vpop.xlane.xlu0 %4067
        %v4069 = vsel %vm810, %v4063, 0.0
        %4070 = vadd.xlane.f32.xlu0 %v4069
        %v4071 = vpop.xlane.xlu0 %4070
        %v4072 = vmul.f32 %v4068, %v1984
        %v4073 = vmul.f32 %v4071, %v1984
        %v4074 = vsub.f32 %v4062, %v4072
        %v4075 = vsub.f32 %v4063, %v4073
        %v4076 = vmul.f32 %v4074, %v4074
        %v4077 = vmul.f32 %v4075, %v4075
        %v4078 = vsel %vm810, %v4076, 0.0
        %4079 = vadd.xlane.f32.xlu0 %v4078
        %v4080 = vpop.xlane.xlu0 %4079
        %v4081 = vsel %vm810, %v4077, 0.0
        %4082 = vadd.xlane.f32.xlu0 %v4081
        %v4083 = vpop.xlane.xlu0 %4082
        %v4084 = vmul.f32 %v4080, %v1984
        %v4085 = vmul.f32 %v4083, %v1984
        %v4086 = vadd.f32 %v4084, 1e-05
        %v4087 = vadd.f32 %v4085, 1e-05
        %v4088 = vrsqrt.pop %v4086
        %v4089 = vrsqrt.pop %v4087
        %v4090 = vmul.f32 %v4074, %v4088
        %v4091 = vmul.f32 %v4075, %v4089
        %v4093 = vlaneseq
        %v4094 = vshrl.u32 %v4093, 7
        %v4095 = vsub.s32 0, %v4094
        %v4096 = vrot.slane %v4064, %v4095
        %v4098 = vmul.f32 %v4090, %v4096
        %v4099 = vmul.f32 %v4091, %v4096
        %v4101 = vlaneseq
        %v4102 = vshrl.u32 %v4101, 7
        %v4103 = vsub.s32 0, %v4102
        %v4104 = vrot.slane %v4065, %v4103
        %v4106 = vadd.f32 %v4098, %v4104
        %v4107 = vadd.f32 %v4099, %v4104
        %4108 = vst.msk [vmem:[#allocation2] sm:$0xff] %vm810, %v4106
        %4109 = vst.msk [vmem:[#allocation2 + $0x8] sm:$0xff] %vm810, %v4107
        %p4110 = scmp.eq.s32.totalorder %s34, 1
        // Predicated region
        $region93: #{tpu_custom_call.1} parent=87 // pred_check
          %p4111 = pneg %p4110
        $region94: #{tpu_custom_call.1} parent=87 // pred_check_branch
          %4113 = sbr.rel (%p4111) target = $region96
        $region95: #{tpu_custom_call.1} parent=87 // pred_region
          %v4114 = vpack.c.bf16 %v4107, %v4106
          %v4115 = vld [vmem:[%s15] sm:$0xf]
          %v4116 = vld [vmem:[%s15 + $0x4] sm:$0xf]
          %v4117 = vld [vmem:[%s15 + $0x8] sm:$0xf]
          %v4118 = vld [vmem:[%s15 + $0xc] sm:$0xf]
          %v4119 = vld [vmem:[%s16] sm:$0x1]
          %v4121 = vlaneseq
          %v4122 = vshrl.u32 %v4121, 7
          %v4123 = vsub.s32 0, %v4122
          %v4124 = vrot.slane %v4119, %v4123
          %v4130 = vunpack.c.l.b16 %v4115
          %v4131 = vunpack.c.l.b16 %v4116
          %v4132 = vunpack.c.l.b16 %v4117
          %v4133 = vunpack.c.l.b16 %v4118
          %v4134 = vpack.c.b16 %v4131, %v4130
          %v4135 = vpack.c.b16 %v4133, %v4132
          %v4139 = vsel %vm810, %v4114, 0
          %4141 = vmatprep.subr.bf16.mxu0 0
          %4142 = vmatpush1.bf16.msra.mxu0 0
          %4143 = vmatprep.subr.bf16.mxu0 0
          %4144 = vmatpush1.bf16.msra.mxu0 0
          %4145 = vmatprep.subr.bf16.mxu0 0
          %4146 = vmatpush1.bf16.msra.mxu0 0
          %4147 = vmatprep.subr.bf16.mxu0 0
          %4148 = vmatpush1.bf16.msra.mxu0 0
          %4149 = vmatprep.subr.bf16.mxu0 0
          %4150 = vmatpush1.bf16.msra.mxu0 0
          %4151 = vmatprep.subr.bf16.mxu0 0
          %4152 = vmatpush1.bf16.msra.mxu0 0
          %4153 = vmatprep.subr.bf16.mxu0 0
          %4154 = vmatpush1.bf16.msra.mxu0 %v4135
          %4155 = vmatprep.subr.bf16.mxu0 0
          %4156 = vmatpush1.bf16.msra.mxu0 %v4134
          %4157 = vmatprep.subr.bf16.mxu0 0
          %4158 = vmatpush2.bf16.msra.mxu0 0
          %4159 = vmatprep.subr.bf16.mxu0 0
          %4160 = vmatpush2.bf16.msra.mxu0 0
          %4161 = vmatprep.subr.bf16.mxu0 0
          %4162 = vmatpush2.bf16.msra.mxu0 0
          %4163 = vmatprep.subr.bf16.mxu0 0
          %4164 = vmatpush2.bf16.msra.mxu0 0
          %4165 = vmatprep.subr.bf16.mxu0 0
          %4166 = vmatpush2.bf16.msra.mxu0 0
          %4167 = vmatprep.subr.bf16.mxu0 0
          %4168 = vmatpush2.bf16.msra.mxu0 0
          %4169 = vmatprep.subr.bf16.mxu0 0
          %4170 = vmatpush2.bf16.msra.mxu0 0
          %4171 = vmatprep.subr.bf16.mxu0 0
          %4172 = vmatpush2.bf16.msra.mxu0 0
          %4173 = vmatprep.mubr.bf16.mxu0 0
          %4174 = vmatmul.mubr.bf16.gmra.mxu0 %v4139
          %v4175 = vpop.f32.mrf.mxu0
          %v4176 = vadd.f32 %v4124, %v4175
          %v4177 = vpop.f32.mrf.mxu0
          %v4178 = vpop.f32.mrf.mxu0
          %v4179 = vadd.f32 %v4124, %v4178
          %v4180 = vpop.f32.mrf.mxu0
          %4181 = vdwg.mxu0
          %4182 = vst [vmem:[#allocation3] sm:$0xff] %v4176
          %4183 = vst [vmem:[#allocation3 + $0x8] sm:$0xff] %v4179
        $region96: #{tpu_custom_call.1} parent=87 // pred_fallthru
          _
        // Predicated region
        $region97: #{tpu_custom_call.1} parent=87 // pred_check
          %p4184 = pneg %p486
        $region98: #{tpu_custom_call.1} parent=87 // pred_check_branch
          %4186 = sbr.rel (%p4184) target = $region100
        $region99: #{tpu_custom_call.1} parent=87 // pred_region
          %s4187 = smul.u32 2, %s33
          %s4189 = ssub.s32 256, 256
          %4190 = vsyncadd [#allocation4], %s4189
          %s4191 = smul.addr %s4187, 128
          %s4192 = scalar_lea.hbm %s17, %s4191
          %s4193 = sshll.u32 [#allocation3], 4
          %s4194 = int_to_ptr.vmem [resolvable:$true] %s4193
          %4199 = dma.vmem_to_hbm [thread:$0]  %s4194, 256, %s4192, [#allocation4], 128, 128, 8
        $region100: #{tpu_custom_call.1} parent=87 // pred_fallthru
          _
        // Predicated region
        $region101: #{tpu_custom_call.1} parent=87 // pred_check
          %p4200 = pneg %p486
        $region102: #{tpu_custom_call.1} parent=87 // pred_check_branch
          %4202 = sbr.rel (%p4200) target = $region104
        $region103: #{tpu_custom_call.1} parent=87 // pred_region
          %4203 = dma.done [#allocation4], 256
        $region104: #{tpu_custom_call.1} parent=87 // pred_fallthru
          _
      $region88: #{tpu_custom_call.1} parent=5 // pred_fallthru
        _
      %p4204 = scmp.le.s32.totalorder 2, %s24
      // Predicated region
      $region105: #{tpu_custom_call.1} parent=5 // pred_check
        %p4205 = pneg %p4204
      $region106: #{tpu_custom_call.1} parent=5 // pred_check_branch
        %4207 = sbr.rel (%p4205) target = $region108
      $region107: #{tpu_custom_call.1} parent=5 // pred_region
        %s4208 = ssub.s32 %s24, 2
      $region108: #{tpu_custom_call.1} parent=5 // pred_fallthru
        _
    $region6: #{tpu_custom_call.1} parent=1 // loop_footer
      %s28 = sadd.s32 1, %s24
    $region7: #{tpu_custom_call.1} parent=1 // loop_footer_branch
      %23 = sbr.rel target = $region3
    $region8: #{tpu_custom_call.1} parent=1 // loop_exit
      _
    %4209 = vsyncpa [#allocation4], 1
    %s4210 = scalar_lea.sflag [#allocation4], 1
    %4211 = vsyncpa %s4210, 1

</llo_original>
